<compile_context>
chip_gen: v7x
topology: tpu7x:2x2x1
jax: 0.10.0
libtpu: 0.0.40
codegen_flags: <defaults>
</compile_context>

<pallas_src>
import math
import jax
import jax.numpy as jnp
from jax import lax
from jax.experimental import pallas as pl
from jax.experimental.pallas import tpu as pltpu

B, S, H = 2, 8, 32          # batch, seq len, hidden
NH, DH = 4, 8               # heads, head dim
I = 64                      # FFN intermediate
L = 2                       # encoder layers
V = 50                      # vocab
MAXPOS = 40                 # position table size
VPAD, PPAD = 64, 64         # tables zero-padded to aligned row counts
PAD_IDX = 1                 # RoBERTa padding idx
EPS = 1e-5
NEG = -1e9
VW = 3 * H                  # packed per-layer vector row width (96)


# ----------------------------- in-kernel helpers -----------------------------
def _layernorm(x, g, b):
    mu = jnp.mean(x, axis=-1, keepdims=True)
    var = jnp.mean((x - mu) ** 2, axis=-1, keepdims=True)
    return (x - mu) * lax.rsqrt(var + EPS) * g + b


def _gelu(x):
    # TODO(synk): HF RoBERTa uses exact erf-GELU; tanh approximation kept here
    # (tanh maps to the EUP slot and avoids relying on an erf lowering).
    c = math.sqrt(2.0 / math.pi)
    return 0.5 * x * (1.0 + jnp.tanh(c * (x + 0.044715 * x * x * x)))


# ------------------------------- fused kernel --------------------------------
def roberta_kernel(ids_ref, amask_ref, wemb_ref, pemb_ref, misc_ref,
                   wqkv_ref, wo_ref, w1_ref, w2_ref, lvec_ref, wp_ref,
                   h_ref, pool_ref):
    ids = ids_ref[...]                       # (B, S) int32
    amask = amask_ref[...]                   # (B, S) f32, 1=token 0=pad

    # ---- embeddings, built fully in-kernel via one-hot matmuls ----
    word_oh = (ids[:, :, None] ==
               lax.broadcasted_iota(jnp.int32, (B, S, VPAD), 2)).astype(jnp.float32)
    word_e = jnp.dot(word_oh.reshape(B * S, VPAD), wemb_ref[...],
                     preferred_element_type=jnp.float32)

    # RoBERTa position ids: cumsum over non-pad tokens (ids != pad_idx) + pad_idx.
    not_pad = (ids != PAD_IDX).astype(jnp.float32)                      # (B, S)
    tril = (lax.broadcasted_iota(jnp.int32, (S, S), 0) <=
            lax.broadcasted_iota(jnp.int32, (S, S), 1)).astype(jnp.float32)
    pos = (jnp.dot(not_pad, tril, preferred_element_type=jnp.float32) * not_pad
           + float(PAD_IDX)).astype(jnp.int32)                          # (B, S)
    pos_oh = (pos[:, :, None] ==
              lax.broadcasted_iota(jnp.int32, (B, S, PPAD), 2)).astype(jnp.float32)
    pos_e = jnp.dot(pos_oh.reshape(B * S, PPAD), pemb_ref[...],
                    preferred_element_type=jnp.float32)   # token-type emb folded in

    x = _layernorm(word_e + pos_e, misc_ref[0:1, :], misc_ref[1:2, :])  # (B*S, H)

    # ---- additive attention mask, hoisted once, in head-batch order (h, b) ----
    # replicate rows of (1-mask)*NEG to batch index n = h*B + b via a tiny matmul
    rep = (lax.broadcasted_iota(jnp.int32, (NH * B, B), 0) % B ==
           lax.broadcasted_iota(jnp.int32, (NH * B, B), 1)).astype(jnp.float32)
    add_hb = jnp.dot(rep, (1.0 - amask) * NEG,
                     preferred_element_type=jnp.float32)                # (NH*B, S)
    mask_full = jnp.broadcast_to(add_hb[:, None, :], (NH * B, S, S))

    for l in range(L):                       # L = 2 -> static unroll
        lv = lvec_ref[l]                     # (8, 3H) packed biases / LN params
        bqkv = lv[0:1, :]
        bo, g1, b1 = lv[1:2, :H], lv[2:3, :H], lv[3:4, :H]
        bi, bf = lv[4:5, :I], lv[5:6, :H]
        g2, b2 = lv[6:7, :H], lv[7:8, :H]

        # fused QKV projection; Q columns pre-scaled by 1/sqrt(DH) at init time
        qkv = jnp.dot(x, wqkv_ref[l], preferred_element_type=jnp.float32) + bqkv

        # head-batched attention: all (head, batch) pairs in one einsum pair
        q = jnp.stack([qkv[:, h * DH:(h + 1) * DH] for h in range(NH)],
                      axis=0).reshape(NH * B, S, DH)
        k = jnp.stack([qkv[:, H + h * DH:H + (h + 1) * DH] for h in range(NH)],
                      axis=0).reshape(NH * B, S, DH)
        v = jnp.stack([qkv[:, 2 * H + h * DH:2 * H + (h + 1) * DH] for h in range(NH)],
                      axis=0).reshape(NH * B, S, DH)

        sc = jnp.einsum('bqd,bkd->bqk', q, k,
                        preferred_element_type=jnp.float32) + mask_full
        # max-subtraction dropped: logits are small & bounded; masked lanes
        # underflow to exactly 0 in exp.
        p = jnp.exp(sc)
        p = p * pl.reciprocal(jnp.sum(p, axis=-1, keepdims=True), approx=True)
        ctx = jnp.einsum('bqk,bkd->bqd', p, v,
                         preferred_element_type=jnp.float32)            # (NH*B,S,DH)

        # output projection: one head-batched einsum against (NH, DH, H) wo,
        # then sum over heads (replaces 4 accumulating K=8 dots + wo slices).
        ctx = ctx.reshape(NH, B * S, DH)
        attn = jnp.sum(jnp.einsum('htd,hdo->hto', ctx, wo_ref[l],
                                  preferred_element_type=jnp.float32),
                       axis=0) + bo                                      # (B*S, H)

        x1 = _layernorm(x + attn, g1, b1)
        hmid = _gelu(jnp.dot(x1, w1_ref[l],
                             preferred_element_type=jnp.float32) + bi)
        ffn = jnp.dot(hmid, w2_ref[l],
                      preferred_element_type=jnp.float32) + bf
        x = _layernorm(x1 + ffn, g2, b2)

    h_ref[...] = x                           # last_hidden_state, (B*S, H)

    # pooler: tanh(W * h[:, 0] + b)
    h0 = x.reshape(B, S, H)[:, 0, :]         # (B, H) first-token rows
    pool_ref[...] = jnp.tanh(
        jnp.dot(h0, wp_ref[...], preferred_element_type=jnp.float32)
        + misc_ref[2:3, :])


# -------------------------------- wrappers ------------------------------------
def _vmem():
    return pl.BlockSpec(memory_space=pltpu.MemorySpace.VMEM)


def roberta_pallas(ids, amask, p):
    args = (ids, amask, p["word_emb"], p["pos_emb"], p["misc"],
            p["wqkv"], p["wo"], p["w1"], p["w2"], p["lvec"], p["pool_w"])
    return pl.pallas_call(
        roberta_kernel,
        out_shape=(jax.ShapeDtypeStruct((B * S, H), jnp.float32),
                   jax.ShapeDtypeStruct((B, H), jnp.float32)),
        in_specs=[_vmem()] * len(args),
        out_specs=(_vmem(), _vmem()),
    )(*args)


# ----------------------------- params & forward -------------------------------
def init_params(key):
    std = 0.02
    keys = iter(jax.random.split(key, 64))

    def nrm(shape):
        return (std * jax.random.normal(next(keys), shape)).astype(jnp.float32)

    def row(vec):                            # pad a small vector to 3H lanes
        return jnp.pad(vec, (0, VW - vec.shape[0]))

    word_emb = nrm((V, H))
    pos_emb = nrm((MAXPOS, H))
    type_emb = nrm((1, H))
    pool_w = nrm((H, H))

    scale = 1.0 / math.sqrt(DH)
    wqkv_l, wo_l, w1_l, w2_l, lvec_l = [], [], [], [], []
    for _ in range(L):
        wq, wk, wv = nrm((H, H)), nrm((H, H)), nrm((H, H))
        # fused QKV weight; attention scale folded into the Q columns (and Q bias)
        wqkv_l.append(jnp.concatenate([wq * scale, wk, wv], axis=1))     # (H, 3H)
        wo_l.append(nrm((H, H)).reshape(NH, DH, H))   # pre-reshaped for head-batched proj
        w1_l.append(nrm((H, I)))
        w2_l.append(nrm((I, H)))

        bqkv = jnp.zeros((VW,), jnp.float32).at[:H].multiply(scale)      # stays 0
        lvec_l.append(jnp.stack([
            bqkv,                                   # 0: fused QKV bias (Q part scaled)
            row(jnp.zeros((H,), jnp.float32)),      # 1: attention output bias
            row(jnp.ones((H,), jnp.float32)),       # 2: LN1 gamma
            row(jnp.zeros((H,), jnp.float32)),      # 3: LN1 beta
            row(jnp.zeros((I,), jnp.float32)),      # 4: FFN intermediate bias
            row(jnp.zeros((H,), jnp.float32)),      # 5: FFN output bias
            row(jnp.ones((H,), jnp.float32)),       # 6: LN2 gamma
            row(jnp.zeros((H,), jnp.float32)),      # 7: LN2 beta
        ], axis=0))                                  # (8, 3H)

    misc = jnp.stack([
        jnp.ones((H,), jnp.float32),     # embedding LN gamma
        jnp.zeros((H,), jnp.float32),    # embedding LN beta
        jnp.zeros((H,), jnp.float32),    # pooler bias
    ], axis=0)                           # (3, H)

    return {
        # tables zero-padded to aligned row counts; token-type-0 embedding folded
        # into every (valid) row of the position table.
        "word_emb": jnp.zeros((VPAD, H), jnp.float32).at[:V].set(word_emb),
        "pos_emb": jnp.zeros((PPAD, H), jnp.float32).at[:MAXPOS].set(pos_emb + type_emb),
        "misc": misc,
        "wqkv": jnp.stack(wqkv_l),       # (L, H, 3H)
        "wo": jnp.stack(wo_l),           # (L, NH, DH, H)
        "w1": jnp.stack(w1_l),           # (L, H, I)
        "w2": jnp.stack(w2_l),           # (L, I, H)
        "lvec": jnp.stack(lvec_l),       # (L, 8, 3H)
        "pool_w": pool_w,                # (H, H)
    }


@jax.jit
def roberta_forward(params, input_ids, attention_mask):
    """Returns (last_hidden_state (B,S,H), pooled_output (B,H)) — i.e. `top_vec`.

    Dropout omitted (eval / no_grad semantics of the reference forward).
    The wrapper only casts dtypes; everything else runs in the single kernel.
    """
    ids = input_ids.astype(jnp.int32)
    amask = attention_mask.astype(jnp.float32)
    last_flat, pooled = roberta_pallas(ids, amask, params)
    return last_flat.reshape(B, S, H), pooled


if __name__ == "__main__":
    key = jax.random.PRNGKey(0)
    pkey, ikey = jax.random.split(key)
    params = init_params(pkey)

    input_ids = jax.random.randint(ikey, (B, S), 2, V)
    attention_mask = jnp.array([[1] * S, [1] * 6 + [0] * 2], dtype=jnp.int32)
    input_ids = jnp.where(attention_mask == 1, input_ids, PAD_IDX)

    last_hidden, pooled = roberta_forward(params, input_ids, attention_mask)
    jax.block_until_ready((last_hidden, pooled))
    assert last_hidden.shape == (B, S, H) and pooled.shape == (B, H)
    assert bool(jnp.all(jnp.isfinite(last_hidden))) and bool(jnp.all(jnp.isfinite(pooled)))
    print("KERNEL_OK")
</pallas_src>

<mosaic_0001>
module attributes {stable_mosaic.version = 11 : i64} {
  func.func @roberta_kernel(%arg0: memref<2x8xi32, #tpu.memory_space<vmem>>, %arg1: memref<2x8xf32, #tpu.memory_space<vmem>>, %arg2: memref<64x32xf32, #tpu.memory_space<vmem>>, %arg3: memref<64x32xf32, #tpu.memory_space<vmem>>, %arg4: memref<3x32xf32, #tpu.memory_space<vmem>>, %arg5: memref<2x32x96xf32, #tpu.memory_space<vmem>>, %arg6: memref<2x4x8x32xf32, #tpu.memory_space<vmem>>, %arg7: memref<2x32x64xf32, #tpu.memory_space<vmem>>, %arg8: memref<2x64x32xf32, #tpu.memory_space<vmem>>, %arg9: memref<2x8x96xf32, #tpu.memory_space<vmem>>, %arg10: memref<32x32xf32, #tpu.memory_space<vmem>>, %arg11: memref<16x32xf32, #tpu.memory_space<vmem>>, %arg12: memref<2x32xf32, #tpu.memory_space<vmem>>) attributes {dimension_semantics = [], scalar_prefetch = 0 : i64, scratch_operands = 0 : i64, tpu.core_type = #tpu.core_type<tc>} {
    %c0 = arith.constant 0 : index
    %c0_0 = arith.constant 0 : index
    %0 = vector.load %arg0[%c0, %c0_0] : memref<2x8xi32, #tpu.memory_space<vmem>>, vector<2x8xi32>
    %c0_1 = arith.constant 0 : index
    %c0_2 = arith.constant 0 : index
    %1 = vector.load %arg1[%c0_1, %c0_2] : memref<2x8xf32, #tpu.memory_space<vmem>>, vector<2x8xf32>
    %2 = vector.shape_cast %0 : vector<2x8xi32> to vector<2x8x1xi32>
    %3 = tpu.iota {dimensions = array<i32: 2>} : vector<2x8x64xi32>
    %4 = vector.broadcast %2 : vector<2x8x1xi32> to vector<2x8x64xi32>
    %5 = arith.cmpi eq, %4, %3 : vector<2x8x64xi32>
    %6 = arith.extui %5 : vector<2x8x64xi1> to vector<2x8x64xi32>
    %7 = arith.sitofp %6 : vector<2x8x64xi32> to vector<2x8x64xf32>
    %8 = vector.shape_cast %7 : vector<2x8x64xf32> to vector<16x64xf32>
    %c0_3 = arith.constant 0 : index
    %c0_4 = arith.constant 0 : index
    %9 = vector.load %arg2[%c0_3, %c0_4] : memref<64x32xf32, #tpu.memory_space<vmem>>, vector<64x32xf32>
    %cst = arith.constant dense<0.000000e+00> : vector<16x32xf32>
    %10 = tpu.matmul %8, %9, %cst {dimension_numbers = #tpu.dot_dimension_numbers<[1], [0], [0], [1], [0, 0, 1, 1], [], []>} : vector<16x64xf32>, vector<64x32xf32>, vector<16x32xf32> -> vector<16x32xf32>
    %c1_i32 = arith.constant 1 : i32
    %11 = vector.broadcast %c1_i32 : i32 to vector<2x8xi32>
    %12 = arith.cmpi ne, %0, %11 : vector<2x8xi32>
    %13 = arith.extui %12 : vector<2x8xi1> to vector<2x8xi32>
    %14 = arith.sitofp %13 : vector<2x8xi32> to vector<2x8xf32>
    %15 = tpu.iota {dimensions = array<i32: 0>} : vector<8x8xi32>
    %16 = tpu.iota {dimensions = array<i32: 1>} : vector<8x8xi32>
    %17 = arith.cmpi sle, %15, %16 : vector<8x8xi32>
    %18 = arith.extui %17 : vector<8x8xi1> to vector<8x8xi32>
    %19 = arith.sitofp %18 : vector<8x8xi32> to vector<8x8xf32>
    %cst_5 = arith.constant dense<0.000000e+00> : vector<2x8xf32>
    %20 = tpu.matmul %14, %19, %cst_5 {dimension_numbers = #tpu.dot_dimension_numbers<[1], [0], [0], [1], [0, 0, 1, 1], [], []>} : vector<2x8xf32>, vector<8x8xf32>, vector<2x8xf32> -> vector<2x8xf32>
    %21 = arith.mulf %20, %14 : vector<2x8xf32>
    %cst_6 = arith.constant 1.000000e+00 : f32
    %22 = vector.broadcast %cst_6 : f32 to vector<2x8xf32>
    %23 = arith.addf %21, %22 : vector<2x8xf32>
    %24 = arith.fptosi %23 : vector<2x8xf32> to vector<2x8xi32>
    %25 = vector.shape_cast %24 : vector<2x8xi32> to vector<2x8x1xi32>
    %26 = tpu.iota {dimensions = array<i32: 2>} : vector<2x8x64xi32>
    %27 = vector.broadcast %25 : vector<2x8x1xi32> to vector<2x8x64xi32>
    %28 = arith.cmpi eq, %27, %26 : vector<2x8x64xi32>
    %29 = arith.extui %28 : vector<2x8x64xi1> to vector<2x8x64xi32>
    %30 = arith.sitofp %29 : vector<2x8x64xi32> to vector<2x8x64xf32>
    %31 = vector.shape_cast %30 : vector<2x8x64xf32> to vector<16x64xf32>
    %c0_7 = arith.constant 0 : index
    %c0_8 = arith.constant 0 : index
    %32 = vector.load %arg3[%c0_7, %c0_8] : memref<64x32xf32, #tpu.memory_space<vmem>>, vector<64x32xf32>
    %cst_9 = arith.constant dense<0.000000e+00> : vector<16x32xf32>
    %33 = tpu.matmul %31, %32, %cst_9 {dimension_numbers = #tpu.dot_dimension_numbers<[1], [0], [0], [1], [0, 0, 1, 1], [], []>} : vector<16x64xf32>, vector<64x32xf32>, vector<16x32xf32> -> vector<16x32xf32>
    %34 = arith.addf %10, %33 : vector<16x32xf32>
    %c0_10 = arith.constant 0 : index
    %c0_11 = arith.constant 0 : index
    %35 = vector.load %arg4[%c0_10, %c0_11] : memref<3x32xf32, #tpu.memory_space<vmem>>, vector<1x32xf32>
    %c1 = arith.constant 1 : index
    %c0_12 = arith.constant 0 : index
    %36 = vector.load %arg4[%c1, %c0_12] : memref<3x32xf32, #tpu.memory_space<vmem>>, vector<1x32xf32>
    %cst_13 = arith.constant dense<0.000000e+00> : vector<16xf32>
    %37 = vector.multi_reduction <add>, %34, %cst_13 [1] : vector<16x32xf32> to vector<16xf32>
    %38 = vector.shape_cast %37 : vector<16xf32> to vector<16x1xf32>
    %cst_14 = arith.constant 3.200000e+01 : f32
    %39 = vector.broadcast %cst_14 : f32 to vector<16x1xf32>
    %40 = arith.divf %38, %39 : vector<16x1xf32>
    %41 = vector.broadcast %40 : vector<16x1xf32> to vector<16x32xf32>
    %42 = arith.subf %34, %41 : vector<16x32xf32>
    %43 = arith.mulf %42, %42 : vector<16x32xf32>
    %cst_15 = arith.constant dense<0.000000e+00> : vector<16xf32>
    %44 = vector.multi_reduction <add>, %43, %cst_15 [1] : vector<16x32xf32> to vector<16xf32>
    %45 = vector.shape_cast %44 : vector<16xf32> to vector<16x1xf32>
    %cst_16 = arith.constant 3.200000e+01 : f32
    %46 = vector.broadcast %cst_16 : f32 to vector<16x1xf32>
    %47 = arith.divf %45, %46 : vector<16x1xf32>
    %48 = vector.broadcast %40 : vector<16x1xf32> to vector<16x32xf32>
    %49 = arith.subf %34, %48 : vector<16x32xf32>
    %cst_17 = arith.constant 9.99999974E-6 : f32
    %50 = vector.broadcast %cst_17 : f32 to vector<16x1xf32>
    %51 = arith.addf %47, %50 : vector<16x1xf32>
    %52 = math.rsqrt %51 : vector<16x1xf32>
    %53 = vector.broadcast %52 : vector<16x1xf32> to vector<16x32xf32>
    %54 = arith.mulf %49, %53 : vector<16x32xf32>
    %55 = vector.broadcast %35 : vector<1x32xf32> to vector<16x32xf32>
    %56 = arith.mulf %54, %55 : vector<16x32xf32>
    %57 = vector.broadcast %36 : vector<1x32xf32> to vector<16x32xf32>
    %58 = arith.addf %56, %57 : vector<16x32xf32>
    %59 = tpu.iota {dimensions = array<i32: 0>} : vector<8x2xi32>
    %c2_i32 = arith.constant 2 : i32
    %c0_i32 = arith.constant 0 : i32
    %60 = arith.cmpi eq, %c2_i32, %c0_i32 : i32
    %c1_i32_18 = arith.constant 1 : i32
    %61 = arith.select %60, %c1_i32_18, %c2_i32 : i32
    %62 = vector.broadcast %61 : i32 to vector<8x2xi32>
    %63 = arith.remsi %59, %62 : vector<8x2xi32>
    %c0_i32_19 = arith.constant 0 : i32
    %64 = vector.broadcast %c0_i32_19 : i32 to vector<8x2xi32>
    %65 = arith.cmpi ne, %63, %64 : vector<8x2xi32>
    %c0_i32_20 = arith.constant 0 : i32
    %66 = vector.broadcast %c0_i32_20 : i32 to vector<8x2xi32>
    %67 = arith.cmpi slt, %63, %66 : vector<8x2xi32>
    %c0_i32_21 = arith.constant 0 : i32
    %68 = arith.cmpi slt, %61, %c0_i32_21 : i32
    %69 = vector.broadcast %68 : i1 to vector<8x2xi1>
    %70 = vector.broadcast %69 : vector<8x2xi1> to vector<8x2xi1>
    %71 = arith.xori %67, %70 : vector<8x2xi1>
    %72 = arith.andi %71, %65 : vector<8x2xi1>
    %73 = vector.broadcast %61 : i32 to vector<8x2xi32>
    %74 = arith.addi %63, %73 : vector<8x2xi32>
    %75 = arith.select %72, %74, %63 : vector<8x2xi1>, vector<8x2xi32>
    %76 = tpu.iota {dimensions = array<i32: 1>} : vector<8x2xi32>
    %77 = arith.cmpi eq, %75, %76 : vector<8x2xi32>
    %78 = arith.extui %77 : vector<8x2xi1> to vector<8x2xi32>
    %79 = arith.sitofp %78 : vector<8x2xi32> to vector<8x2xf32>
    %cst_22 = arith.constant 1.000000e+00 : f32
    %80 = vector.broadcast %cst_22 : f32 to vector<2x8xf32>
    %81 = arith.subf %80, %1 : vector<2x8xf32>
    %cst_23 = arith.constant -1.000000e+09 : f32
    %82 = vector.broadcast %cst_23 : f32 to vector<2x8xf32>
    %83 = arith.mulf %81, %82 : vector<2x8xf32>
    %cst_24 = arith.constant dense<0.000000e+00> : vector<8x8xf32>
    %84 = tpu.matmul %79, %83, %cst_24 {dimension_numbers = #tpu.dot_dimension_numbers<[1], [0], [0], [1], [0, 0, 1, 1], [], []>} : vector<8x2xf32>, vector<2x8xf32>, vector<8x8xf32> -> vector<8x8xf32>
    %85 = vector.shape_cast %84 : vector<8x8xf32> to vector<8x1x8xf32>
    %86 = vector.shape_cast %85 : vector<8x1x8xf32> to vector<8x1x8xf32>
    %87 = vector.broadcast %86 : vector<8x1x8xf32> to vector<8x8x8xf32>
    %c0_25 = arith.constant 0 : index
    %c0_26 = arith.constant 0 : index
    %c0_27 = arith.constant 0 : index
    %88 = vector.load %arg9[%c0_25, %c0_26, %c0_27] : memref<2x8x96xf32, #tpu.memory_space<vmem>>, vector<1x8x96xf32>
    %89 = vector.shape_cast %88 : vector<1x8x96xf32> to vector<8x96xf32>
    %90 = vector.extract_strided_slice %89 {offsets = [0, 0], sizes = [1, 96], strides = [1, 1]} : vector<8x96xf32> to vector<1x96xf32>
    %91 = vector.extract_strided_slice %89 {offsets = [1, 0], sizes = [1, 32], strides = [1, 1]} : vector<8x96xf32> to vector<1x32xf32>
    %92 = vector.extract_strided_slice %89 {offsets = [2, 0], sizes = [1, 32], strides = [1, 1]} : vector<8x96xf32> to vector<1x32xf32>
    %93 = vector.extract_strided_slice %89 {offsets = [3, 0], sizes = [1, 32], strides = [1, 1]} : vector<8x96xf32> to vector<1x32xf32>
    %94 = vector.extract_strided_slice %89 {offsets = [4, 0], sizes = [1, 64], strides = [1, 1]} : vector<8x96xf32> to vector<1x64xf32>
    %95 = vector.extract_strided_slice %89 {offsets = [5, 0], sizes = [1, 32], strides = [1, 1]} : vector<8x96xf32> to vector<1x32xf32>
    %96 = vector.extract_strided_slice %89 {offsets = [6, 0], sizes = [1, 32], strides = [1, 1]} : vector<8x96xf32> to vector<1x32xf32>
    %97 = vector.extract_strided_slice %89 {offsets = [7, 0], sizes = [1, 32], strides = [1, 1]} : vector<8x96xf32> to vector<1x32xf32>
    %c0_28 = arith.constant 0 : index
    %c0_29 = arith.constant 0 : index
    %c0_30 = arith.constant 0 : index
    %98 = vector.load %arg5[%c0_28, %c0_29, %c0_30] : memref<2x32x96xf32, #tpu.memory_space<vmem>>, vector<1x32x96xf32>
    %99 = vector.shape_cast %98 : vector<1x32x96xf32> to vector<32x96xf32>
    %cst_31 = arith.constant dense<0.000000e+00> : vector<16x96xf32>
    %100 = tpu.matmul %58, %99, %cst_31 {dimension_numbers = #tpu.dot_dimension_numbers<[1], [0], [0], [1], [0, 0, 1, 1], [], []>} : vector<16x32xf32>, vector<32x96xf32>, vector<16x96xf32> -> vector<16x96xf32>
    %101 = vector.broadcast %90 : vector<1x96xf32> to vector<16x96xf32>
    %102 = arith.addf %100, %101 : vector<16x96xf32>
    %103 = vector.extract_strided_slice %102 {offsets = [0, 0], sizes = [16, 8], strides = [1, 1]} : vector<16x96xf32> to vector<16x8xf32>
    %104 = vector.extract_strided_slice %102 {offsets = [0, 8], sizes = [16, 8], strides = [1, 1]} : vector<16x96xf32> to vector<16x8xf32>
    %105 = vector.extract_strided_slice %102 {offsets = [0, 16], sizes = [16, 8], strides = [1, 1]} : vector<16x96xf32> to vector<16x8xf32>
    %106 = vector.extract_strided_slice %102 {offsets = [0, 24], sizes = [16, 8], strides = [1, 1]} : vector<16x96xf32> to vector<16x8xf32>
    %107 = vector.shape_cast %103 : vector<16x8xf32> to vector<1x16x8xf32>
    %108 = vector.shape_cast %104 : vector<16x8xf32> to vector<1x16x8xf32>
    %109 = vector.shape_cast %105 : vector<16x8xf32> to vector<1x16x8xf32>
    %110 = vector.shape_cast %106 : vector<16x8xf32> to vector<1x16x8xf32>
    %111 = tpu.concatenate %107, %108, %109, %110 in 0 : vector<1x16x8xf32>, vector<1x16x8xf32>, vector<1x16x8xf32>, vector<1x16x8xf32> -> vector<4x16x8xf32>
    %112 = vector.shape_cast %111 : vector<4x16x8xf32> to vector<8x8x8xf32>
    %113 = vector.extract_strided_slice %102 {offsets = [0, 32], sizes = [16, 8], strides = [1, 1]} : vector<16x96xf32> to vector<16x8xf32>
    %114 = vector.extract_strided_slice %102 {offsets = [0, 40], sizes = [16, 8], strides = [1, 1]} : vector<16x96xf32> to vector<16x8xf32>
    %115 = vector.extract_strided_slice %102 {offsets = [0, 48], sizes = [16, 8], strides = [1, 1]} : vector<16x96xf32> to vector<16x8xf32>
    %116 = vector.extract_strided_slice %102 {offsets = [0, 56], sizes = [16, 8], strides = [1, 1]} : vector<16x96xf32> to vector<16x8xf32>
    %117 = vector.shape_cast %113 : vector<16x8xf32> to vector<1x16x8xf32>
    %118 = vector.shape_cast %114 : vector<16x8xf32> to vector<1x16x8xf32>
    %119 = vector.shape_cast %115 : vector<16x8xf32> to vector<1x16x8xf32>
    %120 = vector.shape_cast %116 : vector<16x8xf32> to vector<1x16x8xf32>
    %121 = tpu.concatenate %117, %118, %119, %120 in 0 : vector<1x16x8xf32>, vector<1x16x8xf32>, vector<1x16x8xf32>, vector<1x16x8xf32> -> vector<4x16x8xf32>
    %122 = vector.shape_cast %121 : vector<4x16x8xf32> to vector<8x8x8xf32>
    %123 = vector.extract_strided_slice %102 {offsets = [0, 64], sizes = [16, 8], strides = [1, 1]} : vector<16x96xf32> to vector<16x8xf32>
    %124 = vector.extract_strided_slice %102 {offsets = [0, 72], sizes = [16, 8], strides = [1, 1]} : vector<16x96xf32> to vector<16x8xf32>
    %125 = vector.extract_strided_slice %102 {offsets = [0, 80], sizes = [16, 8], strides = [1, 1]} : vector<16x96xf32> to vector<16x8xf32>
    %126 = vector.extract_strided_slice %102 {offsets = [0, 88], sizes = [16, 8], strides = [1, 1]} : vector<16x96xf32> to vector<16x8xf32>
    %127 = vector.shape_cast %123 : vector<16x8xf32> to vector<1x16x8xf32>
    %128 = vector.shape_cast %124 : vector<16x8xf32> to vector<1x16x8xf32>
    %129 = vector.shape_cast %125 : vector<16x8xf32> to vector<1x16x8xf32>
    %130 = vector.shape_cast %126 : vector<16x8xf32> to vector<1x16x8xf32>
    %131 = tpu.concatenate %127, %128, %129, %130 in 0 : vector<1x16x8xf32>, vector<1x16x8xf32>, vector<1x16x8xf32>, vector<1x16x8xf32> -> vector<4x16x8xf32>
    %132 = vector.shape_cast %131 : vector<4x16x8xf32> to vector<8x8x8xf32>
    "tpu.trace_start"() <{level = 10 : i32, message = "bqd,bkd->bqk"}> : () -> ()
    %cst_32 = arith.constant dense<0.000000e+00> : vector<8x8x8xf32>
    %133 = tpu.matmul %112, %122, %cst_32 {dimension_numbers = #tpu.dot_dimension_numbers<[2], [2], [1], [1], [0, 0, 0, 1, 1, 1], [0], [0]>} : vector<8x8x8xf32>, vector<8x8x8xf32>, vector<8x8x8xf32> -> vector<8x8x8xf32>
    "tpu.trace_stop"() : () -> ()
    %134 = arith.addf %133, %87 : vector<8x8x8xf32>
    %135 = math.exp %134 : vector<8x8x8xf32>
    %cst_33 = arith.constant dense<0.000000e+00> : vector<8x8xf32>
    %136 = vector.multi_reduction <add>, %135, %cst_33 [2] : vector<8x8x8xf32> to vector<8x8xf32>
    %137 = vector.shape_cast %136 : vector<8x8xf32> to vector<8x8x1xf32>
    %138 = tpu.reciprocal %137 {approx = true} : vector<8x8x1xf32> -> vector<8x8x1xf32>
    %139 = vector.broadcast %138 : vector<8x8x1xf32> to vector<8x8x8xf32>
    %140 = arith.mulf %135, %139 : vector<8x8x8xf32>
    "tpu.trace_start"() <{level = 10 : i32, message = "bqk,bkd->bqd"}> : () -> ()
    %cst_34 = arith.constant dense<0.000000e+00> : vector<8x8x8xf32>
    %141 = tpu.matmul %140, %132, %cst_34 {dimension_numbers = #tpu.dot_dimension_numbers<[2], [1], [1], [2], [0, 0, 0, 1, 1, 2], [0], [0]>} : vector<8x8x8xf32>, vector<8x8x8xf32>, vector<8x8x8xf32> -> vector<8x8x8xf32>
    "tpu.trace_stop"() : () -> ()
    %142 = vector.shape_cast %141 : vector<8x8x8xf32> to vector<4x16x8xf32>
    %c0_35 = arith.constant 0 : index
    %c0_36 = arith.constant 0 : index
    %c0_37 = arith.constant 0 : index
    %c0_38 = arith.constant 0 : index
    %143 = vector.load %arg6[%c0_35, %c0_36, %c0_37, %c0_38] : memref<2x4x8x32xf32, #tpu.memory_space<vmem>>, vector<1x4x8x32xf32>
    %144 = vector.shape_cast %143 : vector<1x4x8x32xf32> to vector<4x8x32xf32>
    "tpu.trace_start"() <{level = 10 : i32, message = "htd,hdo->hto"}> : () -> ()
    %cst_39 = arith.constant dense<0.000000e+00> : vector<4x16x32xf32>
    %145 = tpu.matmul %142, %144, %cst_39 {dimension_numbers = #tpu.dot_dimension_numbers<[2], [1], [1], [2], [0, 0, 0, 1, 1, 2], [0], [0]>} : vector<4x16x8xf32>, vector<4x8x32xf32>, vector<4x16x32xf32> -> vector<4x16x32xf32>
    "tpu.trace_stop"() : () -> ()
    %cst_40 = arith.constant dense<0.000000e+00> : vector<16x32xf32>
    %146 = vector.multi_reduction <add>, %145, %cst_40 [0] : vector<4x16x32xf32> to vector<16x32xf32>
    %147 = vector.broadcast %91 : vector<1x32xf32> to vector<16x32xf32>
    %148 = arith.addf %146, %147 : vector<16x32xf32>
    %149 = arith.addf %58, %148 : vector<16x32xf32>
    %cst_41 = arith.constant dense<0.000000e+00> : vector<16xf32>
    %150 = vector.multi_reduction <add>, %149, %cst_41 [1] : vector<16x32xf32> to vector<16xf32>
    %151 = vector.shape_cast %150 : vector<16xf32> to vector<16x1xf32>
    %cst_42 = arith.constant 3.200000e+01 : f32
    %152 = vector.broadcast %cst_42 : f32 to vector<16x1xf32>
    %153 = arith.divf %151, %152 : vector<16x1xf32>
    %154 = vector.broadcast %153 : vector<16x1xf32> to vector<16x32xf32>
    %155 = arith.subf %149, %154 : vector<16x32xf32>
    %156 = arith.mulf %155, %155 : vector<16x32xf32>
    %cst_43 = arith.constant dense<0.000000e+00> : vector<16xf32>
    %157 = vector.multi_reduction <add>, %156, %cst_43 [1] : vector<16x32xf32> to vector<16xf32>
    %158 = vector.shape_cast %157 : vector<16xf32> to vector<16x1xf32>
    %cst_44 = arith.constant 3.200000e+01 : f32
    %159 = vector.broadcast %cst_44 : f32 to vector<16x1xf32>
    %160 = arith.divf %158, %159 : vector<16x1xf32>
    %161 = vector.broadcast %153 : vector<16x1xf32> to vector<16x32xf32>
    %162 = arith.subf %149, %161 : vector<16x32xf32>
    %cst_45 = arith.constant 9.99999974E-6 : f32
    %163 = vector.broadcast %cst_45 : f32 to vector<16x1xf32>
    %164 = arith.addf %160, %163 : vector<16x1xf32>
    %165 = math.rsqrt %164 : vector<16x1xf32>
    %166 = vector.broadcast %165 : vector<16x1xf32> to vector<16x32xf32>
    %167 = arith.mulf %162, %166 : vector<16x32xf32>
    %168 = vector.broadcast %92 : vector<1x32xf32> to vector<16x32xf32>
    %169 = arith.mulf %167, %168 : vector<16x32xf32>
    %170 = vector.broadcast %93 : vector<1x32xf32> to vector<16x32xf32>
    %171 = arith.addf %169, %170 : vector<16x32xf32>
    %c0_46 = arith.constant 0 : index
    %c0_47 = arith.constant 0 : index
    %c0_48 = arith.constant 0 : index
    %172 = vector.load %arg7[%c0_46, %c0_47, %c0_48] : memref<2x32x64xf32, #tpu.memory_space<vmem>>, vector<1x32x64xf32>
    %173 = vector.shape_cast %172 : vector<1x32x64xf32> to vector<32x64xf32>
    %cst_49 = arith.constant dense<0.000000e+00> : vector<16x64xf32>
    %174 = tpu.matmul %171, %173, %cst_49 {dimension_numbers = #tpu.dot_dimension_numbers<[1], [0], [0], [1], [0, 0, 1, 1], [], []>} : vector<16x32xf32>, vector<32x64xf32>, vector<16x64xf32> -> vector<16x64xf32>
    %175 = vector.broadcast %94 : vector<1x64xf32> to vector<16x64xf32>
    %176 = arith.addf %174, %175 : vector<16x64xf32>
    %cst_50 = arith.constant 5.000000e-01 : f32
    %177 = vector.broadcast %cst_50 : f32 to vector<16x64xf32>
    %178 = arith.mulf %177, %176 : vector<16x64xf32>
    %cst_51 = arith.constant 4.471500e-02 : f32
    %179 = vector.broadcast %cst_51 : f32 to vector<16x64xf32>
    %180 = arith.mulf %179, %176 : vector<16x64xf32>
    %181 = arith.mulf %180, %176 : vector<16x64xf32>
    %182 = arith.mulf %181, %176 : vector<16x64xf32>
    %183 = arith.addf %176, %182 : vector<16x64xf32>
    %cst_52 = arith.constant 0.797884583 : f32
    %184 = vector.broadcast %cst_52 : f32 to vector<16x64xf32>
    %185 = arith.mulf %184, %183 : vector<16x64xf32>
    %186 = math.tanh %185 : vector<16x64xf32>
    %cst_53 = arith.constant 1.000000e+00 : f32
    %187 = vector.broadcast %cst_53 : f32 to vector<16x64xf32>
    %188 = arith.addf %187, %186 : vector<16x64xf32>
    %189 = arith.mulf %178, %188 : vector<16x64xf32>
    %c0_54 = arith.constant 0 : index
    %c0_55 = arith.constant 0 : index
    %c0_56 = arith.constant 0 : index
    %190 = vector.load %arg8[%c0_54, %c0_55, %c0_56] : memref<2x64x32xf32, #tpu.memory_space<vmem>>, vector<1x64x32xf32>
    %191 = vector.shape_cast %190 : vector<1x64x32xf32> to vector<64x32xf32>
    %cst_57 = arith.constant dense<0.000000e+00> : vector<16x32xf32>
    %192 = tpu.matmul %189, %191, %cst_57 {dimension_numbers = #tpu.dot_dimension_numbers<[1], [0], [0], [1], [0, 0, 1, 1], [], []>} : vector<16x64xf32>, vector<64x32xf32>, vector<16x32xf32> -> vector<16x32xf32>
    %193 = vector.broadcast %95 : vector<1x32xf32> to vector<16x32xf32>
    %194 = arith.addf %192, %193 : vector<16x32xf32>
    %195 = arith.addf %171, %194 : vector<16x32xf32>
    %cst_58 = arith.constant dense<0.000000e+00> : vector<16xf32>
    %196 = vector.multi_reduction <add>, %195, %cst_58 [1] : vector<16x32xf32> to vector<16xf32>
    %197 = vector.shape_cast %196 : vector<16xf32> to vector<16x1xf32>
    %cst_59 = arith.constant 3.200000e+01 : f32
    %198 = vector.broadcast %cst_59 : f32 to vector<16x1xf32>
    %199 = arith.divf %197, %198 : vector<16x1xf32>
    %200 = vector.broadcast %199 : vector<16x1xf32> to vector<16x32xf32>
    %201 = arith.subf %195, %200 : vector<16x32xf32>
    %202 = arith.mulf %201, %201 : vector<16x32xf32>
    %cst_60 = arith.constant dense<0.000000e+00> : vector<16xf32>
    %203 = vector.multi_reduction <add>, %202, %cst_60 [1] : vector<16x32xf32> to vector<16xf32>
    %204 = vector.shape_cast %203 : vector<16xf32> to vector<16x1xf32>
    %cst_61 = arith.constant 3.200000e+01 : f32
    %205 = vector.broadcast %cst_61 : f32 to vector<16x1xf32>
    %206 = arith.divf %204, %205 : vector<16x1xf32>
    %207 = vector.broadcast %199 : vector<16x1xf32> to vector<16x32xf32>
    %208 = arith.subf %195, %207 : vector<16x32xf32>
    %cst_62 = arith.constant 9.99999974E-6 : f32
    %209 = vector.broadcast %cst_62 : f32 to vector<16x1xf32>
    %210 = arith.addf %206, %209 : vector<16x1xf32>
    %211 = math.rsqrt %210 : vector<16x1xf32>
    %212 = vector.broadcast %211 : vector<16x1xf32> to vector<16x32xf32>
    %213 = arith.mulf %208, %212 : vector<16x32xf32>
    %214 = vector.broadcast %96 : vector<1x32xf32> to vector<16x32xf32>
    %215 = arith.mulf %213, %214 : vector<16x32xf32>
    %216 = vector.broadcast %97 : vector<1x32xf32> to vector<16x32xf32>
    %217 = arith.addf %215, %216 : vector<16x32xf32>
    %c1_63 = arith.constant 1 : index
    %c0_64 = arith.constant 0 : index
    %c0_65 = arith.constant 0 : index
    %218 = vector.load %arg9[%c1_63, %c0_64, %c0_65] : memref<2x8x96xf32, #tpu.memory_space<vmem>>, vector<1x8x96xf32>
    %219 = vector.shape_cast %218 : vector<1x8x96xf32> to vector<8x96xf32>
    %220 = vector.extract_strided_slice %219 {offsets = [0, 0], sizes = [1, 96], strides = [1, 1]} : vector<8x96xf32> to vector<1x96xf32>
    %221 = vector.extract_strided_slice %219 {offsets = [1, 0], sizes = [1, 32], strides = [1, 1]} : vector<8x96xf32> to vector<1x32xf32>
    %222 = vector.extract_strided_slice %219 {offsets = [2, 0], sizes = [1, 32], strides = [1, 1]} : vector<8x96xf32> to vector<1x32xf32>
    %223 = vector.extract_strided_slice %219 {offsets = [3, 0], sizes = [1, 32], strides = [1, 1]} : vector<8x96xf32> to vector<1x32xf32>
    %224 = vector.extract_strided_slice %219 {offsets = [4, 0], sizes = [1, 64], strides = [1, 1]} : vector<8x96xf32> to vector<1x64xf32>
    %225 = vector.extract_strided_slice %219 {offsets = [5, 0], sizes = [1, 32], strides = [1, 1]} : vector<8x96xf32> to vector<1x32xf32>
    %226 = vector.extract_strided_slice %219 {offsets = [6, 0], sizes = [1, 32], strides = [1, 1]} : vector<8x96xf32> to vector<1x32xf32>
    %227 = vector.extract_strided_slice %219 {offsets = [7, 0], sizes = [1, 32], strides = [1, 1]} : vector<8x96xf32> to vector<1x32xf32>
    %c1_66 = arith.constant 1 : index
    %c0_67 = arith.constant 0 : index
    %c0_68 = arith.constant 0 : index
    %228 = vector.load %arg5[%c1_66, %c0_67, %c0_68] : memref<2x32x96xf32, #tpu.memory_space<vmem>>, vector<1x32x96xf32>
    %229 = vector.shape_cast %228 : vector<1x32x96xf32> to vector<32x96xf32>
    %cst_69 = arith.constant dense<0.000000e+00> : vector<16x96xf32>
    %230 = tpu.matmul %217, %229, %cst_69 {dimension_numbers = #tpu.dot_dimension_numbers<[1], [0], [0], [1], [0, 0, 1, 1], [], []>} : vector<16x32xf32>, vector<32x96xf32>, vector<16x96xf32> -> vector<16x96xf32>
    %231 = vector.broadcast %220 : vector<1x96xf32> to vector<16x96xf32>
    %232 = arith.addf %230, %231 : vector<16x96xf32>
    %233 = vector.extract_strided_slice %232 {offsets = [0, 0], sizes = [16, 8], strides = [1, 1]} : vector<16x96xf32> to vector<16x8xf32>
    %234 = vector.extract_strided_slice %232 {offsets = [0, 8], sizes = [16, 8], strides = [1, 1]} : vector<16x96xf32> to vector<16x8xf32>
    %235 = vector.extract_strided_slice %232 {offsets = [0, 16], sizes = [16, 8], strides = [1, 1]} : vector<16x96xf32> to vector<16x8xf32>
    %236 = vector.extract_strided_slice %232 {offsets = [0, 24], sizes = [16, 8], strides = [1, 1]} : vector<16x96xf32> to vector<16x8xf32>
    %237 = vector.shape_cast %233 : vector<16x8xf32> to vector<1x16x8xf32>
    %238 = vector.shape_cast %234 : vector<16x8xf32> to vector<1x16x8xf32>
    %239 = vector.shape_cast %235 : vector<16x8xf32> to vector<1x16x8xf32>
    %240 = vector.shape_cast %236 : vector<16x8xf32> to vector<1x16x8xf32>
    %241 = tpu.concatenate %237, %238, %239, %240 in 0 : vector<1x16x8xf32>, vector<1x16x8xf32>, vector<1x16x8xf32>, vector<1x16x8xf32> -> vector<4x16x8xf32>
    %242 = vector.shape_cast %241 : vector<4x16x8xf32> to vector<8x8x8xf32>
    %243 = vector.extract_strided_slice %232 {offsets = [0, 32], sizes = [16, 8], strides = [1, 1]} : vector<16x96xf32> to vector<16x8xf32>
    %244 = vector.extract_strided_slice %232 {offsets = [0, 40], sizes = [16, 8], strides = [1, 1]} : vector<16x96xf32> to vector<16x8xf32>
    %245 = vector.extract_strided_slice %232 {offsets = [0, 48], sizes = [16, 8], strides = [1, 1]} : vector<16x96xf32> to vector<16x8xf32>
    %246 = vector.extract_strided_slice %232 {offsets = [0, 56], sizes = [16, 8], strides = [1, 1]} : vector<16x96xf32> to vector<16x8xf32>
    %247 = vector.shape_cast %243 : vector<16x8xf32> to vector<1x16x8xf32>
    %248 = vector.shape_cast %244 : vector<16x8xf32> to vector<1x16x8xf32>
    %249 = vector.shape_cast %245 : vector<16x8xf32> to vector<1x16x8xf32>
    %250 = vector.shape_cast %246 : vector<16x8xf32> to vector<1x16x8xf32>
    %251 = tpu.concatenate %247, %248, %249, %250 in 0 : vector<1x16x8xf32>, vector<1x16x8xf32>, vector<1x16x8xf32>, vector<1x16x8xf32> -> vector<4x16x8xf32>
    %252 = vector.shape_cast %251 : vector<4x16x8xf32> to vector<8x8x8xf32>
    %253 = vector.extract_strided_slice %232 {offsets = [0, 64], sizes = [16, 8], strides = [1, 1]} : vector<16x96xf32> to vector<16x8xf32>
    %254 = vector.extract_strided_slice %232 {offsets = [0, 72], sizes = [16, 8], strides = [1, 1]} : vector<16x96xf32> to vector<16x8xf32>
    %255 = vector.extract_strided_slice %232 {offsets = [0, 80], sizes = [16, 8], strides = [1, 1]} : vector<16x96xf32> to vector<16x8xf32>
    %256 = vector.extract_strided_slice %232 {offsets = [0, 88], sizes = [16, 8], strides = [1, 1]} : vector<16x96xf32> to vector<16x8xf32>
    %257 = vector.shape_cast %253 : vector<16x8xf32> to vector<1x16x8xf32>
    %258 = vector.shape_cast %254 : vector<16x8xf32> to vector<1x16x8xf32>
    %259 = vector.shape_cast %255 : vector<16x8xf32> to vector<1x16x8xf32>
    %260 = vector.shape_cast %256 : vector<16x8xf32> to vector<1x16x8xf32>
    %261 = tpu.concatenate %257, %258, %259, %260 in 0 : vector<1x16x8xf32>, vector<1x16x8xf32>, vector<1x16x8xf32>, vector<1x16x8xf32> -> vector<4x16x8xf32>
    %262 = vector.shape_cast %261 : vector<4x16x8xf32> to vector<8x8x8xf32>
    "tpu.trace_start"() <{level = 10 : i32, message = "bqd,bkd->bqk"}> : () -> ()
    %cst_70 = arith.constant dense<0.000000e+00> : vector<8x8x8xf32>
    %263 = tpu.matmul %242, %252, %cst_70 {dimension_numbers = #tpu.dot_dimension_numbers<[2], [2], [1], [1], [0, 0, 0, 1, 1, 1], [0], [0]>} : vector<8x8x8xf32>, vector<8x8x8xf32>, vector<8x8x8xf32> -> vector<8x8x8xf32>
    "tpu.trace_stop"() : () -> ()
    %264 = arith.addf %263, %87 : vector<8x8x8xf32>
    %265 = math.exp %264 : vector<8x8x8xf32>
    %cst_71 = arith.constant dense<0.000000e+00> : vector<8x8xf32>
    %266 = vector.multi_reduction <add>, %265, %cst_71 [2] : vector<8x8x8xf32> to vector<8x8xf32>
    %267 = vector.shape_cast %266 : vector<8x8xf32> to vector<8x8x1xf32>
    %268 = tpu.reciprocal %267 {approx = true} : vector<8x8x1xf32> -> vector<8x8x1xf32>
    %269 = vector.broadcast %268 : vector<8x8x1xf32> to vector<8x8x8xf32>
    %270 = arith.mulf %265, %269 : vector<8x8x8xf32>
    "tpu.trace_start"() <{level = 10 : i32, message = "bqk,bkd->bqd"}> : () -> ()
    %cst_72 = arith.constant dense<0.000000e+00> : vector<8x8x8xf32>
    %271 = tpu.matmul %270, %262, %cst_72 {dimension_numbers = #tpu.dot_dimension_numbers<[2], [1], [1], [2], [0, 0, 0, 1, 1, 2], [0], [0]>} : vector<8x8x8xf32>, vector<8x8x8xf32>, vector<8x8x8xf32> -> vector<8x8x8xf32>
    "tpu.trace_stop"() : () -> ()
    %272 = vector.shape_cast %271 : vector<8x8x8xf32> to vector<4x16x8xf32>
    %c1_73 = arith.constant 1 : index
    %c0_74 = arith.constant 0 : index
    %c0_75 = arith.constant 0 : index
    %c0_76 = arith.constant 0 : index
    %273 = vector.load %arg6[%c1_73, %c0_74, %c0_75, %c0_76] : memref<2x4x8x32xf32, #tpu.memory_space<vmem>>, vector<1x4x8x32xf32>
    %274 = vector.shape_cast %273 : vector<1x4x8x32xf32> to vector<4x8x32xf32>
    "tpu.trace_start"() <{level = 10 : i32, message = "htd,hdo->hto"}> : () -> ()
    %cst_77 = arith.constant dense<0.000000e+00> : vector<4x16x32xf32>
    %275 = tpu.matmul %272, %274, %cst_77 {dimension_numbers = #tpu.dot_dimension_numbers<[2], [1], [1], [2], [0, 0, 0, 1, 1, 2], [0], [0]>} : vector<4x16x8xf32>, vector<4x8x32xf32>, vector<4x16x32xf32> -> vector<4x16x32xf32>
    "tpu.trace_stop"() : () -> ()
    %cst_78 = arith.constant dense<0.000000e+00> : vector<16x32xf32>
    %276 = vector.multi_reduction <add>, %275, %cst_78 [0] : vector<4x16x32xf32> to vector<16x32xf32>
    %277 = vector.broadcast %221 : vector<1x32xf32> to vector<16x32xf32>
    %278 = arith.addf %276, %277 : vector<16x32xf32>
    %279 = arith.addf %217, %278 : vector<16x32xf32>
    %cst_79 = arith.constant dense<0.000000e+00> : vector<16xf32>
    %280 = vector.multi_reduction <add>, %279, %cst_79 [1] : vector<16x32xf32> to vector<16xf32>
    %281 = vector.shape_cast %280 : vector<16xf32> to vector<16x1xf32>
    %cst_80 = arith.constant 3.200000e+01 : f32
    %282 = vector.broadcast %cst_80 : f32 to vector<16x1xf32>
    %283 = arith.divf %281, %282 : vector<16x1xf32>
    %284 = vector.broadcast %283 : vector<16x1xf32> to vector<16x32xf32>
    %285 = arith.subf %279, %284 : vector<16x32xf32>
    %286 = arith.mulf %285, %285 : vector<16x32xf32>
    %cst_81 = arith.constant dense<0.000000e+00> : vector<16xf32>
    %287 = vector.multi_reduction <add>, %286, %cst_81 [1] : vector<16x32xf32> to vector<16xf32>
    %288 = vector.shape_cast %287 : vector<16xf32> to vector<16x1xf32>
    %cst_82 = arith.constant 3.200000e+01 : f32
    %289 = vector.broadcast %cst_82 : f32 to vector<16x1xf32>
    %290 = arith.divf %288, %289 : vector<16x1xf32>
    %291 = vector.broadcast %283 : vector<16x1xf32> to vector<16x32xf32>
    %292 = arith.subf %279, %291 : vector<16x32xf32>
    %cst_83 = arith.constant 9.99999974E-6 : f32
    %293 = vector.broadcast %cst_83 : f32 to vector<16x1xf32>
    %294 = arith.addf %290, %293 : vector<16x1xf32>
    %295 = math.rsqrt %294 : vector<16x1xf32>
    %296 = vector.broadcast %295 : vector<16x1xf32> to vector<16x32xf32>
    %297 = arith.mulf %292, %296 : vector<16x32xf32>
    %298 = vector.broadcast %222 : vector<1x32xf32> to vector<16x32xf32>
    %299 = arith.mulf %297, %298 : vector<16x32xf32>
    %300 = vector.broadcast %223 : vector<1x32xf32> to vector<16x32xf32>
    %301 = arith.addf %299, %300 : vector<16x32xf32>
    %c1_84 = arith.constant 1 : index
    %c0_85 = arith.constant 0 : index
    %c0_86 = arith.constant 0 : index
    %302 = vector.load %arg7[%c1_84, %c0_85, %c0_86] : memref<2x32x64xf32, #tpu.memory_space<vmem>>, vector<1x32x64xf32>
    %303 = vector.shape_cast %302 : vector<1x32x64xf32> to vector<32x64xf32>
    %cst_87 = arith.constant dense<0.000000e+00> : vector<16x64xf32>
    %304 = tpu.matmul %301, %303, %cst_87 {dimension_numbers = #tpu.dot_dimension_numbers<[1], [0], [0], [1], [0, 0, 1, 1], [], []>} : vector<16x32xf32>, vector<32x64xf32>, vector<16x64xf32> -> vector<16x64xf32>
    %305 = vector.broadcast %224 : vector<1x64xf32> to vector<16x64xf32>
    %306 = arith.addf %304, %305 : vector<16x64xf32>
    %cst_88 = arith.constant 5.000000e-01 : f32
    %307 = vector.broadcast %cst_88 : f32 to vector<16x64xf32>
    %308 = arith.mulf %307, %306 : vector<16x64xf32>
    %cst_89 = arith.constant 4.471500e-02 : f32
    %309 = vector.broadcast %cst_89 : f32 to vector<16x64xf32>
    %310 = arith.mulf %309, %306 : vector<16x64xf32>
    %311 = arith.mulf %310, %306 : vector<16x64xf32>
    %312 = arith.mulf %311, %306 : vector<16x64xf32>
    %313 = arith.addf %306, %312 : vector<16x64xf32>
    %cst_90 = arith.constant 0.797884583 : f32
    %314 = vector.broadcast %cst_90 : f32 to vector<16x64xf32>
    %315 = arith.mulf %314, %313 : vector<16x64xf32>
    %316 = math.tanh %315 : vector<16x64xf32>
    %cst_91 = arith.constant 1.000000e+00 : f32
    %317 = vector.broadcast %cst_91 : f32 to vector<16x64xf32>
    %318 = arith.addf %317, %316 : vector<16x64xf32>
    %319 = arith.mulf %308, %318 : vector<16x64xf32>
    %c1_92 = arith.constant 1 : index
    %c0_93 = arith.constant 0 : index
    %c0_94 = arith.constant 0 : index
    %320 = vector.load %arg8[%c1_92, %c0_93, %c0_94] : memref<2x64x32xf32, #tpu.memory_space<vmem>>, vector<1x64x32xf32>
    %321 = vector.shape_cast %320 : vector<1x64x32xf32> to vector<64x32xf32>
    %cst_95 = arith.constant dense<0.000000e+00> : vector<16x32xf32>
    %322 = tpu.matmul %319, %321, %cst_95 {dimension_numbers = #tpu.dot_dimension_numbers<[1], [0], [0], [1], [0, 0, 1, 1], [], []>} : vector<16x64xf32>, vector<64x32xf32>, vector<16x32xf32> -> vector<16x32xf32>
    %323 = vector.broadcast %225 : vector<1x32xf32> to vector<16x32xf32>
    %324 = arith.addf %322, %323 : vector<16x32xf32>
    %325 = arith.addf %301, %324 : vector<16x32xf32>
    %cst_96 = arith.constant dense<0.000000e+00> : vector<16xf32>
    %326 = vector.multi_reduction <add>, %325, %cst_96 [1] : vector<16x32xf32> to vector<16xf32>
    %327 = vector.shape_cast %326 : vector<16xf32> to vector<16x1xf32>
    %cst_97 = arith.constant 3.200000e+01 : f32
    %328 = vector.broadcast %cst_97 : f32 to vector<16x1xf32>
    %329 = arith.divf %327, %328 : vector<16x1xf32>
    %330 = vector.broadcast %329 : vector<16x1xf32> to vector<16x32xf32>
    %331 = arith.subf %325, %330 : vector<16x32xf32>
    %332 = arith.mulf %331, %331 : vector<16x32xf32>
    %cst_98 = arith.constant dense<0.000000e+00> : vector<16xf32>
    %333 = vector.multi_reduction <add>, %332, %cst_98 [1] : vector<16x32xf32> to vector<16xf32>
    %334 = vector.shape_cast %333 : vector<16xf32> to vector<16x1xf32>
    %cst_99 = arith.constant 3.200000e+01 : f32
    %335 = vector.broadcast %cst_99 : f32 to vector<16x1xf32>
    %336 = arith.divf %334, %335 : vector<16x1xf32>
    %337 = vector.broadcast %329 : vector<16x1xf32> to vector<16x32xf32>
    %338 = arith.subf %325, %337 : vector<16x32xf32>
    %cst_100 = arith.constant 9.99999974E-6 : f32
    %339 = vector.broadcast %cst_100 : f32 to vector<16x1xf32>
    %340 = arith.addf %336, %339 : vector<16x1xf32>
    %341 = math.rsqrt %340 : vector<16x1xf32>
    %342 = vector.broadcast %341 : vector<16x1xf32> to vector<16x32xf32>
    %343 = arith.mulf %338, %342 : vector<16x32xf32>
    %344 = vector.broadcast %226 : vector<1x32xf32> to vector<16x32xf32>
    %345 = arith.mulf %343, %344 : vector<16x32xf32>
    %346 = vector.broadcast %227 : vector<1x32xf32> to vector<16x32xf32>
    %347 = arith.addf %345, %346 : vector<16x32xf32>
    %c0_101 = arith.constant 0 : index
    %c0_102 = arith.constant 0 : index
    %348 = vector.load %arg11[%c0_101, %c0_102] : memref<16x32xf32, #tpu.memory_space<vmem>>, vector<16x32xf32>
    tpu.vector_store %arg11[%c0_101, %c0_102], %347 {strides = array<i32>} : memref<16x32xf32, #tpu.memory_space<vmem>>, vector<16x32xf32>,
    %349 = vector.shape_cast %347 : vector<16x32xf32> to vector<2x8x32xf32>
    %350 = vector.extract_strided_slice %349 {offsets = [0, 0, 0], sizes = [2, 1, 32], strides = [1, 1, 1]} : vector<2x8x32xf32> to vector<2x1x32xf32>
    %351 = vector.shape_cast %350 : vector<2x1x32xf32> to vector<2x32xf32>
    %c0_103 = arith.constant 0 : index
    %c0_104 = arith.constant 0 : index
    %352 = vector.load %arg10[%c0_103, %c0_104] : memref<32x32xf32, #tpu.memory_space<vmem>>, vector<32x32xf32>
    %cst_105 = arith.constant dense<0.000000e+00> : vector<2x32xf32>
    %353 = tpu.matmul %351, %352, %cst_105 {dimension_numbers = #tpu.dot_dimension_numbers<[1], [0], [0], [1], [0, 0, 1, 1], [], []>} : vector<2x32xf32>, vector<32x32xf32>, vector<2x32xf32> -> vector<2x32xf32>
    %c2 = arith.constant 2 : index
    %c0_106 = arith.constant 0 : index
    %354 = vector.load %arg4[%c2, %c0_106] : memref<3x32xf32, #tpu.memory_space<vmem>>, vector<1x32xf32>
    %355 = vector.broadcast %354 : vector<1x32xf32> to vector<2x32xf32>
    %356 = arith.addf %353, %355 : vector<2x32xf32>
    %357 = math.tanh %356 : vector<2x32xf32>
    %c0_107 = arith.constant 0 : index
    %c0_108 = arith.constant 0 : index
    %358 = vector.load %arg12[%c0_107, %c0_108] : memref<2x32xf32, #tpu.memory_space<vmem>>, vector<2x32xf32>
    tpu.vector_store %arg12[%c0_107, %c0_108], %357 {strides = array<i32>} : memref<2x32xf32, #tpu.memory_space<vmem>>, vector<2x32xf32>,
    return
  }
}

</mosaic_0001>

<llo_original>
// kernel: roberta_forward.1
$region0: #{roberta_forward.1}
  #allocation0 [shape = 'u32[]', space=smem, size = 0x4, offset = 0x4, fixed_abs, tag = 'smem constant byte address 0x4 - core index']
  #allocation1 [shape = 'u32[144,128]{1,0:T(1,128)}', space=vmem, size = 0x12000, scoped, tag = 'internal scratch']
  %s0 = inlined_call_operand.vmem [shape: s32[2,8], index: 0, kind: input, shape index: {}]
  %s1 = inlined_call_operand.vmem [shape: f32[2,8], index: 1, kind: input, shape index: {}]
  %s2 = inlined_call_operand.vmem [shape: f32[64,32], index: 2, kind: input, shape index: {}]
  %s3 = inlined_call_operand.vmem [shape: f32[64,32], index: 3, kind: input, shape index: {}]
  %s4 = inlined_call_operand.vmem [shape: f32[3,32], index: 4, kind: input, shape index: {}]
  %s5 = inlined_call_operand.vmem [shape: f32[2,32,96], index: 5, kind: input, shape index: {}]
  %s6 = inlined_call_operand.vmem [shape: f32[2,4,8,32], index: 6, kind: input, shape index: {}]
  %s7 = inlined_call_operand.vmem [shape: f32[2,32,64], index: 7, kind: input, shape index: {}]
  %s8 = inlined_call_operand.vmem [shape: f32[2,64,32], index: 8, kind: input, shape index: {}]
  %s9 = inlined_call_operand.vmem [shape: f32[2,8,96], index: 9, kind: input, shape index: {}]
  %s10 = inlined_call_operand.vmem [shape: f32[32,32], index: 10, kind: input, shape index: {}]
  %s11 = inlined_call_operand.hbm [shape: f32[16,32], index: 11, kind: output, shape index: {0}]
  %s12 = inlined_call_operand.hbm [shape: f32[2,32], index: 12, kind: output, shape index: {1}]
  %13 = xla_tuple %s11, %s12
  %s14 = sld [smem:[#allocation0]]
  $region62: #{roberta_forward.1} parent=0
    _
  %s16 = ssub.s32 1, %s14
  %s17 = scalar_select 0, %s16, %s14
  $region1: #{roberta_forward.1} parent=0
    #allocation2 [shape = 'u8[8192]{0}', space=vmem, size = 0x2000, scoped, tag = 'output window, operand 0, single buffered']
    #allocation3 [shape = 's32[1]{0}', space=sflag, size = 0x4, scoped, tag = 'scoped memory for roberta_forward.1']
    #allocation4 [shape = 'u8[1024]{0}', space=vmem, size = 0x400, scoped, tag = 'output window, operand 1, single buffered']
    #allocation5 [shape = 's32[1]{0}', space=sflag, size = 0x4, scoped, tag = 'scoped memory for roberta_forward.1']
    %18 = vsyncpa [#allocation3], 0
    %19 = vsyncpa [#allocation5], 0
    // Predicated region
    $region2: #{roberta_forward.1} parent=1 // pred_check
      _
    $region3: #{roberta_forward.1} parent=1 // pred_check_branch
      %21 = sbr.rel (0) target = $region5
    $region4: #{roberta_forward.1} parent=1 // pred_region
      _
    $region5: #{roberta_forward.1} parent=1 // pred_fallthru
      _
    // Predicated region
    $region6: #{roberta_forward.1} parent=1 // pred_check
      _
    $region7: #{roberta_forward.1} parent=1 // pred_check_branch
      %23 = sbr.rel (0) target = $region9
    $region8: #{roberta_forward.1} parent=1 // pred_region
      _
    $region9: #{roberta_forward.1} parent=1 // pred_fallthru
      _
    // Predicated region
    $region10: #{roberta_forward.1} parent=1 // pred_check
      _
    $region11: #{roberta_forward.1} parent=1 // pred_check_branch
      %25 = sbr.rel (0) target = $region13
    $region12: #{roberta_forward.1} parent=1 // pred_region
      _
    $region13: #{roberta_forward.1} parent=1 // pred_fallthru
      _
    // Predicated region
    $region14: #{roberta_forward.1} parent=1 // pred_check
      _
    $region15: #{roberta_forward.1} parent=1 // pred_check_branch
      %27 = sbr.rel (0) target = $region17
    $region16: #{roberta_forward.1} parent=1 // pred_region
      _
    $region17: #{roberta_forward.1} parent=1 // pred_fallthru
      _
    // Predicated region
    $region18: #{roberta_forward.1} parent=1 // pred_check
      _
    $region19: #{roberta_forward.1} parent=1 // pred_check_branch
      %29 = sbr.rel (0) target = $region21
    $region20: #{roberta_forward.1} parent=1 // pred_region
      _
    $region21: #{roberta_forward.1} parent=1 // pred_fallthru
      _
    // Predicated region
    $region22: #{roberta_forward.1} parent=1 // pred_check
      _
    $region23: #{roberta_forward.1} parent=1 // pred_check_branch
      %31 = sbr.rel (0) target = $region25
    $region24: #{roberta_forward.1} parent=1 // pred_region
      _
    $region25: #{roberta_forward.1} parent=1 // pred_fallthru
      _
    // Predicated region
    $region26: #{roberta_forward.1} parent=1 // pred_check
      _
    $region27: #{roberta_forward.1} parent=1 // pred_check_branch
      %33 = sbr.rel (0) target = $region29
    $region28: #{roberta_forward.1} parent=1 // pred_region
      _
    $region29: #{roberta_forward.1} parent=1 // pred_fallthru
      _
    // Predicated region
    $region30: #{roberta_forward.1} parent=1 // pred_check
      _
    $region31: #{roberta_forward.1} parent=1 // pred_check_branch
      %35 = sbr.rel (0) target = $region33
    $region32: #{roberta_forward.1} parent=1 // pred_region
      _
    $region33: #{roberta_forward.1} parent=1 // pred_fallthru
      _
    // Predicated region
    $region34: #{roberta_forward.1} parent=1 // pred_check
      _
    $region35: #{roberta_forward.1} parent=1 // pred_check_branch
      %37 = sbr.rel (0) target = $region37
    $region36: #{roberta_forward.1} parent=1 // pred_region
      _
    $region37: #{roberta_forward.1} parent=1 // pred_fallthru
      _
    // Predicated region
    $region38: #{roberta_forward.1} parent=1 // pred_check
      _
    $region39: #{roberta_forward.1} parent=1 // pred_check_branch
      %39 = sbr.rel (0) target = $region41
    $region40: #{roberta_forward.1} parent=1 // pred_region
      _
    $region41: #{roberta_forward.1} parent=1 // pred_fallthru
      _
    // Predicated region
    $region42: #{roberta_forward.1} parent=1 // pred_check
      _
    $region43: #{roberta_forward.1} parent=1 // pred_check_branch
      %41 = sbr.rel (0) target = $region45
    $region44: #{roberta_forward.1} parent=1 // pred_region
      _
    $region45: #{roberta_forward.1} parent=1 // pred_fallthru
      _
    %v42 = vld [vmem:[%s0] sm:$0x3]
    %v43 = vld [vmem:[%s1] sm:$0x3]
    %v44 = vlaneseq
    %v45 = vshrl.u32 %v44, 7
    %v46 = vsub.s32 0, %v45
    %v47 = vrot.slane %v42, %v46
    %49 = vbcast.lane.b32.xlu0 %v47, 256
    %v50 = vpop.permute.xlu0 %49
    %v51 = vlaneseq
    %v52 = vshrl.u32 %v51, 7
    %v53 = vsub.s32 1, %v52
    %v54 = vrot.slane %v42, %v53
    %56 = vbcast.lane.b32.xlu0 %v54, 256
    %v57 = vpop.permute.xlu0 %56
    %v58 = vlaneseq
    %v59 = vand.u32 %v58, 127
    %vm60 = vcmp.eq.s32.totalorder %v50, %v59
    %vm61 = vcmp.eq.s32.totalorder %v57, %v59
    %v62 = vsel %vm60, 1, 0
    %v63 = vsel %vm61, 1, 0
    %v64 = vcvt.s32.f32 %v62
    %v65 = vcvt.s32.f32 %v63
    %v66 = vld [vmem:[%s2] sm:$0xff]
    %v67 = vld [vmem:[%s2 + $0x8] sm:$0xff]
    %v68 = vld [vmem:[%s2 + $0x10] sm:$0xff]
    %v69 = vld [vmem:[%s2 + $0x18] sm:$0xff]
    %v70 = vld [vmem:[%s2 + $0x20] sm:$0xff]
    %v71 = vld [vmem:[%s2 + $0x28] sm:$0xff]
    %v72 = vld [vmem:[%s2 + $0x30] sm:$0xff]
    %v73 = vld [vmem:[%s2 + $0x38] sm:$0xff]
    %vm74 = vcmp.ne.s32.totalorder %v42, 1
    %v75 = vsel %vm74, 1, 0
    %v76 = vcvt.s32.f32 %v75
    %v77 = vlaneseq
    %v78 = vshrl.u32 %v77, 7
    %vm79 = vcmp.le.s32.totalorder %v78, %v59
    %v80 = vsel %vm79, 1, 0
    %v81 = vcvt.s32.f32 %v80
    %vm82 = vcmask 64512
    %v84 = vsel %vm82, %v76, 0
    %86 = vmatprep.subr.mxu0 0.0
    %87 = vmatpush1.msra.mxu0 %v81
    %88 = vmatprep.subr.mxu0 0.0
    %89 = vmatpush1.msra.mxu0 0.0
    %90 = vmatprep.subr.mxu0 0.0
    %91 = vmatpush1.msra.mxu0 0.0
    %92 = vmatprep.subr.mxu0 0.0
    %93 = vmatpush1.msra.mxu0 0.0
    %94 = vmatprep.subr.mxu0 0.0
    %95 = vmatpush1.msra.mxu0 0.0
    %96 = vmatprep.subr.mxu0 0.0
    %97 = vmatpush1.msra.mxu0 0.0
    %98 = vmatprep.subr.mxu0 0.0
    %99 = vmatpush1.msra.mxu0 0.0
    %100 = vmatprep.subr.mxu0 0.0
    %101 = vmatpush1.msra.mxu0 0.0
    %102 = vmatprep.subr.mxu0 0.0
    %103 = vmatpush1.msra.mxu0 0.0
    %104 = vmatprep.subr.mxu0 0.0
    %105 = vmatpush1.msra.mxu0 0.0
    %106 = vmatprep.subr.mxu0 0.0
    %107 = vmatpush1.msra.mxu0 0.0
    %108 = vmatprep.subr.mxu0 0.0
    %109 = vmatpush1.msra.mxu0 0.0
    %110 = vmatprep.subr.mxu0 0.0
    %111 = vmatpush1.msra.mxu0 0.0
    %112 = vmatprep.subr.mxu0 0.0
    %113 = vmatpush1.msra.mxu0 0.0
    %114 = vmatprep.subr.mxu0 0.0
    %115 = vmatpush1.msra.mxu0 0.0
    %116 = vmatprep.subr.mxu0 0.0
    %117 = vmatpush1.msra.mxu0 0.0
    %118 = vmatprep.subr.mxu0 0.0
    %119 = vmatpush1.msra.mxu0 0.0
    %120 = vmatprep.subr.mxu0 0.0
    %121 = vmatpush1.msra.mxu0 0.0
    %122 = vmatprep.subr.mxu0 0.0
    %123 = vmatpush1.msra.mxu0 0.0
    %124 = vmatprep.subr.mxu0 0.0
    %125 = vmatpush1.msra.mxu0 0.0
    %126 = vmatprep.subr.mxu0 0.0
    %127 = vmatpush1.msra.mxu0 0.0
    %128 = vmatprep.subr.mxu0 0.0
    %129 = vmatpush1.msra.mxu0 0.0
    %130 = vmatprep.subr.mxu0 0.0
    %131 = vmatpush1.msra.mxu0 0.0
    %132 = vmatprep.subr.mxu0 0.0
    %133 = vmatpush1.msra.mxu0 0.0
    %134 = vmatprep.subr.mxu0 0.0
    %135 = vmatpush1.msra.mxu0 0.0
    %136 = vmatprep.subr.mxu0 0.0
    %137 = vmatpush1.msra.mxu0 0.0
    %138 = vmatprep.subr.mxu0 0.0
    %139 = vmatpush1.msra.mxu0 0.0
    %140 = vmatprep.subr.mxu0 0.0
    %141 = vmatpush1.msra.mxu0 0.0
    %142 = vmatprep.subr.mxu0 0.0
    %143 = vmatpush1.msra.mxu0 0.0
    %144 = vmatprep.subr.mxu0 0.0
    %145 = vmatpush1.msra.mxu0 0.0
    %146 = vmatprep.subr.mxu0 0.0
    %147 = vmatpush1.msra.mxu0 0.0
    %148 = vmatprep.subr.mxu0 0.0
    %149 = vmatpush1.msra.mxu0 0.0
    %150 = vmatprep.mubr.f32.mxu0 0.0
    %151 = vmatmul.mubr.f32.gmra.mrb[0].mxu0 %v84
    %v152 = vpop.f32.mrb[0].mxu0
    %v153 = vadd.f32 0.0, %v152
    %v154 = vpop.f32.mrb[0].mxu0
    %155 = vdwg.mxu0
    %v156 = vmul.f32 %v153, %v76
    %v157 = vadd.f32 %v156, 1.0
    %v158 = vcvt.f32.s32.to.zero.pseudo %v157
    %v159 = vlaneseq
    %v160 = vshrl.u32 %v159, 7
    %v161 = vsub.s32 0, %v160
    %v162 = vrot.slane %v158, %v161
    %164 = vbcast.lane.b32.xlu0 %v162, 256
    %v165 = vpop.permute.xlu0 %164
    %v166 = vlaneseq
    %v167 = vshrl.u32 %v166, 7
    %v168 = vsub.s32 1, %v167
    %v169 = vrot.slane %v158, %v168
    %171 = vbcast.lane.b32.xlu0 %v169, 256
    %v172 = vpop.permute.xlu0 %171
    %vm173 = vcmp.eq.s32.totalorder %v165, %v59
    %vm174 = vcmp.eq.s32.totalorder %v172, %v59
    %v175 = vsel %vm173, 1, 0
    %v176 = vsel %vm174, 1, 0
    %v177 = vcvt.s32.f32 %v175
    %v178 = vcvt.s32.f32 %v176
    %v179 = vld [vmem:[%s3] sm:$0xff]
    %v180 = vld [vmem:[%s3 + $0x8] sm:$0xff]
    %v181 = vld [vmem:[%s3 + $0x10] sm:$0xff]
    %v182 = vld [vmem:[%s3 + $0x18] sm:$0xff]
    %v183 = vld [vmem:[%s3 + $0x20] sm:$0xff]
    %v184 = vld [vmem:[%s3 + $0x28] sm:$0xff]
    %v185 = vld [vmem:[%s3 + $0x30] sm:$0xff]
    %v186 = vld [vmem:[%s3 + $0x38] sm:$0xff]
    %vm187 = vcmask 523264
    %v189 = vsel %vm187, %v177, 0
    %v192 = vsel %vm187, %v178, 0
    %194 = vmatprep.subr.mxu0 0.0
    %195 = vmatpush1.msra.mxu0 %v179
    %196 = vmatprep.subr.mxu0 0.0
    %197 = vmatpush1.msra.mxu0 %v180
    %198 = vmatprep.subr.mxu0 0.0
    %199 = vmatpush1.msra.mxu0 %v181
    %200 = vmatprep.subr.mxu0 0.0
    %201 = vmatpush1.msra.mxu0 %v182
    %202 = vmatprep.subr.mxu0 0.0
    %203 = vmatpush1.msra.mxu0 %v183
    %204 = vmatprep.subr.mxu0 0.0
    %205 = vmatpush1.msra.mxu0 %v184
    %206 = vmatprep.subr.mxu0 0.0
    %207 = vmatpush1.msra.mxu0 %v185
    %208 = vmatprep.subr.mxu0 0.0
    %209 = vmatpush1.msra.mxu0 %v186
    %210 = vmatprep.subr.mxu0 0.0
    %211 = vmatpush1.msra.mxu0 0.0
    %212 = vmatprep.subr.mxu0 0.0
    %213 = vmatpush1.msra.mxu0 0.0
    %214 = vmatprep.subr.mxu0 0.0
    %215 = vmatpush1.msra.mxu0 0.0
    %216 = vmatprep.subr.mxu0 0.0
    %217 = vmatpush1.msra.mxu0 0.0
    %218 = vmatprep.subr.mxu0 0.0
    %219 = vmatpush1.msra.mxu0 0.0
    %220 = vmatprep.subr.mxu0 0.0
    %221 = vmatpush1.msra.mxu0 0.0
    %222 = vmatprep.subr.mxu0 0.0
    %223 = vmatpush1.msra.mxu0 0.0
    %224 = vmatprep.subr.mxu0 0.0
    %225 = vmatpush1.msra.mxu0 0.0
    %226 = vmatprep.subr.mxu0 0.0
    %227 = vmatpush1.msra.mxu0 0.0
    %228 = vmatprep.subr.mxu0 0.0
    %229 = vmatpush1.msra.mxu0 0.0
    %230 = vmatprep.subr.mxu0 0.0
    %231 = vmatpush1.msra.mxu0 0.0
    %232 = vmatprep.subr.mxu0 0.0
    %233 = vmatpush1.msra.mxu0 0.0
    %234 = vmatprep.subr.mxu0 0.0
    %235 = vmatpush1.msra.mxu0 0.0
    %236 = vmatprep.subr.mxu0 0.0
    %237 = vmatpush1.msra.mxu0 0.0
    %238 = vmatprep.subr.mxu0 0.0
    %239 = vmatpush1.msra.mxu0 0.0
    %240 = vmatprep.subr.mxu0 0.0
    %241 = vmatpush1.msra.mxu0 0.0
    %242 = vmatprep.subr.mxu0 0.0
    %243 = vmatpush1.msra.mxu0 0.0
    %244 = vmatprep.subr.mxu0 0.0
    %245 = vmatpush1.msra.mxu0 0.0
    %246 = vmatprep.subr.mxu0 0.0
    %247 = vmatpush1.msra.mxu0 0.0
    %248 = vmatprep.subr.mxu0 0.0
    %249 = vmatpush1.msra.mxu0 0.0
    %250 = vmatprep.subr.mxu0 0.0
    %251 = vmatpush1.msra.mxu0 0.0
    %252 = vmatprep.subr.mxu0 0.0
    %253 = vmatpush1.msra.mxu0 0.0
    %254 = vmatprep.subr.mxu0 0.0
    %255 = vmatpush1.msra.mxu0 0.0
    %256 = vmatprep.subr.mxu0 0.0
    %257 = vmatpush1.msra.mxu0 0.0
    %258 = vmatprep.mubr.f32.mxu0 0.0
    %259 = vmatmul.mubr.f32.gmra.mrb[0].mxu0 %v189
    %v260 = vpop.f32.mrb[0].mxu0
    %v261 = vadd.f32 0.0, %v260
    %v262 = vpop.f32.mrb[0].mxu0
    %263 = vmatprep.mubr.f32.mxu0 0.0
    %264 = vmatmul.mubr.f32.gmra.mrb[0].mxu0 %v192
    %v265 = vpop.f32.mrb[0].mxu0
    %v266 = vadd.f32 0.0, %v265
    %v267 = vpop.f32.mrb[0].mxu0
    %268 = vdwg.mxu0
    %v270 = vsel %vm187, %v64, 0
    %v273 = vsel %vm187, %v65, 0
    %275 = vmatprep.subr.mxu0 0.0
    %276 = vmatpush1.msra.mxu0 %v66
    %277 = vmatprep.subr.mxu0 0.0
    %278 = vmatpush1.msra.mxu0 %v67
    %279 = vmatprep.subr.mxu0 0.0
    %280 = vmatpush1.msra.mxu0 %v68
    %281 = vmatprep.subr.mxu0 0.0
    %282 = vmatpush1.msra.mxu0 %v69
    %283 = vmatprep.subr.mxu0 0.0
    %284 = vmatpush1.msra.mxu0 %v70
    %285 = vmatprep.subr.mxu0 0.0
    %286 = vmatpush1.msra.mxu0 %v71
    %287 = vmatprep.subr.mxu0 0.0
    %288 = vmatpush1.msra.mxu0 %v72
    %289 = vmatprep.subr.mxu0 0.0
    %290 = vmatpush1.msra.mxu0 %v73
    %291 = vmatprep.subr.mxu0 0.0
    %292 = vmatpush1.msra.mxu0 0.0
    %293 = vmatprep.subr.mxu0 0.0
    %294 = vmatpush1.msra.mxu0 0.0
    %295 = vmatprep.subr.mxu0 0.0
    %296 = vmatpush1.msra.mxu0 0.0
    %297 = vmatprep.subr.mxu0 0.0
    %298 = vmatpush1.msra.mxu0 0.0
    %299 = vmatprep.subr.mxu0 0.0
    %300 = vmatpush1.msra.mxu0 0.0
    %301 = vmatprep.subr.mxu0 0.0
    %302 = vmatpush1.msra.mxu0 0.0
    %303 = vmatprep.subr.mxu0 0.0
    %304 = vmatpush1.msra.mxu0 0.0
    %305 = vmatprep.subr.mxu0 0.0
    %306 = vmatpush1.msra.mxu0 0.0
    %307 = vmatprep.subr.mxu0 0.0
    %308 = vmatpush1.msra.mxu0 0.0
    %309 = vmatprep.subr.mxu0 0.0
    %310 = vmatpush1.msra.mxu0 0.0
    %311 = vmatprep.subr.mxu0 0.0
    %312 = vmatpush1.msra.mxu0 0.0
    %313 = vmatprep.subr.mxu0 0.0
    %314 = vmatpush1.msra.mxu0 0.0
    %315 = vmatprep.subr.mxu0 0.0
    %316 = vmatpush1.msra.mxu0 0.0
    %317 = vmatprep.subr.mxu0 0.0
    %318 = vmatpush1.msra.mxu0 0.0
    %319 = vmatprep.subr.mxu0 0.0
    %320 = vmatpush1.msra.mxu0 0.0
    %321 = vmatprep.subr.mxu0 0.0
    %322 = vmatpush1.msra.mxu0 0.0
    %323 = vmatprep.subr.mxu0 0.0
    %324 = vmatpush1.msra.mxu0 0.0
    %325 = vmatprep.subr.mxu0 0.0
    %326 = vmatpush1.msra.mxu0 0.0
    %327 = vmatprep.subr.mxu0 0.0
    %328 = vmatpush1.msra.mxu0 0.0
    %329 = vmatprep.subr.mxu0 0.0
    %330 = vmatpush1.msra.mxu0 0.0
    %331 = vmatprep.subr.mxu0 0.0
    %332 = vmatpush1.msra.mxu0 0.0
    %333 = vmatprep.subr.mxu0 0.0
    %334 = vmatpush1.msra.mxu0 0.0
    %335 = vmatprep.subr.mxu0 0.0
    %336 = vmatpush1.msra.mxu0 0.0
    %337 = vmatprep.subr.mxu0 0.0
    %338 = vmatpush1.msra.mxu0 0.0
    %339 = vmatprep.mubr.f32.mxu0 0.0
    %340 = vmatmul.mubr.f32.gmra.mrb[0].mxu0 %v270
    %v341 = vpop.f32.mrb[0].mxu0
    %v342 = vadd.f32 %v261, %v341
    %v343 = vpop.f32.mrb[0].mxu0
    %344 = vmatprep.mubr.f32.mxu0 0.0
    %345 = vmatmul.mubr.f32.gmra.mrb[0].mxu0 %v273
    %v346 = vpop.f32.mrb[0].mxu0
    %v347 = vadd.f32 %v266, %v346
    %v348 = vpop.f32.mrb[0].mxu0
    %349 = vdwg.mxu0
    %v350 = vld [vmem:[%s4] sm:$0x1]
    %v351 = vld [vmem:[%s4 + $0x1] sm:$0x1]
    %vm352 = vcmask 261120
    %v353 = vsel %vm352, %v342, 0.0
    %354 = vadd.xlane.f32.xlu0 %v353
    %v355 = vpop.xlane.xlu0 %354
    %v356 = vsel %vm352, %v347, 0.0
    %357 = vadd.xlane.f32.xlu0 %v356
    %v358 = vpop.xlane.xlu0 %357
    %v359 = vrcp.pop 32.0
    %v360 = vmul.f32 %v355, %v359
    %v361 = vmul.f32 %v358, %v359
    %v362 = vsub.f32 %v342, %v360
    %v363 = vsub.f32 %v347, %v361
    %v364 = vmul.f32 %v362, %v362
    %v365 = vmul.f32 %v363, %v363
    %v366 = vsel %vm352, %v364, 0.0
    %367 = vadd.xlane.f32.xlu0 %v366
    %v368 = vpop.xlane.xlu0 %367
    %v369 = vsel %vm352, %v365, 0.0
    %370 = vadd.xlane.f32.xlu0 %v369
    %v371 = vpop.xlane.xlu0 %370
    %v372 = vmul.f32 %v368, %v359
    %v373 = vmul.f32 %v371, %v359
    %v374 = vadd.f32 %v372, 1e-05
    %v375 = vadd.f32 %v373, 1e-05
    %v376 = vrsqrt.pop %v374
    %v377 = vrsqrt.pop %v375
    %v378 = vmul.f32 %v362, %v376
    %v379 = vmul.f32 %v363, %v377
    %v380 = vlaneseq
    %v381 = vshrl.u32 %v380, 7
    %v382 = vsub.s32 0, %v381
    %v383 = vrot.slane %v350, %v382
    %v384 = vmul.f32 %v378, %v383
    %v385 = vmul.f32 %v379, %v383
    %v386 = vlaneseq
    %v387 = vshrl.u32 %v386, 7
    %v388 = vsub.s32 0, %v387
    %v389 = vrot.slane %v351, %v388
    %v390 = vadd.f32 %v384, %v389
    %v391 = vadd.f32 %v385, %v389
    %vm392 = vcmp.lt.s32.totalorder %v78, 0
    %v393 = vsub.s32 0, %v78
    %v394 = vsel %vm392, %v393, %v78
    %v395 = vshrl.u32 %v394, 1
    %v396 = vand.u32 %v394, 1
    %v397 = vsub.s32 0, %v396
    %v398 = vsel %vm392, %v397, %v396
    %vm399 = vcmp.ne.s32.totalorder %v398, 0
    %vm400 = vcmp.lt.s32.totalorder %v398, 0
    %vm401 = vmand %vm400, %vm399
    %v402 = vadd.s32 %v398, 2
    %v403 = vsel %vm401, %v402, %v398
    %vm404 = vcmp.eq.s32.totalorder %v403, %v59
    %v405 = vsel %vm404, 1, 0
    %v406 = vcvt.s32.f32 %v405
    %v407 = vsub.f32 1.0, %v43
    %v408 = vmul.f32 %v407, -1e+09
    %vm409 = vcmask 15360
    %v411 = vsel %vm409, %v406, 0
    %vm413 = vcmask 1041408
    %v415 = vsel %vm413, %v408, 0
    %417 = vmatprep.subr.mxu0 0.0
    %418 = vmatpush1.msra.mxu0 %v415
    %419 = vmatprep.subr.mxu0 0.0
    %420 = vmatpush1.msra.mxu0 0.0
    %421 = vmatprep.subr.mxu0 0.0
    %422 = vmatpush1.msra.mxu0 0.0
    %423 = vmatprep.subr.mxu0 0.0
    %424 = vmatpush1.msra.mxu0 0.0
    %425 = vmatprep.subr.mxu0 0.0
    %426 = vmatpush1.msra.mxu0 0.0
    %427 = vmatprep.subr.mxu0 0.0
    %428 = vmatpush1.msra.mxu0 0.0
    %429 = vmatprep.subr.mxu0 0.0
    %430 = vmatpush1.msra.mxu0 0.0
    %431 = vmatprep.subr.mxu0 0.0
    %432 = vmatpush1.msra.mxu0 0.0
    %433 = vmatprep.subr.mxu0 0.0
    %434 = vmatpush1.msra.mxu0 0.0
    %435 = vmatprep.subr.mxu0 0.0
    %436 = vmatpush1.msra.mxu0 0.0
    %437 = vmatprep.subr.mxu0 0.0
    %438 = vmatpush1.msra.mxu0 0.0
    %439 = vmatprep.subr.mxu0 0.0
    %440 = vmatpush1.msra.mxu0 0.0
    %441 = vmatprep.subr.mxu0 0.0
    %442 = vmatpush1.msra.mxu0 0.0
    %443 = vmatprep.subr.mxu0 0.0
    %444 = vmatpush1.msra.mxu0 0.0
    %445 = vmatprep.subr.mxu0 0.0
    %446 = vmatpush1.msra.mxu0 0.0
    %447 = vmatprep.subr.mxu0 0.0
    %448 = vmatpush1.msra.mxu0 0.0
    %449 = vmatprep.subr.mxu0 0.0
    %450 = vmatpush1.msra.mxu0 0.0
    %451 = vmatprep.subr.mxu0 0.0
    %452 = vmatpush1.msra.mxu0 0.0
    %453 = vmatprep.subr.mxu0 0.0
    %454 = vmatpush1.msra.mxu0 0.0
    %455 = vmatprep.subr.mxu0 0.0
    %456 = vmatpush1.msra.mxu0 0.0
    %457 = vmatprep.subr.mxu0 0.0
    %458 = vmatpush1.msra.mxu0 0.0
    %459 = vmatprep.subr.mxu0 0.0
    %460 = vmatpush1.msra.mxu0 0.0
    %461 = vmatprep.subr.mxu0 0.0
    %462 = vmatpush1.msra.mxu0 0.0
    %463 = vmatprep.subr.mxu0 0.0
    %464 = vmatpush1.msra.mxu0 0.0
    %465 = vmatprep.subr.mxu0 0.0
    %466 = vmatpush1.msra.mxu0 0.0
    %467 = vmatprep.subr.mxu0 0.0
    %468 = vmatpush1.msra.mxu0 0.0
    %469 = vmatprep.subr.mxu0 0.0
    %470 = vmatpush1.msra.mxu0 0.0
    %471 = vmatprep.subr.mxu0 0.0
    %472 = vmatpush1.msra.mxu0 0.0
    %473 = vmatprep.subr.mxu0 0.0
    %474 = vmatpush1.msra.mxu0 0.0
    %475 = vmatprep.subr.mxu0 0.0
    %476 = vmatpush1.msra.mxu0 0.0
    %477 = vmatprep.subr.mxu0 0.0
    %478 = vmatpush1.msra.mxu0 0.0
    %479 = vmatprep.subr.mxu0 0.0
    %480 = vmatpush1.msra.mxu0 0.0
    %481 = vmatprep.mubr.f32.mxu0 0.0
    %482 = vmatmul.mubr.f32.gmra.mrb[0].mxu0 %v411
    %v483 = vpop.f32.mrb[0].mxu0
    %v484 = vadd.f32 0.0, %v483
    %v485 = vpop.f32.mrb[0].mxu0
    %486 = vdwg.mxu0
    %v488 = vcombine.high %v484, %v484
    %v490 = vunpack.c.l.s4 1966171168
    %v491 = vunpack.c.0.s8 %v490
    %v492 = vlaneseq
    %v493 = vshrl.u32 %v492, 7
    %v494 = vsub.s32 %v491, %v493
    %v495 = vrot.slane %v484, %v494
    %v497 = vunpack.c.l.s4 1966171168
    %v498 = vunpack.c.0.s8 %v497
    %v499 = vlaneseq
    %v500 = vshrl.u32 %v499, 7
    %v501 = vsub.s32 %v498, %v500
    %v502 = vrot.slane %v488, %v501
    %v503 = vcombine.high %v495, %v495
    %v504 = vcombine.high %v502, %v502
    %v506 = vunpack.c.l.s4 1966171168
    %v507 = vunpack.c.0.s8 %v506
    %v508 = vlaneseq
    %v509 = vshrl.u32 %v508, 7
    %v510 = vsub.s32 %v507, %v509
    %v511 = vrot.slane %v495, %v510
    %v513 = vunpack.c.l.s4 1966171168
    %v514 = vunpack.c.0.s8 %v513
    %v515 = vlaneseq
    %v516 = vshrl.u32 %v515, 7
    %v517 = vsub.s32 %v514, %v516
    %v518 = vrot.slane %v502, %v517
    %v520 = vunpack.c.l.s4 1966171168
    %v521 = vunpack.c.0.s8 %v520
    %v522 = vlaneseq
    %v523 = vshrl.u32 %v522, 7
    %v524 = vsub.s32 %v521, %v523
    %v525 = vrot.slane %v503, %v524
    %v527 = vunpack.c.l.s4 1966171168
    %v528 = vunpack.c.0.s8 %v527
    %v529 = vlaneseq
    %v530 = vshrl.u32 %v529, 7
    %v531 = vsub.s32 %v528, %v530
    %v532 = vrot.slane %v504, %v531
    %v533 = vcombine.high %v511, %v511
    %v534 = vcombine.high %v518, %v518
    %v535 = vcombine.high %v525, %v525
    %v536 = vcombine.high %v532, %v532
    %v537 = vlaneseq
    %v538 = vshrl.u32 %v537, 7
    %v539 = vsub.s32 0, %v538
    %v540 = vrot.slane %v511, %v539
    %v541 = vlaneseq
    %v542 = vshrl.u32 %v541, 7
    %v543 = vsub.s32 0, %v542
    %v544 = vrot.slane %v525, %v543
    %v545 = vlaneseq
    %v546 = vshrl.u32 %v545, 7
    %v547 = vsub.s32 0, %v546
    %v548 = vrot.slane %v533, %v547
    %v549 = vlaneseq
    %v550 = vshrl.u32 %v549, 7
    %v551 = vsub.s32 0, %v550
    %v552 = vrot.slane %v535, %v551
    %v553 = vlaneseq
    %v554 = vshrl.u32 %v553, 7
    %v555 = vsub.s32 0, %v554
    %v556 = vrot.slane %v518, %v555
    %v557 = vlaneseq
    %v558 = vshrl.u32 %v557, 7
    %v559 = vsub.s32 0, %v558
    %v560 = vrot.slane %v532, %v559
    %v561 = vlaneseq
    %v562 = vshrl.u32 %v561, 7
    %v563 = vsub.s32 0, %v562
    %v564 = vrot.slane %v534, %v563
    %v565 = vlaneseq
    %v566 = vshrl.u32 %v565, 7
    %v567 = vsub.s32 0, %v566
    %v568 = vrot.slane %v536, %v567
    %v577 = vld [vmem:[%s9] sm:$0xff]
    %v578 = vld [vmem:[%s5] sm:$0xff]
    %v579 = vld [vmem:[%s5 + $0x8] sm:$0xff]
    %v580 = vld [vmem:[%s5 + $0x10] sm:$0xff]
    %v581 = vld [vmem:[%s5 + $0x18] sm:$0xff]
    %v582 = vlaneseq
    %v583 = vshrl.u32 %v582, 7
    %v584 = vsub.s32 0, %v583
    %v585 = vrot.slane %v577, %v584
    %v587 = vsel %vm352, %v390, 0
    %v590 = vsel %vm352, %v391, 0
    %592 = vmatprep.subr.mxu0 0.0
    %593 = vmatpush1.msra.mxu0 %v578
    %594 = vmatprep.subr.mxu0 0.0
    %595 = vmatpush1.msra.mxu0 %v579
    %596 = vmatprep.subr.mxu0 0.0
    %597 = vmatpush1.msra.mxu0 %v580
    %598 = vmatprep.subr.mxu0 0.0
    %599 = vmatpush1.msra.mxu0 %v581
    %600 = vmatprep.subr.mxu0 0.0
    %601 = vmatpush1.msra.mxu0 0.0
    %602 = vmatprep.subr.mxu0 0.0
    %603 = vmatpush1.msra.mxu0 0.0
    %604 = vmatprep.subr.mxu0 0.0
    %605 = vmatpush1.msra.mxu0 0.0
    %606 = vmatprep.subr.mxu0 0.0
    %607 = vmatpush1.msra.mxu0 0.0
    %608 = vmatprep.subr.mxu0 0.0
    %609 = vmatpush1.msra.mxu0 0.0
    %610 = vmatprep.subr.mxu0 0.0
    %611 = vmatpush1.msra.mxu0 0.0
    %612 = vmatprep.subr.mxu0 0.0
    %613 = vmatpush1.msra.mxu0 0.0
    %614 = vmatprep.subr.mxu0 0.0
    %615 = vmatpush1.msra.mxu0 0.0
    %616 = vmatprep.subr.mxu0 0.0
    %617 = vmatpush1.msra.mxu0 0.0
    %618 = vmatprep.subr.mxu0 0.0
    %619 = vmatpush1.msra.mxu0 0.0
    %620 = vmatprep.subr.mxu0 0.0
    %621 = vmatpush1.msra.mxu0 0.0
    %622 = vmatprep.subr.mxu0 0.0
    %623 = vmatpush1.msra.mxu0 0.0
    %624 = vmatprep.subr.mxu0 0.0
    %625 = vmatpush1.msra.mxu0 0.0
    %626 = vmatprep.subr.mxu0 0.0
    %627 = vmatpush1.msra.mxu0 0.0
    %628 = vmatprep.subr.mxu0 0.0
    %629 = vmatpush1.msra.mxu0 0.0
    %630 = vmatprep.subr.mxu0 0.0
    %631 = vmatpush1.msra.mxu0 0.0
    %632 = vmatprep.subr.mxu0 0.0
    %633 = vmatpush1.msra.mxu0 0.0
    %634 = vmatprep.subr.mxu0 0.0
    %635 = vmatpush1.msra.mxu0 0.0
    %636 = vmatprep.subr.mxu0 0.0
    %637 = vmatpush1.msra.mxu0 0.0
    %638 = vmatprep.subr.mxu0 0.0
    %639 = vmatpush1.msra.mxu0 0.0
    %640 = vmatprep.subr.mxu0 0.0
    %641 = vmatpush1.msra.mxu0 0.0
    %642 = vmatprep.subr.mxu0 0.0
    %643 = vmatpush1.msra.mxu0 0.0
    %644 = vmatprep.subr.mxu0 0.0
    %645 = vmatpush1.msra.mxu0 0.0
    %646 = vmatprep.subr.mxu0 0.0
    %647 = vmatpush1.msra.mxu0 0.0
    %648 = vmatprep.subr.mxu0 0.0
    %649 = vmatpush1.msra.mxu0 0.0
    %650 = vmatprep.subr.mxu0 0.0
    %651 = vmatpush1.msra.mxu0 0.0
    %652 = vmatprep.subr.mxu0 0.0
    %653 = vmatpush1.msra.mxu0 0.0
    %654 = vmatprep.subr.mxu0 0.0
    %655 = vmatpush1.msra.mxu0 0.0
    %656 = vmatprep.mubr.f32.mxu0 0.0
    %657 = vmatmul.mubr.f32.gmra.mrb[0].mxu0 %v587
    %v658 = vpop.f32.mrb[0].mxu0
    %v659 = vadd.f32 %v585, %v658
    %v660 = vpop.f32.mrb[0].mxu0
    %661 = vmatprep.mubr.f32.mxu0 0.0
    %662 = vmatmul.mubr.f32.gmra.mrb[0].mxu0 %v590
    %v663 = vpop.f32.mrb[0].mxu0
    %v664 = vadd.f32 %v585, %v663
    %v665 = vpop.f32.mrb[0].mxu0
    %666 = vdwg.mxu0
    %669 = vrot.lane.b32.xlu0 %v659, 120
    %v670 = vpop.permute.xlu0 %669
    %671 = vrot.lane.b32.xlu0 %v664, 120
    %v672 = vpop.permute.xlu0 %671
    %673 = vrot.lane.b32.xlu0 %v659, 112
    %v674 = vpop.permute.xlu0 %673
    %675 = vrot.lane.b32.xlu0 %v664, 112
    %v676 = vpop.permute.xlu0 %675
    %677 = vrot.lane.b32.xlu0 %v659, 104
    %v678 = vpop.permute.xlu0 %677
    %679 = vrot.lane.b32.xlu0 %v664, 104
    %v680 = vpop.permute.xlu0 %679
    %681 = vrot.lane.b32.xlu0 %v659, 96
    %v682 = vpop.permute.xlu0 %681
    %v683 = vsel %vm82, %v659, 0
    %v685 = vsel %vm82, %v682, 0
    %687 = vmatprep.subr.mxu0 0.0
    %688 = vmatpush1.xpose.msra.mxu0 %v685
    %689 = vmatprep.subr.mxu0 0.0
    %690 = vmatpush1.xpose.msra.mxu0 0.0
    %691 = vmatprep.subr.mxu0 0.0
    %692 = vmatpush1.xpose.msra.mxu0 0.0
    %693 = vmatprep.subr.mxu0 0.0
    %694 = vmatpush1.xpose.msra.mxu0 0.0
    %695 = vmatprep.subr.mxu0 0.0
    %696 = vmatpush1.xpose.msra.mxu0 0.0
    %697 = vmatprep.subr.mxu0 0.0
    %698 = vmatpush1.xpose.msra.mxu0 0.0
    %699 = vmatprep.subr.mxu0 0.0
    %700 = vmatpush1.xpose.msra.mxu0 0.0
    %701 = vmatprep.subr.mxu0 0.0
    %702 = vmatpush1.xpose.msra.mxu0 0.0
    %703 = vmatprep.subr.mxu0 0.0
    %704 = vmatpush1.xpose.msra.mxu0 0.0
    %705 = vmatprep.subr.mxu0 0.0
    %706 = vmatpush1.xpose.msra.mxu0 0.0
    %707 = vmatprep.subr.mxu0 0.0
    %708 = vmatpush1.xpose.msra.mxu0 0.0
    %709 = vmatprep.subr.mxu0 0.0
    %710 = vmatpush1.xpose.msra.mxu0 0.0
    %711 = vmatprep.subr.mxu0 0.0
    %712 = vmatpush1.xpose.msra.mxu0 0.0
    %713 = vmatprep.subr.mxu0 0.0
    %714 = vmatpush1.xpose.msra.mxu0 0.0
    %715 = vmatprep.subr.mxu0 0.0
    %716 = vmatpush1.xpose.msra.mxu0 0.0
    %717 = vmatprep.subr.mxu0 0.0
    %718 = vmatpush1.xpose.msra.mxu0 0.0
    %719 = vmatprep.subr.mxu0 0.0
    %720 = vmatpush1.xpose.msra.mxu0 0.0
    %721 = vmatprep.subr.mxu0 0.0
    %722 = vmatpush1.xpose.msra.mxu0 0.0
    %723 = vmatprep.subr.mxu0 0.0
    %724 = vmatpush1.xpose.msra.mxu0 0.0
    %725 = vmatprep.subr.mxu0 0.0
    %726 = vmatpush1.xpose.msra.mxu0 0.0
    %727 = vmatprep.subr.mxu0 0.0
    %728 = vmatpush1.xpose.msra.mxu0 0.0
    %729 = vmatprep.subr.mxu0 0.0
    %730 = vmatpush1.xpose.msra.mxu0 0.0
    %731 = vmatprep.subr.mxu0 0.0
    %732 = vmatpush1.xpose.msra.mxu0 0.0
    %733 = vmatprep.subr.mxu0 0.0
    %734 = vmatpush1.xpose.msra.mxu0 0.0
    %735 = vmatprep.subr.mxu0 0.0
    %736 = vmatpush1.xpose.msra.mxu0 0.0
    %737 = vmatprep.subr.mxu0 0.0
    %738 = vmatpush1.xpose.msra.mxu0 0.0
    %739 = vmatprep.subr.mxu0 0.0
    %740 = vmatpush1.xpose.msra.mxu0 0.0
    %741 = vmatprep.subr.mxu0 0.0
    %742 = vmatpush1.xpose.msra.mxu0 0.0
    %743 = vmatprep.subr.mxu0 0.0
    %744 = vmatpush1.xpose.msra.mxu0 0.0
    %745 = vmatprep.subr.mxu0 0.0
    %746 = vmatpush1.xpose.msra.mxu0 0.0
    %747 = vmatprep.subr.mxu0 0.0
    %748 = vmatpush1.xpose.msra.mxu0 0.0
    %749 = vmatprep.subr.mxu0 0.0
    %750 = vmatpush1.xpose.msra.mxu0 0.0
    %751 = vmatprep.mubr.f32.mxu0 0.0
    %752 = vmatmul.mubr.f32.gmra.mrb[0].mxu0 %v683
    %v753 = vpop.f32.mrb[0].mxu0
    %v754 = vadd.f32 %v540, %v753
    %v755 = vpop.f32.mrb[0].mxu0
    %756 = vdwg.mxu0
    %757 = vrot.lane.b32.xlu0 %v664, 96
    %v758 = vpop.permute.xlu0 %757
    %v759 = vsel %vm82, %v664, 0
    %v761 = vsel %vm82, %v758, 0
    %763 = vmatprep.subr.mxu0 0.0
    %764 = vmatpush1.xpose.msra.mxu0 %v761
    %765 = vmatprep.subr.mxu0 0.0
    %766 = vmatpush1.xpose.msra.mxu0 0.0
    %767 = vmatprep.subr.mxu0 0.0
    %768 = vmatpush1.xpose.msra.mxu0 0.0
    %769 = vmatprep.subr.mxu0 0.0
    %770 = vmatpush1.xpose.msra.mxu0 0.0
    %771 = vmatprep.subr.mxu0 0.0
    %772 = vmatpush1.xpose.msra.mxu0 0.0
    %773 = vmatprep.subr.mxu0 0.0
    %774 = vmatpush1.xpose.msra.mxu0 0.0
    %775 = vmatprep.subr.mxu0 0.0
    %776 = vmatpush1.xpose.msra.mxu0 0.0
    %777 = vmatprep.subr.mxu0 0.0
    %778 = vmatpush1.xpose.msra.mxu0 0.0
    %779 = vmatprep.subr.mxu0 0.0
    %780 = vmatpush1.xpose.msra.mxu0 0.0
    %781 = vmatprep.subr.mxu0 0.0
    %782 = vmatpush1.xpose.msra.mxu0 0.0
    %783 = vmatprep.subr.mxu0 0.0
    %784 = vmatpush1.xpose.msra.mxu0 0.0
    %785 = vmatprep.subr.mxu0 0.0
    %786 = vmatpush1.xpose.msra.mxu0 0.0
    %787 = vmatprep.subr.mxu0 0.0
    %788 = vmatpush1.xpose.msra.mxu0 0.0
    %789 = vmatprep.subr.mxu0 0.0
    %790 = vmatpush1.xpose.msra.mxu0 0.0
    %791 = vmatprep.subr.mxu0 0.0
    %792 = vmatpush1.xpose.msra.mxu0 0.0
    %793 = vmatprep.subr.mxu0 0.0
    %794 = vmatpush1.xpose.msra.mxu0 0.0
    %795 = vmatprep.subr.mxu0 0.0
    %796 = vmatpush1.xpose.msra.mxu0 0.0
    %797 = vmatprep.subr.mxu0 0.0
    %798 = vmatpush1.xpose.msra.mxu0 0.0
    %799 = vmatprep.subr.mxu0 0.0
    %800 = vmatpush1.xpose.msra.mxu0 0.0
    %801 = vmatprep.subr.mxu0 0.0
    %802 = vmatpush1.xpose.msra.mxu0 0.0
    %803 = vmatprep.subr.mxu0 0.0
    %804 = vmatpush1.xpose.msra.mxu0 0.0
    %805 = vmatprep.subr.mxu0 0.0
    %806 = vmatpush1.xpose.msra.mxu0 0.0
    %807 = vmatprep.subr.mxu0 0.0
    %808 = vmatpush1.xpose.msra.mxu0 0.0
    %809 = vmatprep.subr.mxu0 0.0
    %810 = vmatpush1.xpose.msra.mxu0 0.0
    %811 = vmatprep.subr.mxu0 0.0
    %812 = vmatpush1.xpose.msra.mxu0 0.0
    %813 = vmatprep.subr.mxu0 0.0
    %814 = vmatpush1.xpose.msra.mxu0 0.0
    %815 = vmatprep.subr.mxu0 0.0
    %816 = vmatpush1.xpose.msra.mxu0 0.0
    %817 = vmatprep.subr.mxu0 0.0
    %818 = vmatpush1.xpose.msra.mxu0 0.0
    %819 = vmatprep.subr.mxu0 0.0
    %820 = vmatpush1.xpose.msra.mxu0 0.0
    %821 = vmatprep.subr.mxu0 0.0
    %822 = vmatpush1.xpose.msra.mxu0 0.0
    %823 = vmatprep.subr.mxu0 0.0
    %824 = vmatpush1.xpose.msra.mxu0 0.0
    %825 = vmatprep.subr.mxu0 0.0
    %826 = vmatpush1.xpose.msra.mxu0 0.0
    %827 = vmatprep.mubr.f32.mxu0 0.0
    %828 = vmatmul.mubr.f32.gmra.mrb[0].mxu0 %v759
    %v829 = vpop.f32.mrb[0].mxu0
    %v830 = vadd.f32 %v544, %v829
    %v831 = vpop.f32.mrb[0].mxu0
    %832 = vdwg.mxu0
    %833 = vrot.lane.b32.xlu0 %v670, 96
    %v834 = vpop.permute.xlu0 %833
    %v835 = vsel %vm82, %v670, 0
    %v837 = vsel %vm82, %v834, 0
    %839 = vmatprep.subr.mxu0 0.0
    %840 = vmatpush1.xpose.msra.mxu0 %v837
    %841 = vmatprep.subr.mxu0 0.0
    %842 = vmatpush1.xpose.msra.mxu0 0.0
    %843 = vmatprep.subr.mxu0 0.0
    %844 = vmatpush1.xpose.msra.mxu0 0.0
    %845 = vmatprep.subr.mxu0 0.0
    %846 = vmatpush1.xpose.msra.mxu0 0.0
    %847 = vmatprep.subr.mxu0 0.0
    %848 = vmatpush1.xpose.msra.mxu0 0.0
    %849 = vmatprep.subr.mxu0 0.0
    %850 = vmatpush1.xpose.msra.mxu0 0.0
    %851 = vmatprep.subr.mxu0 0.0
    %852 = vmatpush1.xpose.msra.mxu0 0.0
    %853 = vmatprep.subr.mxu0 0.0
    %854 = vmatpush1.xpose.msra.mxu0 0.0
    %855 = vmatprep.subr.mxu0 0.0
    %856 = vmatpush1.xpose.msra.mxu0 0.0
    %857 = vmatprep.subr.mxu0 0.0
    %858 = vmatpush1.xpose.msra.mxu0 0.0
    %859 = vmatprep.subr.mxu0 0.0
    %860 = vmatpush1.xpose.msra.mxu0 0.0
    %861 = vmatprep.subr.mxu0 0.0
    %862 = vmatpush1.xpose.msra.mxu0 0.0
    %863 = vmatprep.subr.mxu0 0.0
    %864 = vmatpush1.xpose.msra.mxu0 0.0
    %865 = vmatprep.subr.mxu0 0.0
    %866 = vmatpush1.xpose.msra.mxu0 0.0
    %867 = vmatprep.subr.mxu0 0.0
    %868 = vmatpush1.xpose.msra.mxu0 0.0
    %869 = vmatprep.subr.mxu0 0.0
    %870 = vmatpush1.xpose.msra.mxu0 0.0
    %871 = vmatprep.subr.mxu0 0.0
    %872 = vmatpush1.xpose.msra.mxu0 0.0
    %873 = vmatprep.subr.mxu0 0.0
    %874 = vmatpush1.xpose.msra.mxu0 0.0
    %875 = vmatprep.subr.mxu0 0.0
    %876 = vmatpush1.xpose.msra.mxu0 0.0
    %877 = vmatprep.subr.mxu0 0.0
    %878 = vmatpush1.xpose.msra.mxu0 0.0
    %879 = vmatprep.subr.mxu0 0.0
    %880 = vmatpush1.xpose.msra.mxu0 0.0
    %881 = vmatprep.subr.mxu0 0.0
    %882 = vmatpush1.xpose.msra.mxu0 0.0
    %883 = vmatprep.subr.mxu0 0.0
    %884 = vmatpush1.xpose.msra.mxu0 0.0
    %885 = vmatprep.subr.mxu0 0.0
    %886 = vmatpush1.xpose.msra.mxu0 0.0
    %887 = vmatprep.subr.mxu0 0.0
    %888 = vmatpush1.xpose.msra.mxu0 0.0
    %889 = vmatprep.subr.mxu0 0.0
    %890 = vmatpush1.xpose.msra.mxu0 0.0
    %891 = vmatprep.subr.mxu0 0.0
    %892 = vmatpush1.xpose.msra.mxu0 0.0
    %893 = vmatprep.subr.mxu0 0.0
    %894 = vmatpush1.xpose.msra.mxu0 0.0
    %895 = vmatprep.subr.mxu0 0.0
    %896 = vmatpush1.xpose.msra.mxu0 0.0
    %897 = vmatprep.subr.mxu0 0.0
    %898 = vmatpush1.xpose.msra.mxu0 0.0
    %899 = vmatprep.subr.mxu0 0.0
    %900 = vmatpush1.xpose.msra.mxu0 0.0
    %901 = vmatprep.subr.mxu0 0.0
    %902 = vmatpush1.xpose.msra.mxu0 0.0
    %903 = vmatprep.mubr.f32.mxu0 0.0
    %904 = vmatmul.mubr.f32.gmra.mrb[0].mxu0 %v835
    %v905 = vpop.f32.mrb[0].mxu0
    %v906 = vadd.f32 %v548, %v905
    %v907 = vpop.f32.mrb[0].mxu0
    %908 = vdwg.mxu0
    %909 = vrot.lane.b32.xlu0 %v672, 96
    %v910 = vpop.permute.xlu0 %909
    %v911 = vsel %vm82, %v672, 0
    %v913 = vsel %vm82, %v910, 0
    %915 = vmatprep.subr.mxu0 0.0
    %916 = vmatpush1.xpose.msra.mxu0 %v913
    %917 = vmatprep.subr.mxu0 0.0
    %918 = vmatpush1.xpose.msra.mxu0 0.0
    %919 = vmatprep.subr.mxu0 0.0
    %920 = vmatpush1.xpose.msra.mxu0 0.0
    %921 = vmatprep.subr.mxu0 0.0
    %922 = vmatpush1.xpose.msra.mxu0 0.0
    %923 = vmatprep.subr.mxu0 0.0
    %924 = vmatpush1.xpose.msra.mxu0 0.0
    %925 = vmatprep.subr.mxu0 0.0
    %926 = vmatpush1.xpose.msra.mxu0 0.0
    %927 = vmatprep.subr.mxu0 0.0
    %928 = vmatpush1.xpose.msra.mxu0 0.0
    %929 = vmatprep.subr.mxu0 0.0
    %930 = vmatpush1.xpose.msra.mxu0 0.0
    %931 = vmatprep.subr.mxu0 0.0
    %932 = vmatpush1.xpose.msra.mxu0 0.0
    %933 = vmatprep.subr.mxu0 0.0
    %934 = vmatpush1.xpose.msra.mxu0 0.0
    %935 = vmatprep.subr.mxu0 0.0
    %936 = vmatpush1.xpose.msra.mxu0 0.0
    %937 = vmatprep.subr.mxu0 0.0
    %938 = vmatpush1.xpose.msra.mxu0 0.0
    %939 = vmatprep.subr.mxu0 0.0
    %940 = vmatpush1.xpose.msra.mxu0 0.0
    %941 = vmatprep.subr.mxu0 0.0
    %942 = vmatpush1.xpose.msra.mxu0 0.0
    %943 = vmatprep.subr.mxu0 0.0
    %944 = vmatpush1.xpose.msra.mxu0 0.0
    %945 = vmatprep.subr.mxu0 0.0
    %946 = vmatpush1.xpose.msra.mxu0 0.0
    %947 = vmatprep.subr.mxu0 0.0
    %948 = vmatpush1.xpose.msra.mxu0 0.0
    %949 = vmatprep.subr.mxu0 0.0
    %950 = vmatpush1.xpose.msra.mxu0 0.0
    %951 = vmatprep.subr.mxu0 0.0
    %952 = vmatpush1.xpose.msra.mxu0 0.0
    %953 = vmatprep.subr.mxu0 0.0
    %954 = vmatpush1.xpose.msra.mxu0 0.0
    %955 = vmatprep.subr.mxu0 0.0
    %956 = vmatpush1.xpose.msra.mxu0 0.0
    %957 = vmatprep.subr.mxu0 0.0
    %958 = vmatpush1.xpose.msra.mxu0 0.0
    %959 = vmatprep.subr.mxu0 0.0
    %960 = vmatpush1.xpose.msra.mxu0 0.0
    %961 = vmatprep.subr.mxu0 0.0
    %962 = vmatpush1.xpose.msra.mxu0 0.0
    %963 = vmatprep.subr.mxu0 0.0
    %964 = vmatpush1.xpose.msra.mxu0 0.0
    %965 = vmatprep.subr.mxu0 0.0
    %966 = vmatpush1.xpose.msra.mxu0 0.0
    %967 = vmatprep.subr.mxu0 0.0
    %968 = vmatpush1.xpose.msra.mxu0 0.0
    %969 = vmatprep.subr.mxu0 0.0
    %970 = vmatpush1.xpose.msra.mxu0 0.0
    %971 = vmatprep.subr.mxu0 0.0
    %972 = vmatpush1.xpose.msra.mxu0 0.0
    %973 = vmatprep.subr.mxu0 0.0
    %974 = vmatpush1.xpose.msra.mxu0 0.0
    %975 = vmatprep.subr.mxu0 0.0
    %976 = vmatpush1.xpose.msra.mxu0 0.0
    %977 = vmatprep.subr.mxu0 0.0
    %978 = vmatpush1.xpose.msra.mxu0 0.0
    %979 = vmatprep.mubr.f32.mxu0 0.0
    %980 = vmatmul.mubr.f32.gmra.mrb[0].mxu0 %v911
    %v981 = vpop.f32.mrb[0].mxu0
    %v982 = vadd.f32 %v552, %v981
    %v983 = vpop.f32.mrb[0].mxu0
    %984 = vdwg.mxu0
    %985 = vrot.lane.b32.xlu0 %v674, 96
    %v986 = vpop.permute.xlu0 %985
    %v987 = vsel %vm82, %v674, 0
    %v989 = vsel %vm82, %v986, 0
    %991 = vmatprep.subr.mxu0 0.0
    %992 = vmatpush1.xpose.msra.mxu0 %v989
    %993 = vmatprep.subr.mxu0 0.0
    %994 = vmatpush1.xpose.msra.mxu0 0.0
    %995 = vmatprep.subr.mxu0 0.0
    %996 = vmatpush1.xpose.msra.mxu0 0.0
    %997 = vmatprep.subr.mxu0 0.0
    %998 = vmatpush1.xpose.msra.mxu0 0.0
    %999 = vmatprep.subr.mxu0 0.0
    %1000 = vmatpush1.xpose.msra.mxu0 0.0
    %1001 = vmatprep.subr.mxu0 0.0
    %1002 = vmatpush1.xpose.msra.mxu0 0.0
    %1003 = vmatprep.subr.mxu0 0.0
    %1004 = vmatpush1.xpose.msra.mxu0 0.0
    %1005 = vmatprep.subr.mxu0 0.0
    %1006 = vmatpush1.xpose.msra.mxu0 0.0
    %1007 = vmatprep.subr.mxu0 0.0
    %1008 = vmatpush1.xpose.msra.mxu0 0.0
    %1009 = vmatprep.subr.mxu0 0.0
    %1010 = vmatpush1.xpose.msra.mxu0 0.0
    %1011 = vmatprep.subr.mxu0 0.0
    %1012 = vmatpush1.xpose.msra.mxu0 0.0
    %1013 = vmatprep.subr.mxu0 0.0
    %1014 = vmatpush1.xpose.msra.mxu0 0.0
    %1015 = vmatprep.subr.mxu0 0.0
    %1016 = vmatpush1.xpose.msra.mxu0 0.0
    %1017 = vmatprep.subr.mxu0 0.0
    %1018 = vmatpush1.xpose.msra.mxu0 0.0
    %1019 = vmatprep.subr.mxu0 0.0
    %1020 = vmatpush1.xpose.msra.mxu0 0.0
    %1021 = vmatprep.subr.mxu0 0.0
    %1022 = vmatpush1.xpose.msra.mxu0 0.0
    %1023 = vmatprep.subr.mxu0 0.0
    %1024 = vmatpush1.xpose.msra.mxu0 0.0
    %1025 = vmatprep.subr.mxu0 0.0
    %1026 = vmatpush1.xpose.msra.mxu0 0.0
    %1027 = vmatprep.subr.mxu0 0.0
    %1028 = vmatpush1.xpose.msra.mxu0 0.0
    %1029 = vmatprep.subr.mxu0 0.0
    %1030 = vmatpush1.xpose.msra.mxu0 0.0
    %1031 = vmatprep.subr.mxu0 0.0
    %1032 = vmatpush1.xpose.msra.mxu0 0.0
    %1033 = vmatprep.subr.mxu0 0.0
    %1034 = vmatpush1.xpose.msra.mxu0 0.0
    %1035 = vmatprep.subr.mxu0 0.0
    %1036 = vmatpush1.xpose.msra.mxu0 0.0
    %1037 = vmatprep.subr.mxu0 0.0
    %1038 = vmatpush1.xpose.msra.mxu0 0.0
    %1039 = vmatprep.subr.mxu0 0.0
    %1040 = vmatpush1.xpose.msra.mxu0 0.0
    %1041 = vmatprep.subr.mxu0 0.0
    %1042 = vmatpush1.xpose.msra.mxu0 0.0
    %1043 = vmatprep.subr.mxu0 0.0
    %1044 = vmatpush1.xpose.msra.mxu0 0.0
    %1045 = vmatprep.subr.mxu0 0.0
    %1046 = vmatpush1.xpose.msra.mxu0 0.0
    %1047 = vmatprep.subr.mxu0 0.0
    %1048 = vmatpush1.xpose.msra.mxu0 0.0
    %1049 = vmatprep.subr.mxu0 0.0
    %1050 = vmatpush1.xpose.msra.mxu0 0.0
    %1051 = vmatprep.subr.mxu0 0.0
    %1052 = vmatpush1.xpose.msra.mxu0 0.0
    %1053 = vmatprep.subr.mxu0 0.0
    %1054 = vmatpush1.xpose.msra.mxu0 0.0
    %1055 = vmatprep.mubr.f32.mxu0 0.0
    %1056 = vmatmul.mubr.f32.gmra.mrb[0].mxu0 %v987
    %v1057 = vpop.f32.mrb[0].mxu0
    %v1058 = vadd.f32 %v556, %v1057
    %v1059 = vpop.f32.mrb[0].mxu0
    %1060 = vdwg.mxu0
    %1061 = vrot.lane.b32.xlu0 %v676, 96
    %v1062 = vpop.permute.xlu0 %1061
    %v1063 = vsel %vm82, %v676, 0
    %v1065 = vsel %vm82, %v1062, 0
    %1067 = vmatprep.subr.mxu0 0.0
    %1068 = vmatpush1.xpose.msra.mxu0 %v1065
    %1069 = vmatprep.subr.mxu0 0.0
    %1070 = vmatpush1.xpose.msra.mxu0 0.0
    %1071 = vmatprep.subr.mxu0 0.0
    %1072 = vmatpush1.xpose.msra.mxu0 0.0
    %1073 = vmatprep.subr.mxu0 0.0
    %1074 = vmatpush1.xpose.msra.mxu0 0.0
    %1075 = vmatprep.subr.mxu0 0.0
    %1076 = vmatpush1.xpose.msra.mxu0 0.0
    %1077 = vmatprep.subr.mxu0 0.0
    %1078 = vmatpush1.xpose.msra.mxu0 0.0
    %1079 = vmatprep.subr.mxu0 0.0
    %1080 = vmatpush1.xpose.msra.mxu0 0.0
    %1081 = vmatprep.subr.mxu0 0.0
    %1082 = vmatpush1.xpose.msra.mxu0 0.0
    %1083 = vmatprep.subr.mxu0 0.0
    %1084 = vmatpush1.xpose.msra.mxu0 0.0
    %1085 = vmatprep.subr.mxu0 0.0
    %1086 = vmatpush1.xpose.msra.mxu0 0.0
    %1087 = vmatprep.subr.mxu0 0.0
    %1088 = vmatpush1.xpose.msra.mxu0 0.0
    %1089 = vmatprep.subr.mxu0 0.0
    %1090 = vmatpush1.xpose.msra.mxu0 0.0
    %1091 = vmatprep.subr.mxu0 0.0
    %1092 = vmatpush1.xpose.msra.mxu0 0.0
    %1093 = vmatprep.subr.mxu0 0.0
    %1094 = vmatpush1.xpose.msra.mxu0 0.0
    %1095 = vmatprep.subr.mxu0 0.0
    %1096 = vmatpush1.xpose.msra.mxu0 0.0
    %1097 = vmatprep.subr.mxu0 0.0
    %1098 = vmatpush1.xpose.msra.mxu0 0.0
    %1099 = vmatprep.subr.mxu0 0.0
    %1100 = vmatpush1.xpose.msra.mxu0 0.0
    %1101 = vmatprep.subr.mxu0 0.0
    %1102 = vmatpush1.xpose.msra.mxu0 0.0
    %1103 = vmatprep.subr.mxu0 0.0
    %1104 = vmatpush1.xpose.msra.mxu0 0.0
    %1105 = vmatprep.subr.mxu0 0.0
    %1106 = vmatpush1.xpose.msra.mxu0 0.0
    %1107 = vmatprep.subr.mxu0 0.0
    %1108 = vmatpush1.xpose.msra.mxu0 0.0
    %1109 = vmatprep.subr.mxu0 0.0
    %1110 = vmatpush1.xpose.msra.mxu0 0.0
    %1111 = vmatprep.subr.mxu0 0.0
    %1112 = vmatpush1.xpose.msra.mxu0 0.0
    %1113 = vmatprep.subr.mxu0 0.0
    %1114 = vmatpush1.xpose.msra.mxu0 0.0
    %1115 = vmatprep.subr.mxu0 0.0
    %1116 = vmatpush1.xpose.msra.mxu0 0.0
    %1117 = vmatprep.subr.mxu0 0.0
    %1118 = vmatpush1.xpose.msra.mxu0 0.0
    %1119 = vmatprep.subr.mxu0 0.0
    %1120 = vmatpush1.xpose.msra.mxu0 0.0
    %1121 = vmatprep.subr.mxu0 0.0
    %1122 = vmatpush1.xpose.msra.mxu0 0.0
    %1123 = vmatprep.subr.mxu0 0.0
    %1124 = vmatpush1.xpose.msra.mxu0 0.0
    %1125 = vmatprep.subr.mxu0 0.0
    %1126 = vmatpush1.xpose.msra.mxu0 0.0
    %1127 = vmatprep.subr.mxu0 0.0
    %1128 = vmatpush1.xpose.msra.mxu0 0.0
    %1129 = vmatprep.subr.mxu0 0.0
    %1130 = vmatpush1.xpose.msra.mxu0 0.0
    %1131 = vmatprep.mubr.f32.mxu0 0.0
    %1132 = vmatmul.mubr.f32.gmra.mrb[0].mxu0 %v1063
    %v1133 = vpop.f32.mrb[0].mxu0
    %v1134 = vadd.f32 %v560, %v1133
    %v1135 = vpop.f32.mrb[0].mxu0
    %1136 = vdwg.mxu0
    %1137 = vrot.lane.b32.xlu0 %v678, 96
    %v1138 = vpop.permute.xlu0 %1137
    %v1139 = vsel %vm82, %v678, 0
    %v1141 = vsel %vm82, %v1138, 0
    %1143 = vmatprep.subr.mxu0 0.0
    %1144 = vmatpush1.xpose.msra.mxu0 %v1141
    %1145 = vmatprep.subr.mxu0 0.0
    %1146 = vmatpush1.xpose.msra.mxu0 0.0
    %1147 = vmatprep.subr.mxu0 0.0
    %1148 = vmatpush1.xpose.msra.mxu0 0.0
    %1149 = vmatprep.subr.mxu0 0.0
    %1150 = vmatpush1.xpose.msra.mxu0 0.0
    %1151 = vmatprep.subr.mxu0 0.0
    %1152 = vmatpush1.xpose.msra.mxu0 0.0
    %1153 = vmatprep.subr.mxu0 0.0
    %1154 = vmatpush1.xpose.msra.mxu0 0.0
    %1155 = vmatprep.subr.mxu0 0.0
    %1156 = vmatpush1.xpose.msra.mxu0 0.0
    %1157 = vmatprep.subr.mxu0 0.0
    %1158 = vmatpush1.xpose.msra.mxu0 0.0
    %1159 = vmatprep.subr.mxu0 0.0
    %1160 = vmatpush1.xpose.msra.mxu0 0.0
    %1161 = vmatprep.subr.mxu0 0.0
    %1162 = vmatpush1.xpose.msra.mxu0 0.0
    %1163 = vmatprep.subr.mxu0 0.0
    %1164 = vmatpush1.xpose.msra.mxu0 0.0
    %1165 = vmatprep.subr.mxu0 0.0
    %1166 = vmatpush1.xpose.msra.mxu0 0.0
    %1167 = vmatprep.subr.mxu0 0.0
    %1168 = vmatpush1.xpose.msra.mxu0 0.0
    %1169 = vmatprep.subr.mxu0 0.0
    %1170 = vmatpush1.xpose.msra.mxu0 0.0
    %1171 = vmatprep.subr.mxu0 0.0
    %1172 = vmatpush1.xpose.msra.mxu0 0.0
    %1173 = vmatprep.subr.mxu0 0.0
    %1174 = vmatpush1.xpose.msra.mxu0 0.0
    %1175 = vmatprep.subr.mxu0 0.0
    %1176 = vmatpush1.xpose.msra.mxu0 0.0
    %1177 = vmatprep.subr.mxu0 0.0
    %1178 = vmatpush1.xpose.msra.mxu0 0.0
    %1179 = vmatprep.subr.mxu0 0.0
    %1180 = vmatpush1.xpose.msra.mxu0 0.0
    %1181 = vmatprep.subr.mxu0 0.0
    %1182 = vmatpush1.xpose.msra.mxu0 0.0
    %1183 = vmatprep.subr.mxu0 0.0
    %1184 = vmatpush1.xpose.msra.mxu0 0.0
    %1185 = vmatprep.subr.mxu0 0.0
    %1186 = vmatpush1.xpose.msra.mxu0 0.0
    %1187 = vmatprep.subr.mxu0 0.0
    %1188 = vmatpush1.xpose.msra.mxu0 0.0
    %1189 = vmatprep.subr.mxu0 0.0
    %1190 = vmatpush1.xpose.msra.mxu0 0.0
    %1191 = vmatprep.subr.mxu0 0.0
    %1192 = vmatpush1.xpose.msra.mxu0 0.0
    %1193 = vmatprep.subr.mxu0 0.0
    %1194 = vmatpush1.xpose.msra.mxu0 0.0
    %1195 = vmatprep.subr.mxu0 0.0
    %1196 = vmatpush1.xpose.msra.mxu0 0.0
    %1197 = vmatprep.subr.mxu0 0.0
    %1198 = vmatpush1.xpose.msra.mxu0 0.0
    %1199 = vmatprep.subr.mxu0 0.0
    %1200 = vmatpush1.xpose.msra.mxu0 0.0
    %1201 = vmatprep.subr.mxu0 0.0
    %1202 = vmatpush1.xpose.msra.mxu0 0.0
    %1203 = vmatprep.subr.mxu0 0.0
    %1204 = vmatpush1.xpose.msra.mxu0 0.0
    %1205 = vmatprep.subr.mxu0 0.0
    %1206 = vmatpush1.xpose.msra.mxu0 0.0
    %1207 = vmatprep.mubr.f32.mxu0 0.0
    %1208 = vmatmul.mubr.f32.gmra.mrb[0].mxu0 %v1139
    %v1209 = vpop.f32.mrb[0].mxu0
    %v1210 = vadd.f32 %v564, %v1209
    %v1211 = vpop.f32.mrb[0].mxu0
    %1212 = vdwg.mxu0
    %1213 = vrot.lane.b32.xlu0 %v680, 96
    %v1214 = vpop.permute.xlu0 %1213
    %v1215 = vsel %vm82, %v680, 0
    %v1217 = vsel %vm82, %v1214, 0
    %1219 = vmatprep.subr.mxu0 0.0
    %1220 = vmatpush1.xpose.msra.mxu0 %v1217
    %1221 = vmatprep.subr.mxu0 0.0
    %1222 = vmatpush1.xpose.msra.mxu0 0.0
    %1223 = vmatprep.subr.mxu0 0.0
    %1224 = vmatpush1.xpose.msra.mxu0 0.0
    %1225 = vmatprep.subr.mxu0 0.0
    %1226 = vmatpush1.xpose.msra.mxu0 0.0
    %1227 = vmatprep.subr.mxu0 0.0
    %1228 = vmatpush1.xpose.msra.mxu0 0.0
    %1229 = vmatprep.subr.mxu0 0.0
    %1230 = vmatpush1.xpose.msra.mxu0 0.0
    %1231 = vmatprep.subr.mxu0 0.0
    %1232 = vmatpush1.xpose.msra.mxu0 0.0
    %1233 = vmatprep.subr.mxu0 0.0
    %1234 = vmatpush1.xpose.msra.mxu0 0.0
    %1235 = vmatprep.subr.mxu0 0.0
    %1236 = vmatpush1.xpose.msra.mxu0 0.0
    %1237 = vmatprep.subr.mxu0 0.0
    %1238 = vmatpush1.xpose.msra.mxu0 0.0
    %1239 = vmatprep.subr.mxu0 0.0
    %1240 = vmatpush1.xpose.msra.mxu0 0.0
    %1241 = vmatprep.subr.mxu0 0.0
    %1242 = vmatpush1.xpose.msra.mxu0 0.0
    %1243 = vmatprep.subr.mxu0 0.0
    %1244 = vmatpush1.xpose.msra.mxu0 0.0
    %1245 = vmatprep.subr.mxu0 0.0
    %1246 = vmatpush1.xpose.msra.mxu0 0.0
    %1247 = vmatprep.subr.mxu0 0.0
    %1248 = vmatpush1.xpose.msra.mxu0 0.0
    %1249 = vmatprep.subr.mxu0 0.0
    %1250 = vmatpush1.xpose.msra.mxu0 0.0
    %1251 = vmatprep.subr.mxu0 0.0
    %1252 = vmatpush1.xpose.msra.mxu0 0.0
    %1253 = vmatprep.subr.mxu0 0.0
    %1254 = vmatpush1.xpose.msra.mxu0 0.0
    %1255 = vmatprep.subr.mxu0 0.0
    %1256 = vmatpush1.xpose.msra.mxu0 0.0
    %1257 = vmatprep.subr.mxu0 0.0
    %1258 = vmatpush1.xpose.msra.mxu0 0.0
    %1259 = vmatprep.subr.mxu0 0.0
    %1260 = vmatpush1.xpose.msra.mxu0 0.0
    %1261 = vmatprep.subr.mxu0 0.0
    %1262 = vmatpush1.xpose.msra.mxu0 0.0
    %1263 = vmatprep.subr.mxu0 0.0
    %1264 = vmatpush1.xpose.msra.mxu0 0.0
    %1265 = vmatprep.subr.mxu0 0.0
    %1266 = vmatpush1.xpose.msra.mxu0 0.0
    %1267 = vmatprep.subr.mxu0 0.0
    %1268 = vmatpush1.xpose.msra.mxu0 0.0
    %1269 = vmatprep.subr.mxu0 0.0
    %1270 = vmatpush1.xpose.msra.mxu0 0.0
    %1271 = vmatprep.subr.mxu0 0.0
    %1272 = vmatpush1.xpose.msra.mxu0 0.0
    %1273 = vmatprep.subr.mxu0 0.0
    %1274 = vmatpush1.xpose.msra.mxu0 0.0
    %1275 = vmatprep.subr.mxu0 0.0
    %1276 = vmatpush1.xpose.msra.mxu0 0.0
    %1277 = vmatprep.subr.mxu0 0.0
    %1278 = vmatpush1.xpose.msra.mxu0 0.0
    %1279 = vmatprep.subr.mxu0 0.0
    %1280 = vmatpush1.xpose.msra.mxu0 0.0
    %1281 = vmatprep.subr.mxu0 0.0
    %1282 = vmatpush1.xpose.msra.mxu0 0.0
    %1283 = vmatprep.mubr.f32.mxu0 0.0
    %1284 = vmatmul.mubr.f32.gmra.mrb[0].mxu0 %v1215
    %v1285 = vpop.f32.mrb[0].mxu0
    %v1286 = vadd.f32 %v568, %v1285
    %v1287 = vpop.f32.mrb[0].mxu0
    %1288 = vdwg.mxu0
    %v1289 = vmul.f32 %v754, 1.442695
    %v1290 = vpow.pop %v1289
    %v1291 = vmul.f32 %v830, 1.442695
    %v1292 = vpow.pop %v1291
    %v1293 = vmul.f32 %v906, 1.442695
    %v1294 = vpow.pop %v1293
    %v1295 = vmul.f32 %v982, 1.442695
    %v1296 = vpow.pop %v1295
    %v1297 = vmul.f32 %v1058, 1.442695
    %v1298 = vpow.pop %v1297
    %v1299 = vmul.f32 %v1134, 1.442695
    %v1300 = vpow.pop %v1299
    %v1301 = vmul.f32 %v1210, 1.442695
    %v1302 = vpow.pop %v1301
    %v1303 = vmul.f32 %v1286, 1.442695
    %v1304 = vpow.pop %v1303
    %v1305 = vsel %vm82, %v1290, 0.0
    %1306 = vadd.xlane.f32.xlu0 %v1305
    %v1307 = vpop.xlane.xlu0 %1306
    %v1308 = vsel %vm82, %v1292, 0.0
    %1309 = vadd.xlane.f32.xlu0 %v1308
    %v1310 = vpop.xlane.xlu0 %1309
    %v1311 = vsel %vm82, %v1294, 0.0
    %1312 = vadd.xlane.f32.xlu0 %v1311
    %v1313 = vpop.xlane.xlu0 %1312
    %v1314 = vsel %vm82, %v1296, 0.0
    %1315 = vadd.xlane.f32.xlu0 %v1314
    %v1316 = vpop.xlane.xlu0 %1315
    %v1317 = vsel %vm82, %v1298, 0.0
    %1318 = vadd.xlane.f32.xlu0 %v1317
    %v1319 = vpop.xlane.xlu0 %1318
    %v1320 = vsel %vm82, %v1300, 0.0
    %1321 = vadd.xlane.f32.xlu0 %v1320
    %v1322 = vpop.xlane.xlu0 %1321
    %v1323 = vsel %vm82, %v1302, 0.0
    %1324 = vadd.xlane.f32.xlu0 %v1323
    %v1325 = vpop.xlane.xlu0 %1324
    %v1326 = vsel %vm82, %v1304, 0.0
    %1327 = vadd.xlane.f32.xlu0 %v1326
    %v1328 = vpop.xlane.xlu0 %1327
    %v1329 = vrcp.pop %v1307
    %v1330 = vrcp.pop %v1310
    %v1331 = vrcp.pop %v1313
    %v1332 = vrcp.pop %v1316
    %v1333 = vrcp.pop %v1319
    %v1334 = vrcp.pop %v1322
    %v1335 = vrcp.pop %v1325
    %v1336 = vrcp.pop %v1328
    %v1337 = vmul.f32 %v1290, %v1329
    %v1338 = vmul.f32 %v1292, %v1330
    %v1339 = vmul.f32 %v1294, %v1331
    %v1340 = vmul.f32 %v1296, %v1332
    %v1341 = vmul.f32 %v1298, %v1333
    %v1342 = vmul.f32 %v1300, %v1334
    %v1343 = vmul.f32 %v1302, %v1335
    %v1344 = vmul.f32 %v1304, %v1336
    %1345 = vrot.lane.b32.xlu0 %v659, 64
    %v1346 = vpop.permute.xlu0 %1345
    %v1349 = vsel %vm82, %v1337, 0
    %1351 = vmatprep.subr.mxu0 0.0
    %1352 = vmatpush1.msra.mxu0 %v1346
    %1353 = vmatprep.subr.mxu0 0.0
    %1354 = vmatpush1.msra.mxu0 0.0
    %1355 = vmatprep.subr.mxu0 0.0
    %1356 = vmatpush1.msra.mxu0 0.0
    %1357 = vmatprep.subr.mxu0 0.0
    %1358 = vmatpush1.msra.mxu0 0.0
    %1359 = vmatprep.subr.mxu0 0.0
    %1360 = vmatpush1.msra.mxu0 0.0
    %1361 = vmatprep.subr.mxu0 0.0
    %1362 = vmatpush1.msra.mxu0 0.0
    %1363 = vmatprep.subr.mxu0 0.0
    %1364 = vmatpush1.msra.mxu0 0.0
    %1365 = vmatprep.subr.mxu0 0.0
    %1366 = vmatpush1.msra.mxu0 0.0
    %1367 = vmatprep.subr.mxu0 0.0
    %1368 = vmatpush1.msra.mxu0 0.0
    %1369 = vmatprep.subr.mxu0 0.0
    %1370 = vmatpush1.msra.mxu0 0.0
    %1371 = vmatprep.subr.mxu0 0.0
    %1372 = vmatpush1.msra.mxu0 0.0
    %1373 = vmatprep.subr.mxu0 0.0
    %1374 = vmatpush1.msra.mxu0 0.0
    %1375 = vmatprep.subr.mxu0 0.0
    %1376 = vmatpush1.msra.mxu0 0.0
    %1377 = vmatprep.subr.mxu0 0.0
    %1378 = vmatpush1.msra.mxu0 0.0
    %1379 = vmatprep.subr.mxu0 0.0
    %1380 = vmatpush1.msra.mxu0 0.0
    %1381 = vmatprep.subr.mxu0 0.0
    %1382 = vmatpush1.msra.mxu0 0.0
    %1383 = vmatprep.subr.mxu0 0.0
    %1384 = vmatpush1.msra.mxu0 0.0
    %1385 = vmatprep.subr.mxu0 0.0
    %1386 = vmatpush1.msra.mxu0 0.0
    %1387 = vmatprep.subr.mxu0 0.0
    %1388 = vmatpush1.msra.mxu0 0.0
    %1389 = vmatprep.subr.mxu0 0.0
    %1390 = vmatpush1.msra.mxu0 0.0
    %1391 = vmatprep.subr.mxu0 0.0
    %1392 = vmatpush1.msra.mxu0 0.0
    %1393 = vmatprep.subr.mxu0 0.0
    %1394 = vmatpush1.msra.mxu0 0.0
    %1395 = vmatprep.subr.mxu0 0.0
    %1396 = vmatpush1.msra.mxu0 0.0
    %1397 = vmatprep.subr.mxu0 0.0
    %1398 = vmatpush1.msra.mxu0 0.0
    %1399 = vmatprep.subr.mxu0 0.0
    %1400 = vmatpush1.msra.mxu0 0.0
    %1401 = vmatprep.subr.mxu0 0.0
    %1402 = vmatpush1.msra.mxu0 0.0
    %1403 = vmatprep.subr.mxu0 0.0
    %1404 = vmatpush1.msra.mxu0 0.0
    %1405 = vmatprep.subr.mxu0 0.0
    %1406 = vmatpush1.msra.mxu0 0.0
    %1407 = vmatprep.subr.mxu0 0.0
    %1408 = vmatpush1.msra.mxu0 0.0
    %1409 = vmatprep.subr.mxu0 0.0
    %1410 = vmatpush1.msra.mxu0 0.0
    %1411 = vmatprep.subr.mxu0 0.0
    %1412 = vmatpush1.msra.mxu0 0.0
    %1413 = vmatprep.subr.mxu0 0.0
    %1414 = vmatpush1.msra.mxu0 0.0
    %1415 = vmatprep.mubr.f32.mxu0 0.0
    %1416 = vmatmul.mubr.f32.gmra.mrb[0].mxu0 %v1349
    %v1417 = vpop.f32.mrb[0].mxu0
    %v1418 = vadd.f32 0.0, %v1417
    %v1419 = vpop.f32.mrb[0].mxu0
    %1420 = vdwg.mxu0
    %1421 = vrot.lane.b32.xlu0 %v664, 64
    %v1422 = vpop.permute.xlu0 %1421
    %v1425 = vsel %vm82, %v1338, 0
    %1427 = vmatprep.subr.mxu0 0.0
    %1428 = vmatpush1.msra.mxu0 %v1422
    %1429 = vmatprep.subr.mxu0 0.0
    %1430 = vmatpush1.msra.mxu0 0.0
    %1431 = vmatprep.subr.mxu0 0.0
    %1432 = vmatpush1.msra.mxu0 0.0
    %1433 = vmatprep.subr.mxu0 0.0
    %1434 = vmatpush1.msra.mxu0 0.0
    %1435 = vmatprep.subr.mxu0 0.0
    %1436 = vmatpush1.msra.mxu0 0.0
    %1437 = vmatprep.subr.mxu0 0.0
    %1438 = vmatpush1.msra.mxu0 0.0
    %1439 = vmatprep.subr.mxu0 0.0
    %1440 = vmatpush1.msra.mxu0 0.0
    %1441 = vmatprep.subr.mxu0 0.0
    %1442 = vmatpush1.msra.mxu0 0.0
    %1443 = vmatprep.subr.mxu0 0.0
    %1444 = vmatpush1.msra.mxu0 0.0
    %1445 = vmatprep.subr.mxu0 0.0
    %1446 = vmatpush1.msra.mxu0 0.0
    %1447 = vmatprep.subr.mxu0 0.0
    %1448 = vmatpush1.msra.mxu0 0.0
    %1449 = vmatprep.subr.mxu0 0.0
    %1450 = vmatpush1.msra.mxu0 0.0
    %1451 = vmatprep.subr.mxu0 0.0
    %1452 = vmatpush1.msra.mxu0 0.0
    %1453 = vmatprep.subr.mxu0 0.0
    %1454 = vmatpush1.msra.mxu0 0.0
    %1455 = vmatprep.subr.mxu0 0.0
    %1456 = vmatpush1.msra.mxu0 0.0
    %1457 = vmatprep.subr.mxu0 0.0
    %1458 = vmatpush1.msra.mxu0 0.0
    %1459 = vmatprep.subr.mxu0 0.0
    %1460 = vmatpush1.msra.mxu0 0.0
    %1461 = vmatprep.subr.mxu0 0.0
    %1462 = vmatpush1.msra.mxu0 0.0
    %1463 = vmatprep.subr.mxu0 0.0
    %1464 = vmatpush1.msra.mxu0 0.0
    %1465 = vmatprep.subr.mxu0 0.0
    %1466 = vmatpush1.msra.mxu0 0.0
    %1467 = vmatprep.subr.mxu0 0.0
    %1468 = vmatpush1.msra.mxu0 0.0
    %1469 = vmatprep.subr.mxu0 0.0
    %1470 = vmatpush1.msra.mxu0 0.0
    %1471 = vmatprep.subr.mxu0 0.0
    %1472 = vmatpush1.msra.mxu0 0.0
    %1473 = vmatprep.subr.mxu0 0.0
    %1474 = vmatpush1.msra.mxu0 0.0
    %1475 = vmatprep.subr.mxu0 0.0
    %1476 = vmatpush1.msra.mxu0 0.0
    %1477 = vmatprep.subr.mxu0 0.0
    %1478 = vmatpush1.msra.mxu0 0.0
    %1479 = vmatprep.subr.mxu0 0.0
    %1480 = vmatpush1.msra.mxu0 0.0
    %1481 = vmatprep.subr.mxu0 0.0
    %1482 = vmatpush1.msra.mxu0 0.0
    %1483 = vmatprep.subr.mxu0 0.0
    %1484 = vmatpush1.msra.mxu0 0.0
    %1485 = vmatprep.subr.mxu0 0.0
    %1486 = vmatpush1.msra.mxu0 0.0
    %1487 = vmatprep.subr.mxu0 0.0
    %1488 = vmatpush1.msra.mxu0 0.0
    %1489 = vmatprep.subr.mxu0 0.0
    %1490 = vmatpush1.msra.mxu0 0.0
    %1491 = vmatprep.mubr.f32.mxu0 0.0
    %1492 = vmatmul.mubr.f32.gmra.mrb[0].mxu0 %v1425
    %v1493 = vpop.f32.mrb[0].mxu0
    %v1494 = vadd.f32 0.0, %v1493
    %v1495 = vpop.f32.mrb[0].mxu0
    %1496 = vdwg.mxu0
    %1497 = vrot.lane.b32.xlu0 %v670, 64
    %v1498 = vpop.permute.xlu0 %1497
    %v1501 = vsel %vm82, %v1339, 0
    %1503 = vmatprep.subr.mxu0 0.0
    %1504 = vmatpush1.msra.mxu0 %v1498
    %1505 = vmatprep.subr.mxu0 0.0
    %1506 = vmatpush1.msra.mxu0 0.0
    %1507 = vmatprep.subr.mxu0 0.0
    %1508 = vmatpush1.msra.mxu0 0.0
    %1509 = vmatprep.subr.mxu0 0.0
    %1510 = vmatpush1.msra.mxu0 0.0
    %1511 = vmatprep.subr.mxu0 0.0
    %1512 = vmatpush1.msra.mxu0 0.0
    %1513 = vmatprep.subr.mxu0 0.0
    %1514 = vmatpush1.msra.mxu0 0.0
    %1515 = vmatprep.subr.mxu0 0.0
    %1516 = vmatpush1.msra.mxu0 0.0
    %1517 = vmatprep.subr.mxu0 0.0
    %1518 = vmatpush1.msra.mxu0 0.0
    %1519 = vmatprep.subr.mxu0 0.0
    %1520 = vmatpush1.msra.mxu0 0.0
    %1521 = vmatprep.subr.mxu0 0.0
    %1522 = vmatpush1.msra.mxu0 0.0
    %1523 = vmatprep.subr.mxu0 0.0
    %1524 = vmatpush1.msra.mxu0 0.0
    %1525 = vmatprep.subr.mxu0 0.0
    %1526 = vmatpush1.msra.mxu0 0.0
    %1527 = vmatprep.subr.mxu0 0.0
    %1528 = vmatpush1.msra.mxu0 0.0
    %1529 = vmatprep.subr.mxu0 0.0
    %1530 = vmatpush1.msra.mxu0 0.0
    %1531 = vmatprep.subr.mxu0 0.0
    %1532 = vmatpush1.msra.mxu0 0.0
    %1533 = vmatprep.subr.mxu0 0.0
    %1534 = vmatpush1.msra.mxu0 0.0
    %1535 = vmatprep.subr.mxu0 0.0
    %1536 = vmatpush1.msra.mxu0 0.0
    %1537 = vmatprep.subr.mxu0 0.0
    %1538 = vmatpush1.msra.mxu0 0.0
    %1539 = vmatprep.subr.mxu0 0.0
    %1540 = vmatpush1.msra.mxu0 0.0
    %1541 = vmatprep.subr.mxu0 0.0
    %1542 = vmatpush1.msra.mxu0 0.0
    %1543 = vmatprep.subr.mxu0 0.0
    %1544 = vmatpush1.msra.mxu0 0.0
    %1545 = vmatprep.subr.mxu0 0.0
    %1546 = vmatpush1.msra.mxu0 0.0
    %1547 = vmatprep.subr.mxu0 0.0
    %1548 = vmatpush1.msra.mxu0 0.0
    %1549 = vmatprep.subr.mxu0 0.0
    %1550 = vmatpush1.msra.mxu0 0.0
    %1551 = vmatprep.subr.mxu0 0.0
    %1552 = vmatpush1.msra.mxu0 0.0
    %1553 = vmatprep.subr.mxu0 0.0
    %1554 = vmatpush1.msra.mxu0 0.0
    %1555 = vmatprep.subr.mxu0 0.0
    %1556 = vmatpush1.msra.mxu0 0.0
    %1557 = vmatprep.subr.mxu0 0.0
    %1558 = vmatpush1.msra.mxu0 0.0
    %1559 = vmatprep.subr.mxu0 0.0
    %1560 = vmatpush1.msra.mxu0 0.0
    %1561 = vmatprep.subr.mxu0 0.0
    %1562 = vmatpush1.msra.mxu0 0.0
    %1563 = vmatprep.subr.mxu0 0.0
    %1564 = vmatpush1.msra.mxu0 0.0
    %1565 = vmatprep.subr.mxu0 0.0
    %1566 = vmatpush1.msra.mxu0 0.0
    %1567 = vmatprep.mubr.f32.mxu0 0.0
    %1568 = vmatmul.mubr.f32.gmra.mrb[0].mxu0 %v1501
    %v1569 = vpop.f32.mrb[0].mxu0
    %v1570 = vadd.f32 0.0, %v1569
    %v1571 = vpop.f32.mrb[0].mxu0
    %1572 = vdwg.mxu0
    %1573 = vrot.lane.b32.xlu0 %v672, 64
    %v1574 = vpop.permute.xlu0 %1573
    %v1577 = vsel %vm82, %v1340, 0
    %1579 = vmatprep.subr.mxu0 0.0
    %1580 = vmatpush1.msra.mxu0 %v1574
    %1581 = vmatprep.subr.mxu0 0.0
    %1582 = vmatpush1.msra.mxu0 0.0
    %1583 = vmatprep.subr.mxu0 0.0
    %1584 = vmatpush1.msra.mxu0 0.0
    %1585 = vmatprep.subr.mxu0 0.0
    %1586 = vmatpush1.msra.mxu0 0.0
    %1587 = vmatprep.subr.mxu0 0.0
    %1588 = vmatpush1.msra.mxu0 0.0
    %1589 = vmatprep.subr.mxu0 0.0
    %1590 = vmatpush1.msra.mxu0 0.0
    %1591 = vmatprep.subr.mxu0 0.0
    %1592 = vmatpush1.msra.mxu0 0.0
    %1593 = vmatprep.subr.mxu0 0.0
    %1594 = vmatpush1.msra.mxu0 0.0
    %1595 = vmatprep.subr.mxu0 0.0
    %1596 = vmatpush1.msra.mxu0 0.0
    %1597 = vmatprep.subr.mxu0 0.0
    %1598 = vmatpush1.msra.mxu0 0.0
    %1599 = vmatprep.subr.mxu0 0.0
    %1600 = vmatpush1.msra.mxu0 0.0
    %1601 = vmatprep.subr.mxu0 0.0
    %1602 = vmatpush1.msra.mxu0 0.0
    %1603 = vmatprep.subr.mxu0 0.0
    %1604 = vmatpush1.msra.mxu0 0.0
    %1605 = vmatprep.subr.mxu0 0.0
    %1606 = vmatpush1.msra.mxu0 0.0
    %1607 = vmatprep.subr.mxu0 0.0
    %1608 = vmatpush1.msra.mxu0 0.0
    %1609 = vmatprep.subr.mxu0 0.0
    %1610 = vmatpush1.msra.mxu0 0.0
    %1611 = vmatprep.subr.mxu0 0.0
    %1612 = vmatpush1.msra.mxu0 0.0
    %1613 = vmatprep.subr.mxu0 0.0
    %1614 = vmatpush1.msra.mxu0 0.0
    %1615 = vmatprep.subr.mxu0 0.0
    %1616 = vmatpush1.msra.mxu0 0.0
    %1617 = vmatprep.subr.mxu0 0.0
    %1618 = vmatpush1.msra.mxu0 0.0
    %1619 = vmatprep.subr.mxu0 0.0
    %1620 = vmatpush1.msra.mxu0 0.0
    %1621 = vmatprep.subr.mxu0 0.0
    %1622 = vmatpush1.msra.mxu0 0.0
    %1623 = vmatprep.subr.mxu0 0.0
    %1624 = vmatpush1.msra.mxu0 0.0
    %1625 = vmatprep.subr.mxu0 0.0
    %1626 = vmatpush1.msra.mxu0 0.0
    %1627 = vmatprep.subr.mxu0 0.0
    %1628 = vmatpush1.msra.mxu0 0.0
    %1629 = vmatprep.subr.mxu0 0.0
    %1630 = vmatpush1.msra.mxu0 0.0
    %1631 = vmatprep.subr.mxu0 0.0
    %1632 = vmatpush1.msra.mxu0 0.0
    %1633 = vmatprep.subr.mxu0 0.0
    %1634 = vmatpush1.msra.mxu0 0.0
    %1635 = vmatprep.subr.mxu0 0.0
    %1636 = vmatpush1.msra.mxu0 0.0
    %1637 = vmatprep.subr.mxu0 0.0
    %1638 = vmatpush1.msra.mxu0 0.0
    %1639 = vmatprep.subr.mxu0 0.0
    %1640 = vmatpush1.msra.mxu0 0.0
    %1641 = vmatprep.subr.mxu0 0.0
    %1642 = vmatpush1.msra.mxu0 0.0
    %1643 = vmatprep.mubr.f32.mxu0 0.0
    %1644 = vmatmul.mubr.f32.gmra.mrb[0].mxu0 %v1577
    %v1645 = vpop.f32.mrb[0].mxu0
    %v1646 = vadd.f32 0.0, %v1645
    %v1647 = vpop.f32.mrb[0].mxu0
    %1648 = vdwg.mxu0
    %1649 = vrot.lane.b32.xlu0 %v674, 64
    %v1650 = vpop.permute.xlu0 %1649
    %v1653 = vsel %vm82, %v1341, 0
    %1655 = vmatprep.subr.mxu0 0.0
    %1656 = vmatpush1.msra.mxu0 %v1650
    %1657 = vmatprep.subr.mxu0 0.0
    %1658 = vmatpush1.msra.mxu0 0.0
    %1659 = vmatprep.subr.mxu0 0.0
    %1660 = vmatpush1.msra.mxu0 0.0
    %1661 = vmatprep.subr.mxu0 0.0
    %1662 = vmatpush1.msra.mxu0 0.0
    %1663 = vmatprep.subr.mxu0 0.0
    %1664 = vmatpush1.msra.mxu0 0.0
    %1665 = vmatprep.subr.mxu0 0.0
    %1666 = vmatpush1.msra.mxu0 0.0
    %1667 = vmatprep.subr.mxu0 0.0
    %1668 = vmatpush1.msra.mxu0 0.0
    %1669 = vmatprep.subr.mxu0 0.0
    %1670 = vmatpush1.msra.mxu0 0.0
    %1671 = vmatprep.subr.mxu0 0.0
    %1672 = vmatpush1.msra.mxu0 0.0
    %1673 = vmatprep.subr.mxu0 0.0
    %1674 = vmatpush1.msra.mxu0 0.0
    %1675 = vmatprep.subr.mxu0 0.0
    %1676 = vmatpush1.msra.mxu0 0.0
    %1677 = vmatprep.subr.mxu0 0.0
    %1678 = vmatpush1.msra.mxu0 0.0
    %1679 = vmatprep.subr.mxu0 0.0
    %1680 = vmatpush1.msra.mxu0 0.0
    %1681 = vmatprep.subr.mxu0 0.0
    %1682 = vmatpush1.msra.mxu0 0.0
    %1683 = vmatprep.subr.mxu0 0.0
    %1684 = vmatpush1.msra.mxu0 0.0
    %1685 = vmatprep.subr.mxu0 0.0
    %1686 = vmatpush1.msra.mxu0 0.0
    %1687 = vmatprep.subr.mxu0 0.0
    %1688 = vmatpush1.msra.mxu0 0.0
    %1689 = vmatprep.subr.mxu0 0.0
    %1690 = vmatpush1.msra.mxu0 0.0
    %1691 = vmatprep.subr.mxu0 0.0
    %1692 = vmatpush1.msra.mxu0 0.0
    %1693 = vmatprep.subr.mxu0 0.0
    %1694 = vmatpush1.msra.mxu0 0.0
    %1695 = vmatprep.subr.mxu0 0.0
    %1696 = vmatpush1.msra.mxu0 0.0
    %1697 = vmatprep.subr.mxu0 0.0
    %1698 = vmatpush1.msra.mxu0 0.0
    %1699 = vmatprep.subr.mxu0 0.0
    %1700 = vmatpush1.msra.mxu0 0.0
    %1701 = vmatprep.subr.mxu0 0.0
    %1702 = vmatpush1.msra.mxu0 0.0
    %1703 = vmatprep.subr.mxu0 0.0
    %1704 = vmatpush1.msra.mxu0 0.0
    %1705 = vmatprep.subr.mxu0 0.0
    %1706 = vmatpush1.msra.mxu0 0.0
    %1707 = vmatprep.subr.mxu0 0.0
    %1708 = vmatpush1.msra.mxu0 0.0
    %1709 = vmatprep.subr.mxu0 0.0
    %1710 = vmatpush1.msra.mxu0 0.0
    %1711 = vmatprep.subr.mxu0 0.0
    %1712 = vmatpush1.msra.mxu0 0.0
    %1713 = vmatprep.subr.mxu0 0.0
    %1714 = vmatpush1.msra.mxu0 0.0
    %1715 = vmatprep.subr.mxu0 0.0
    %1716 = vmatpush1.msra.mxu0 0.0
    %1717 = vmatprep.subr.mxu0 0.0
    %1718 = vmatpush1.msra.mxu0 0.0
    %1719 = vmatprep.mubr.f32.mxu0 0.0
    %1720 = vmatmul.mubr.f32.gmra.mrb[0].mxu0 %v1653
    %v1721 = vpop.f32.mrb[0].mxu0
    %v1722 = vadd.f32 0.0, %v1721
    %v1723 = vpop.f32.mrb[0].mxu0
    %1724 = vdwg.mxu0
    %1725 = vrot.lane.b32.xlu0 %v676, 64
    %v1726 = vpop.permute.xlu0 %1725
    %v1729 = vsel %vm82, %v1342, 0
    %1731 = vmatprep.subr.mxu0 0.0
    %1732 = vmatpush1.msra.mxu0 %v1726
    %1733 = vmatprep.subr.mxu0 0.0
    %1734 = vmatpush1.msra.mxu0 0.0
    %1735 = vmatprep.subr.mxu0 0.0
    %1736 = vmatpush1.msra.mxu0 0.0
    %1737 = vmatprep.subr.mxu0 0.0
    %1738 = vmatpush1.msra.mxu0 0.0
    %1739 = vmatprep.subr.mxu0 0.0
    %1740 = vmatpush1.msra.mxu0 0.0
    %1741 = vmatprep.subr.mxu0 0.0
    %1742 = vmatpush1.msra.mxu0 0.0
    %1743 = vmatprep.subr.mxu0 0.0
    %1744 = vmatpush1.msra.mxu0 0.0
    %1745 = vmatprep.subr.mxu0 0.0
    %1746 = vmatpush1.msra.mxu0 0.0
    %1747 = vmatprep.subr.mxu0 0.0
    %1748 = vmatpush1.msra.mxu0 0.0
    %1749 = vmatprep.subr.mxu0 0.0
    %1750 = vmatpush1.msra.mxu0 0.0
    %1751 = vmatprep.subr.mxu0 0.0
    %1752 = vmatpush1.msra.mxu0 0.0
    %1753 = vmatprep.subr.mxu0 0.0
    %1754 = vmatpush1.msra.mxu0 0.0
    %1755 = vmatprep.subr.mxu0 0.0
    %1756 = vmatpush1.msra.mxu0 0.0
    %1757 = vmatprep.subr.mxu0 0.0
    %1758 = vmatpush1.msra.mxu0 0.0
    %1759 = vmatprep.subr.mxu0 0.0
    %1760 = vmatpush1.msra.mxu0 0.0
    %1761 = vmatprep.subr.mxu0 0.0
    %1762 = vmatpush1.msra.mxu0 0.0
    %1763 = vmatprep.subr.mxu0 0.0
    %1764 = vmatpush1.msra.mxu0 0.0
    %1765 = vmatprep.subr.mxu0 0.0
    %1766 = vmatpush1.msra.mxu0 0.0
    %1767 = vmatprep.subr.mxu0 0.0
    %1768 = vmatpush1.msra.mxu0 0.0
    %1769 = vmatprep.subr.mxu0 0.0
    %1770 = vmatpush1.msra.mxu0 0.0
    %1771 = vmatprep.subr.mxu0 0.0
    %1772 = vmatpush1.msra.mxu0 0.0
    %1773 = vmatprep.subr.mxu0 0.0
    %1774 = vmatpush1.msra.mxu0 0.0
    %1775 = vmatprep.subr.mxu0 0.0
    %1776 = vmatpush1.msra.mxu0 0.0
    %1777 = vmatprep.subr.mxu0 0.0
    %1778 = vmatpush1.msra.mxu0 0.0
    %1779 = vmatprep.subr.mxu0 0.0
    %1780 = vmatpush1.msra.mxu0 0.0
    %1781 = vmatprep.subr.mxu0 0.0
    %1782 = vmatpush1.msra.mxu0 0.0
    %1783 = vmatprep.subr.mxu0 0.0
    %1784 = vmatpush1.msra.mxu0 0.0
    %1785 = vmatprep.subr.mxu0 0.0
    %1786 = vmatpush1.msra.mxu0 0.0
    %1787 = vmatprep.subr.mxu0 0.0
    %1788 = vmatpush1.msra.mxu0 0.0
    %1789 = vmatprep.subr.mxu0 0.0
    %1790 = vmatpush1.msra.mxu0 0.0
    %1791 = vmatprep.subr.mxu0 0.0
    %1792 = vmatpush1.msra.mxu0 0.0
    %1793 = vmatprep.subr.mxu0 0.0
    %1794 = vmatpush1.msra.mxu0 0.0
    %1795 = vmatprep.mubr.f32.mxu0 0.0
    %1796 = vmatmul.mubr.f32.gmra.mrb[0].mxu0 %v1729
    %v1797 = vpop.f32.mrb[0].mxu0
    %v1798 = vadd.f32 0.0, %v1797
    %v1799 = vpop.f32.mrb[0].mxu0
    %1800 = vdwg.mxu0
    %1801 = vrot.lane.b32.xlu0 %v678, 64
    %v1802 = vpop.permute.xlu0 %1801
    %v1805 = vsel %vm82, %v1343, 0
    %1807 = vmatprep.subr.mxu0 0.0
    %1808 = vmatpush1.msra.mxu0 %v1802
    %1809 = vmatprep.subr.mxu0 0.0
    %1810 = vmatpush1.msra.mxu0 0.0
    %1811 = vmatprep.subr.mxu0 0.0
    %1812 = vmatpush1.msra.mxu0 0.0
    %1813 = vmatprep.subr.mxu0 0.0
    %1814 = vmatpush1.msra.mxu0 0.0
    %1815 = vmatprep.subr.mxu0 0.0
    %1816 = vmatpush1.msra.mxu0 0.0
    %1817 = vmatprep.subr.mxu0 0.0
    %1818 = vmatpush1.msra.mxu0 0.0
    %1819 = vmatprep.subr.mxu0 0.0
    %1820 = vmatpush1.msra.mxu0 0.0
    %1821 = vmatprep.subr.mxu0 0.0
    %1822 = vmatpush1.msra.mxu0 0.0
    %1823 = vmatprep.subr.mxu0 0.0
    %1824 = vmatpush1.msra.mxu0 0.0
    %1825 = vmatprep.subr.mxu0 0.0
    %1826 = vmatpush1.msra.mxu0 0.0
    %1827 = vmatprep.subr.mxu0 0.0
    %1828 = vmatpush1.msra.mxu0 0.0
    %1829 = vmatprep.subr.mxu0 0.0
    %1830 = vmatpush1.msra.mxu0 0.0
    %1831 = vmatprep.subr.mxu0 0.0
    %1832 = vmatpush1.msra.mxu0 0.0
    %1833 = vmatprep.subr.mxu0 0.0
    %1834 = vmatpush1.msra.mxu0 0.0
    %1835 = vmatprep.subr.mxu0 0.0
    %1836 = vmatpush1.msra.mxu0 0.0
    %1837 = vmatprep.subr.mxu0 0.0
    %1838 = vmatpush1.msra.mxu0 0.0
    %1839 = vmatprep.subr.mxu0 0.0
    %1840 = vmatpush1.msra.mxu0 0.0
    %1841 = vmatprep.subr.mxu0 0.0
    %1842 = vmatpush1.msra.mxu0 0.0
    %1843 = vmatprep.subr.mxu0 0.0
    %1844 = vmatpush1.msra.mxu0 0.0
    %1845 = vmatprep.subr.mxu0 0.0
    %1846 = vmatpush1.msra.mxu0 0.0
    %1847 = vmatprep.subr.mxu0 0.0
    %1848 = vmatpush1.msra.mxu0 0.0
    %1849 = vmatprep.subr.mxu0 0.0
    %1850 = vmatpush1.msra.mxu0 0.0
    %1851 = vmatprep.subr.mxu0 0.0
    %1852 = vmatpush1.msra.mxu0 0.0
    %1853 = vmatprep.subr.mxu0 0.0
    %1854 = vmatpush1.msra.mxu0 0.0
    %1855 = vmatprep.subr.mxu0 0.0
    %1856 = vmatpush1.msra.mxu0 0.0
    %1857 = vmatprep.subr.mxu0 0.0
    %1858 = vmatpush1.msra.mxu0 0.0
    %1859 = vmatprep.subr.mxu0 0.0
    %1860 = vmatpush1.msra.mxu0 0.0
    %1861 = vmatprep.subr.mxu0 0.0
    %1862 = vmatpush1.msra.mxu0 0.0
    %1863 = vmatprep.subr.mxu0 0.0
    %1864 = vmatpush1.msra.mxu0 0.0
    %1865 = vmatprep.subr.mxu0 0.0
    %1866 = vmatpush1.msra.mxu0 0.0
    %1867 = vmatprep.subr.mxu0 0.0
    %1868 = vmatpush1.msra.mxu0 0.0
    %1869 = vmatprep.subr.mxu0 0.0
    %1870 = vmatpush1.msra.mxu0 0.0
    %1871 = vmatprep.mubr.f32.mxu0 0.0
    %1872 = vmatmul.mubr.f32.gmra.mrb[0].mxu0 %v1805
    %v1873 = vpop.f32.mrb[0].mxu0
    %v1874 = vadd.f32 0.0, %v1873
    %v1875 = vpop.f32.mrb[0].mxu0
    %1876 = vdwg.mxu0
    %1877 = vrot.lane.b32.xlu0 %v680, 64
    %v1878 = vpop.permute.xlu0 %1877
    %v1881 = vsel %vm82, %v1344, 0
    %1883 = vmatprep.subr.mxu0 0.0
    %1884 = vmatpush1.msra.mxu0 %v1878
    %1885 = vmatprep.subr.mxu0 0.0
    %1886 = vmatpush1.msra.mxu0 0.0
    %1887 = vmatprep.subr.mxu0 0.0
    %1888 = vmatpush1.msra.mxu0 0.0
    %1889 = vmatprep.subr.mxu0 0.0
    %1890 = vmatpush1.msra.mxu0 0.0
    %1891 = vmatprep.subr.mxu0 0.0
    %1892 = vmatpush1.msra.mxu0 0.0
    %1893 = vmatprep.subr.mxu0 0.0
    %1894 = vmatpush1.msra.mxu0 0.0
    %1895 = vmatprep.subr.mxu0 0.0
    %1896 = vmatpush1.msra.mxu0 0.0
    %1897 = vmatprep.subr.mxu0 0.0
    %1898 = vmatpush1.msra.mxu0 0.0
    %1899 = vmatprep.subr.mxu0 0.0
    %1900 = vmatpush1.msra.mxu0 0.0
    %1901 = vmatprep.subr.mxu0 0.0
    %1902 = vmatpush1.msra.mxu0 0.0
    %1903 = vmatprep.subr.mxu0 0.0
    %1904 = vmatpush1.msra.mxu0 0.0
    %1905 = vmatprep.subr.mxu0 0.0
    %1906 = vmatpush1.msra.mxu0 0.0
    %1907 = vmatprep.subr.mxu0 0.0
    %1908 = vmatpush1.msra.mxu0 0.0
    %1909 = vmatprep.subr.mxu0 0.0
    %1910 = vmatpush1.msra.mxu0 0.0
    %1911 = vmatprep.subr.mxu0 0.0
    %1912 = vmatpush1.msra.mxu0 0.0
    %1913 = vmatprep.subr.mxu0 0.0
    %1914 = vmatpush1.msra.mxu0 0.0
    %1915 = vmatprep.subr.mxu0 0.0
    %1916 = vmatpush1.msra.mxu0 0.0
    %1917 = vmatprep.subr.mxu0 0.0
    %1918 = vmatpush1.msra.mxu0 0.0
    %1919 = vmatprep.subr.mxu0 0.0
    %1920 = vmatpush1.msra.mxu0 0.0
    %1921 = vmatprep.subr.mxu0 0.0
    %1922 = vmatpush1.msra.mxu0 0.0
    %1923 = vmatprep.subr.mxu0 0.0
    %1924 = vmatpush1.msra.mxu0 0.0
    %1925 = vmatprep.subr.mxu0 0.0
    %1926 = vmatpush1.msra.mxu0 0.0
    %1927 = vmatprep.subr.mxu0 0.0
    %1928 = vmatpush1.msra.mxu0 0.0
    %1929 = vmatprep.subr.mxu0 0.0
    %1930 = vmatpush1.msra.mxu0 0.0
    %1931 = vmatprep.subr.mxu0 0.0
    %1932 = vmatpush1.msra.mxu0 0.0
    %1933 = vmatprep.subr.mxu0 0.0
    %1934 = vmatpush1.msra.mxu0 0.0
    %1935 = vmatprep.subr.mxu0 0.0
    %1936 = vmatpush1.msra.mxu0 0.0
    %1937 = vmatprep.subr.mxu0 0.0
    %1938 = vmatpush1.msra.mxu0 0.0
    %1939 = vmatprep.subr.mxu0 0.0
    %1940 = vmatpush1.msra.mxu0 0.0
    %1941 = vmatprep.subr.mxu0 0.0
    %1942 = vmatpush1.msra.mxu0 0.0
    %1943 = vmatprep.subr.mxu0 0.0
    %1944 = vmatpush1.msra.mxu0 0.0
    %1945 = vmatprep.subr.mxu0 0.0
    %1946 = vmatpush1.msra.mxu0 0.0
    %1947 = vmatprep.mubr.f32.mxu0 0.0
    %1948 = vmatmul.mubr.f32.gmra.mrb[0].mxu0 %v1881
    %v1949 = vpop.f32.mrb[0].mxu0
    %v1950 = vadd.f32 0.0, %v1949
    %v1951 = vpop.f32.mrb[0].mxu0
    %1952 = vdwg.mxu0
    %v1953 = vld [vmem:[%s6] sm:$0xff]
    %v1954 = vld [vmem:[%s6 + $0x8] sm:$0xff]
    %v1955 = vld [vmem:[%s6 + $0x10] sm:$0xff]
    %v1956 = vld [vmem:[%s6 + $0x18] sm:$0xff]
    %v1958 = vsel %vm82, %v1418, 0
    %v1961 = vsel %vm82, %v1494, 0
    %1963 = vmatprep.subr.mxu0 0.0
    %1964 = vmatpush1.msra.mxu0 %v1953
    %1965 = vmatprep.subr.mxu0 0.0
    %1966 = vmatpush1.msra.mxu0 0.0
    %1967 = vmatprep.subr.mxu0 0.0
    %1968 = vmatpush1.msra.mxu0 0.0
    %1969 = vmatprep.subr.mxu0 0.0
    %1970 = vmatpush1.msra.mxu0 0.0
    %1971 = vmatprep.subr.mxu0 0.0
    %1972 = vmatpush1.msra.mxu0 0.0
    %1973 = vmatprep.subr.mxu0 0.0
    %1974 = vmatpush1.msra.mxu0 0.0
    %1975 = vmatprep.subr.mxu0 0.0
    %1976 = vmatpush1.msra.mxu0 0.0
    %1977 = vmatprep.subr.mxu0 0.0
    %1978 = vmatpush1.msra.mxu0 0.0
    %1979 = vmatprep.subr.mxu0 0.0
    %1980 = vmatpush1.msra.mxu0 0.0
    %1981 = vmatprep.subr.mxu0 0.0
    %1982 = vmatpush1.msra.mxu0 0.0
    %1983 = vmatprep.subr.mxu0 0.0
    %1984 = vmatpush1.msra.mxu0 0.0
    %1985 = vmatprep.subr.mxu0 0.0
    %1986 = vmatpush1.msra.mxu0 0.0
    %1987 = vmatprep.subr.mxu0 0.0
    %1988 = vmatpush1.msra.mxu0 0.0
    %1989 = vmatprep.subr.mxu0 0.0
    %1990 = vmatpush1.msra.mxu0 0.0
    %1991 = vmatprep.subr.mxu0 0.0
    %1992 = vmatpush1.msra.mxu0 0.0
    %1993 = vmatprep.subr.mxu0 0.0
    %1994 = vmatpush1.msra.mxu0 0.0
    %1995 = vmatprep.subr.mxu0 0.0
    %1996 = vmatpush1.msra.mxu0 0.0
    %1997 = vmatprep.subr.mxu0 0.0
    %1998 = vmatpush1.msra.mxu0 0.0
    %1999 = vmatprep.subr.mxu0 0.0
    %2000 = vmatpush1.msra.mxu0 0.0
    %2001 = vmatprep.subr.mxu0 0.0
    %2002 = vmatpush1.msra.mxu0 0.0
    %2003 = vmatprep.subr.mxu0 0.0
    %2004 = vmatpush1.msra.mxu0 0.0
    %2005 = vmatprep.subr.mxu0 0.0
    %2006 = vmatpush1.msra.mxu0 0.0
    %2007 = vmatprep.subr.mxu0 0.0
    %2008 = vmatpush1.msra.mxu0 0.0
    %2009 = vmatprep.subr.mxu0 0.0
    %2010 = vmatpush1.msra.mxu0 0.0
    %2011 = vmatprep.subr.mxu0 0.0
    %2012 = vmatpush1.msra.mxu0 0.0
    %2013 = vmatprep.subr.mxu0 0.0
    %2014 = vmatpush1.msra.mxu0 0.0
    %2015 = vmatprep.subr.mxu0 0.0
    %2016 = vmatpush1.msra.mxu0 0.0
    %2017 = vmatprep.subr.mxu0 0.0
    %2018 = vmatpush1.msra.mxu0 0.0
    %2019 = vmatprep.subr.mxu0 0.0
    %2020 = vmatpush1.msra.mxu0 0.0
    %2021 = vmatprep.subr.mxu0 0.0
    %2022 = vmatpush1.msra.mxu0 0.0
    %2023 = vmatprep.subr.mxu0 0.0
    %2024 = vmatpush1.msra.mxu0 0.0
    %2025 = vmatprep.subr.mxu0 0.0
    %2026 = vmatpush1.msra.mxu0 0.0
    %2027 = vmatprep.mubr.f32.mxu0 0.0
    %2028 = vmatmul.mubr.f32.gmra.mrb[0].mxu0 %v1958
    %v2029 = vpop.f32.mrb[0].mxu0
    %v2030 = vadd.f32 0.0, %v2029
    %v2031 = vpop.f32.mrb[0].mxu0
    %2032 = vmatprep.mubr.f32.mxu0 0.0
    %2033 = vmatmul.mubr.f32.gmra.mrb[0].mxu0 %v1961
    %v2034 = vpop.f32.mrb[0].mxu0
    %v2035 = vadd.f32 0.0, %v2034
    %v2036 = vpop.f32.mrb[0].mxu0
    %2037 = vdwg.mxu0
    %v2039 = vsel %vm82, %v1570, 0
    %v2042 = vsel %vm82, %v1646, 0
    %2044 = vmatprep.subr.mxu0 0.0
    %2045 = vmatpush1.msra.mxu0 %v1954
    %2046 = vmatprep.subr.mxu0 0.0
    %2047 = vmatpush1.msra.mxu0 0.0
    %2048 = vmatprep.subr.mxu0 0.0
    %2049 = vmatpush1.msra.mxu0 0.0
    %2050 = vmatprep.subr.mxu0 0.0
    %2051 = vmatpush1.msra.mxu0 0.0
    %2052 = vmatprep.subr.mxu0 0.0
    %2053 = vmatpush1.msra.mxu0 0.0
    %2054 = vmatprep.subr.mxu0 0.0
    %2055 = vmatpush1.msra.mxu0 0.0
    %2056 = vmatprep.subr.mxu0 0.0
    %2057 = vmatpush1.msra.mxu0 0.0
    %2058 = vmatprep.subr.mxu0 0.0
    %2059 = vmatpush1.msra.mxu0 0.0
    %2060 = vmatprep.subr.mxu0 0.0
    %2061 = vmatpush1.msra.mxu0 0.0
    %2062 = vmatprep.subr.mxu0 0.0
    %2063 = vmatpush1.msra.mxu0 0.0
    %2064 = vmatprep.subr.mxu0 0.0
    %2065 = vmatpush1.msra.mxu0 0.0
    %2066 = vmatprep.subr.mxu0 0.0
    %2067 = vmatpush1.msra.mxu0 0.0
    %2068 = vmatprep.subr.mxu0 0.0
    %2069 = vmatpush1.msra.mxu0 0.0
    %2070 = vmatprep.subr.mxu0 0.0
    %2071 = vmatpush1.msra.mxu0 0.0
    %2072 = vmatprep.subr.mxu0 0.0
    %2073 = vmatpush1.msra.mxu0 0.0
    %2074 = vmatprep.subr.mxu0 0.0
    %2075 = vmatpush1.msra.mxu0 0.0
    %2076 = vmatprep.subr.mxu0 0.0
    %2077 = vmatpush1.msra.mxu0 0.0
    %2078 = vmatprep.subr.mxu0 0.0
    %2079 = vmatpush1.msra.mxu0 0.0
    %2080 = vmatprep.subr.mxu0 0.0
    %2081 = vmatpush1.msra.mxu0 0.0
    %2082 = vmatprep.subr.mxu0 0.0
    %2083 = vmatpush1.msra.mxu0 0.0
    %2084 = vmatprep.subr.mxu0 0.0
    %2085 = vmatpush1.msra.mxu0 0.0
    %2086 = vmatprep.subr.mxu0 0.0
    %2087 = vmatpush1.msra.mxu0 0.0
    %2088 = vmatprep.subr.mxu0 0.0
    %2089 = vmatpush1.msra.mxu0 0.0
    %2090 = vmatprep.subr.mxu0 0.0
    %2091 = vmatpush1.msra.mxu0 0.0
    %2092 = vmatprep.subr.mxu0 0.0
    %2093 = vmatpush1.msra.mxu0 0.0
    %2094 = vmatprep.subr.mxu0 0.0
    %2095 = vmatpush1.msra.mxu0 0.0
    %2096 = vmatprep.subr.mxu0 0.0
    %2097 = vmatpush1.msra.mxu0 0.0
    %2098 = vmatprep.subr.mxu0 0.0
    %2099 = vmatpush1.msra.mxu0 0.0
    %2100 = vmatprep.subr.mxu0 0.0
    %2101 = vmatpush1.msra.mxu0 0.0
    %2102 = vmatprep.subr.mxu0 0.0
    %2103 = vmatpush1.msra.mxu0 0.0
    %2104 = vmatprep.subr.mxu0 0.0
    %2105 = vmatpush1.msra.mxu0 0.0
    %2106 = vmatprep.subr.mxu0 0.0
    %2107 = vmatpush1.msra.mxu0 0.0
    %2108 = vmatprep.mubr.f32.mxu0 0.0
    %2109 = vmatmul.mubr.f32.gmra.mrb[0].mxu0 %v2039
    %v2110 = vpop.f32.mrb[0].mxu0
    %v2111 = vadd.f32 0.0, %v2110
    %v2112 = vpop.f32.mrb[0].mxu0
    %2113 = vmatprep.mubr.f32.mxu0 0.0
    %2114 = vmatmul.mubr.f32.gmra.mrb[0].mxu0 %v2042
    %v2115 = vpop.f32.mrb[0].mxu0
    %v2116 = vadd.f32 0.0, %v2115
    %v2117 = vpop.f32.mrb[0].mxu0
    %2118 = vdwg.mxu0
    %v2120 = vsel %vm82, %v1722, 0
    %v2123 = vsel %vm82, %v1798, 0
    %2125 = vmatprep.subr.mxu0 0.0
    %2126 = vmatpush1.msra.mxu0 %v1955
    %2127 = vmatprep.subr.mxu0 0.0
    %2128 = vmatpush1.msra.mxu0 0.0
    %2129 = vmatprep.subr.mxu0 0.0
    %2130 = vmatpush1.msra.mxu0 0.0
    %2131 = vmatprep.subr.mxu0 0.0
    %2132 = vmatpush1.msra.mxu0 0.0
    %2133 = vmatprep.subr.mxu0 0.0
    %2134 = vmatpush1.msra.mxu0 0.0
    %2135 = vmatprep.subr.mxu0 0.0
    %2136 = vmatpush1.msra.mxu0 0.0
    %2137 = vmatprep.subr.mxu0 0.0
    %2138 = vmatpush1.msra.mxu0 0.0
    %2139 = vmatprep.subr.mxu0 0.0
    %2140 = vmatpush1.msra.mxu0 0.0
    %2141 = vmatprep.subr.mxu0 0.0
    %2142 = vmatpush1.msra.mxu0 0.0
    %2143 = vmatprep.subr.mxu0 0.0
    %2144 = vmatpush1.msra.mxu0 0.0
    %2145 = vmatprep.subr.mxu0 0.0
    %2146 = vmatpush1.msra.mxu0 0.0
    %2147 = vmatprep.subr.mxu0 0.0
    %2148 = vmatpush1.msra.mxu0 0.0
    %2149 = vmatprep.subr.mxu0 0.0
    %2150 = vmatpush1.msra.mxu0 0.0
    %2151 = vmatprep.subr.mxu0 0.0
    %2152 = vmatpush1.msra.mxu0 0.0
    %2153 = vmatprep.subr.mxu0 0.0
    %2154 = vmatpush1.msra.mxu0 0.0
    %2155 = vmatprep.subr.mxu0 0.0
    %2156 = vmatpush1.msra.mxu0 0.0
    %2157 = vmatprep.subr.mxu0 0.0
    %2158 = vmatpush1.msra.mxu0 0.0
    %2159 = vmatprep.subr.mxu0 0.0
    %2160 = vmatpush1.msra.mxu0 0.0
    %2161 = vmatprep.subr.mxu0 0.0
    %2162 = vmatpush1.msra.mxu0 0.0
    %2163 = vmatprep.subr.mxu0 0.0
    %2164 = vmatpush1.msra.mxu0 0.0
    %2165 = vmatprep.subr.mxu0 0.0
    %2166 = vmatpush1.msra.mxu0 0.0
    %2167 = vmatprep.subr.mxu0 0.0
    %2168 = vmatpush1.msra.mxu0 0.0
    %2169 = vmatprep.subr.mxu0 0.0
    %2170 = vmatpush1.msra.mxu0 0.0
    %2171 = vmatprep.subr.mxu0 0.0
    %2172 = vmatpush1.msra.mxu0 0.0
    %2173 = vmatprep.subr.mxu0 0.0
    %2174 = vmatpush1.msra.mxu0 0.0
    %2175 = vmatprep.subr.mxu0 0.0
    %2176 = vmatpush1.msra.mxu0 0.0
    %2177 = vmatprep.subr.mxu0 0.0
    %2178 = vmatpush1.msra.mxu0 0.0
    %2179 = vmatprep.subr.mxu0 0.0
    %2180 = vmatpush1.msra.mxu0 0.0
    %2181 = vmatprep.subr.mxu0 0.0
    %2182 = vmatpush1.msra.mxu0 0.0
    %2183 = vmatprep.subr.mxu0 0.0
    %2184 = vmatpush1.msra.mxu0 0.0
    %2185 = vmatprep.subr.mxu0 0.0
    %2186 = vmatpush1.msra.mxu0 0.0
    %2187 = vmatprep.subr.mxu0 0.0
    %2188 = vmatpush1.msra.mxu0 0.0
    %2189 = vmatprep.mubr.f32.mxu0 0.0
    %2190 = vmatmul.mubr.f32.gmra.mrb[0].mxu0 %v2120
    %v2191 = vpop.f32.mrb[0].mxu0
    %v2192 = vadd.f32 0.0, %v2191
    %v2193 = vpop.f32.mrb[0].mxu0
    %2194 = vmatprep.mubr.f32.mxu0 0.0
    %2195 = vmatmul.mubr.f32.gmra.mrb[0].mxu0 %v2123
    %v2196 = vpop.f32.mrb[0].mxu0
    %v2197 = vadd.f32 0.0, %v2196
    %v2198 = vpop.f32.mrb[0].mxu0
    %2199 = vdwg.mxu0
    %v2201 = vsel %vm82, %v1874, 0
    %v2204 = vsel %vm82, %v1950, 0
    %2206 = vmatprep.subr.mxu0 0.0
    %2207 = vmatpush1.msra.mxu0 %v1956
    %2208 = vmatprep.subr.mxu0 0.0
    %2209 = vmatpush1.msra.mxu0 0.0
    %2210 = vmatprep.subr.mxu0 0.0
    %2211 = vmatpush1.msra.mxu0 0.0
    %2212 = vmatprep.subr.mxu0 0.0
    %2213 = vmatpush1.msra.mxu0 0.0
    %2214 = vmatprep.subr.mxu0 0.0
    %2215 = vmatpush1.msra.mxu0 0.0
    %2216 = vmatprep.subr.mxu0 0.0
    %2217 = vmatpush1.msra.mxu0 0.0
    %2218 = vmatprep.subr.mxu0 0.0
    %2219 = vmatpush1.msra.mxu0 0.0
    %2220 = vmatprep.subr.mxu0 0.0
    %2221 = vmatpush1.msra.mxu0 0.0
    %2222 = vmatprep.subr.mxu0 0.0
    %2223 = vmatpush1.msra.mxu0 0.0
    %2224 = vmatprep.subr.mxu0 0.0
    %2225 = vmatpush1.msra.mxu0 0.0
    %2226 = vmatprep.subr.mxu0 0.0
    %2227 = vmatpush1.msra.mxu0 0.0
    %2228 = vmatprep.subr.mxu0 0.0
    %2229 = vmatpush1.msra.mxu0 0.0
    %2230 = vmatprep.subr.mxu0 0.0
    %2231 = vmatpush1.msra.mxu0 0.0
    %2232 = vmatprep.subr.mxu0 0.0
    %2233 = vmatpush1.msra.mxu0 0.0
    %2234 = vmatprep.subr.mxu0 0.0
    %2235 = vmatpush1.msra.mxu0 0.0
    %2236 = vmatprep.subr.mxu0 0.0
    %2237 = vmatpush1.msra.mxu0 0.0
    %2238 = vmatprep.subr.mxu0 0.0
    %2239 = vmatpush1.msra.mxu0 0.0
    %2240 = vmatprep.subr.mxu0 0.0
    %2241 = vmatpush1.msra.mxu0 0.0
    %2242 = vmatprep.subr.mxu0 0.0
    %2243 = vmatpush1.msra.mxu0 0.0
    %2244 = vmatprep.subr.mxu0 0.0
    %2245 = vmatpush1.msra.mxu0 0.0
    %2246 = vmatprep.subr.mxu0 0.0
    %2247 = vmatpush1.msra.mxu0 0.0
    %2248 = vmatprep.subr.mxu0 0.0
    %2249 = vmatpush1.msra.mxu0 0.0
    %2250 = vmatprep.subr.mxu0 0.0
    %2251 = vmatpush1.msra.mxu0 0.0
    %2252 = vmatprep.subr.mxu0 0.0
    %2253 = vmatpush1.msra.mxu0 0.0
    %2254 = vmatprep.subr.mxu0 0.0
    %2255 = vmatpush1.msra.mxu0 0.0
    %2256 = vmatprep.subr.mxu0 0.0
    %2257 = vmatpush1.msra.mxu0 0.0
    %2258 = vmatprep.subr.mxu0 0.0
    %2259 = vmatpush1.msra.mxu0 0.0
    %2260 = vmatprep.subr.mxu0 0.0
    %2261 = vmatpush1.msra.mxu0 0.0
    %2262 = vmatprep.subr.mxu0 0.0
    %2263 = vmatpush1.msra.mxu0 0.0
    %2264 = vmatprep.subr.mxu0 0.0
    %2265 = vmatpush1.msra.mxu0 0.0
    %2266 = vmatprep.subr.mxu0 0.0
    %2267 = vmatpush1.msra.mxu0 0.0
    %2268 = vmatprep.subr.mxu0 0.0
    %2269 = vmatpush1.msra.mxu0 0.0
    %2270 = vmatprep.mubr.f32.mxu0 0.0
    %2271 = vmatmul.mubr.f32.gmra.mrb[0].mxu0 %v2201
    %v2272 = vpop.f32.mrb[0].mxu0
    %v2273 = vadd.f32 0.0, %v2272
    %v2274 = vpop.f32.mrb[0].mxu0
    %2275 = vmatprep.mubr.f32.mxu0 0.0
    %2276 = vmatmul.mubr.f32.gmra.mrb[0].mxu0 %v2204
    %v2277 = vpop.f32.mrb[0].mxu0
    %v2278 = vadd.f32 0.0, %v2277
    %v2279 = vpop.f32.mrb[0].mxu0
    %2280 = vdwg.mxu0
    %v2281 = vsel %vm352, %v2030, 0.0
    %v2282 = vsel %vm352, %v2111, 0.0
    %v2283 = vadd.f32 %v2281, %v2282
    %v2284 = vsel %vm352, %v2192, 0.0
    %v2285 = vadd.f32 %v2283, %v2284
    %v2286 = vsel %vm352, %v2273, 0.0
    %v2287 = vadd.f32 %v2285, %v2286
    %v2288 = vsel %vm352, %v2035, 0.0
    %v2289 = vsel %vm352, %v2116, 0.0
    %v2290 = vadd.f32 %v2288, %v2289
    %v2291 = vsel %vm352, %v2197, 0.0
    %v2292 = vadd.f32 %v2290, %v2291
    %v2293 = vsel %vm352, %v2278, 0.0
    %v2294 = vadd.f32 %v2292, %v2293
    %v2295 = vlaneseq
    %v2296 = vshrl.u32 %v2295, 7
    %v2297 = vsub.s32 1, %v2296
    %v2298 = vrot.slane %v577, %v2297
    %v2299 = vadd.f32 %v2287, %v2298
    %v2300 = vadd.f32 %v2294, %v2298
    %v2301 = vadd.f32 %v390, %v2299
    %v2302 = vadd.f32 %v391, %v2300
    %v2303 = vsel %vm352, %v2301, 0.0
    %2304 = vadd.xlane.f32.xlu0 %v2303
    %v2305 = vpop.xlane.xlu0 %2304
    %v2306 = vsel %vm352, %v2302, 0.0
    %2307 = vadd.xlane.f32.xlu0 %v2306
    %v2308 = vpop.xlane.xlu0 %2307
    %v2309 = vmul.f32 %v2305, %v359
    %v2310 = vmul.f32 %v2308, %v359
    %v2311 = vsub.f32 %v2301, %v2309
    %v2312 = vsub.f32 %v2302, %v2310
    %v2313 = vmul.f32 %v2311, %v2311
    %v2314 = vmul.f32 %v2312, %v2312
    %v2315 = vsel %vm352, %v2313, 0.0
    %2316 = vadd.xlane.f32.xlu0 %v2315
    %v2317 = vpop.xlane.xlu0 %2316
    %v2318 = vsel %vm352, %v2314, 0.0
    %2319 = vadd.xlane.f32.xlu0 %v2318
    %v2320 = vpop.xlane.xlu0 %2319
    %v2321 = vmul.f32 %v2317, %v359
    %v2322 = vmul.f32 %v2320, %v359
    %v2323 = vadd.f32 %v2321, 1e-05
    %v2324 = vadd.f32 %v2322, 1e-05
    %v2325 = vrsqrt.pop %v2323
    %v2326 = vrsqrt.pop %v2324
    %v2327 = vmul.f32 %v2311, %v2325
    %v2328 = vmul.f32 %v2312, %v2326
    %v2329 = vlaneseq
    %v2330 = vshrl.u32 %v2329, 7
    %v2331 = vsub.s32 2, %v2330
    %v2332 = vrot.slane %v577, %v2331
    %v2333 = vmul.f32 %v2327, %v2332
    %v2334 = vmul.f32 %v2328, %v2332
    %v2335 = vlaneseq
    %v2336 = vshrl.u32 %v2335, 7
    %v2337 = vsub.s32 3, %v2336
    %v2338 = vrot.slane %v577, %v2337
    %v2339 = vadd.f32 %v2333, %v2338
    %v2340 = vadd.f32 %v2334, %v2338
    %v2341 = vld [vmem:[%s7] sm:$0xff]
    %v2342 = vld [vmem:[%s7 + $0x8] sm:$0xff]
    %v2343 = vld [vmem:[%s7 + $0x10] sm:$0xff]
    %v2344 = vld [vmem:[%s7 + $0x18] sm:$0xff]
    %v2345 = vlaneseq
    %v2346 = vshrl.u32 %v2345, 7
    %v2347 = vsub.s32 4, %v2346
    %v2348 = vrot.slane %v577, %v2347
    %v2350 = vsel %vm352, %v2339, 0
    %v2353 = vsel %vm352, %v2340, 0
    %2355 = vmatprep.subr.mxu0 0.0
    %2356 = vmatpush1.msra.mxu0 %v2341
    %2357 = vmatprep.subr.mxu0 0.0
    %2358 = vmatpush1.msra.mxu0 %v2342
    %2359 = vmatprep.subr.mxu0 0.0
    %2360 = vmatpush1.msra.mxu0 %v2343
    %2361 = vmatprep.subr.mxu0 0.0
    %2362 = vmatpush1.msra.mxu0 %v2344
    %2363 = vmatprep.subr.mxu0 0.0
    %2364 = vmatpush1.msra.mxu0 0.0
    %2365 = vmatprep.subr.mxu0 0.0
    %2366 = vmatpush1.msra.mxu0 0.0
    %2367 = vmatprep.subr.mxu0 0.0
    %2368 = vmatpush1.msra.mxu0 0.0
    %2369 = vmatprep.subr.mxu0 0.0
    %2370 = vmatpush1.msra.mxu0 0.0
    %2371 = vmatprep.subr.mxu0 0.0
    %2372 = vmatpush1.msra.mxu0 0.0
    %2373 = vmatprep.subr.mxu0 0.0
    %2374 = vmatpush1.msra.mxu0 0.0
    %2375 = vmatprep.subr.mxu0 0.0
    %2376 = vmatpush1.msra.mxu0 0.0
    %2377 = vmatprep.subr.mxu0 0.0
    %2378 = vmatpush1.msra.mxu0 0.0
    %2379 = vmatprep.subr.mxu0 0.0
    %2380 = vmatpush1.msra.mxu0 0.0
    %2381 = vmatprep.subr.mxu0 0.0
    %2382 = vmatpush1.msra.mxu0 0.0
    %2383 = vmatprep.subr.mxu0 0.0
    %2384 = vmatpush1.msra.mxu0 0.0
    %2385 = vmatprep.subr.mxu0 0.0
    %2386 = vmatpush1.msra.mxu0 0.0
    %2387 = vmatprep.subr.mxu0 0.0
    %2388 = vmatpush1.msra.mxu0 0.0
    %2389 = vmatprep.subr.mxu0 0.0
    %2390 = vmatpush1.msra.mxu0 0.0
    %2391 = vmatprep.subr.mxu0 0.0
    %2392 = vmatpush1.msra.mxu0 0.0
    %2393 = vmatprep.subr.mxu0 0.0
    %2394 = vmatpush1.msra.mxu0 0.0
    %2395 = vmatprep.subr.mxu0 0.0
    %2396 = vmatpush1.msra.mxu0 0.0
    %2397 = vmatprep.subr.mxu0 0.0
    %2398 = vmatpush1.msra.mxu0 0.0
    %2399 = vmatprep.subr.mxu0 0.0
    %2400 = vmatpush1.msra.mxu0 0.0
    %2401 = vmatprep.subr.mxu0 0.0
    %2402 = vmatpush1.msra.mxu0 0.0
    %2403 = vmatprep.subr.mxu0 0.0
    %2404 = vmatpush1.msra.mxu0 0.0
    %2405 = vmatprep.subr.mxu0 0.0
    %2406 = vmatpush1.msra.mxu0 0.0
    %2407 = vmatprep.subr.mxu0 0.0
    %2408 = vmatpush1.msra.mxu0 0.0
    %2409 = vmatprep.subr.mxu0 0.0
    %2410 = vmatpush1.msra.mxu0 0.0
    %2411 = vmatprep.subr.mxu0 0.0
    %2412 = vmatpush1.msra.mxu0 0.0
    %2413 = vmatprep.subr.mxu0 0.0
    %2414 = vmatpush1.msra.mxu0 0.0
    %2415 = vmatprep.subr.mxu0 0.0
    %2416 = vmatpush1.msra.mxu0 0.0
    %2417 = vmatprep.subr.mxu0 0.0
    %2418 = vmatpush1.msra.mxu0 0.0
    %2419 = vmatprep.mubr.f32.mxu0 0.0
    %2420 = vmatmul.mubr.f32.gmra.mrb[0].mxu0 %v2350
    %v2421 = vpop.f32.mrb[0].mxu0
    %v2422 = vadd.f32 %v2348, %v2421
    %v2423 = vpop.f32.mrb[0].mxu0
    %2424 = vmatprep.mubr.f32.mxu0 0.0
    %2425 = vmatmul.mubr.f32.gmra.mrb[0].mxu0 %v2353
    %v2426 = vpop.f32.mrb[0].mxu0
    %v2427 = vadd.f32 %v2348, %v2426
    %v2428 = vpop.f32.mrb[0].mxu0
    %2429 = vdwg.mxu0
    %v2430 = vmul.f32 %v2422, 0.5
    %v2431 = vmul.f32 %v2427, 0.5
    %v2432 = vmul.f32 %v2422, 0.044715
    %v2433 = vmul.f32 %v2427, 0.044715
    %v2434 = vmul.f32 %v2432, %v2422
    %v2435 = vmul.f32 %v2433, %v2427
    %v2436 = vmul.f32 %v2434, %v2422
    %v2437 = vmul.f32 %v2435, %v2427
    %v2438 = vadd.f32 %v2422, %v2436
    %v2439 = vadd.f32 %v2427, %v2437
    %v2440 = vmul.f32 %v2438, 0.7978846
    %v2441 = vmul.f32 %v2439, 0.7978846
    %v2442 = vtanh.pop %v2440
    %v2443 = vtanh.pop %v2441
    %v2444 = vadd.f32 %v2442, 1.0
    %v2445 = vadd.f32 %v2443, 1.0
    %v2446 = vmul.f32 %v2430, %v2444
    %v2447 = vmul.f32 %v2431, %v2445
    %v2448 = vld [vmem:[%s8] sm:$0xff]
    %v2449 = vld [vmem:[%s8 + $0x8] sm:$0xff]
    %v2450 = vld [vmem:[%s8 + $0x10] sm:$0xff]
    %v2451 = vld [vmem:[%s8 + $0x18] sm:$0xff]
    %v2452 = vld [vmem:[%s8 + $0x20] sm:$0xff]
    %v2453 = vld [vmem:[%s8 + $0x28] sm:$0xff]
    %v2454 = vld [vmem:[%s8 + $0x30] sm:$0xff]
    %v2455 = vld [vmem:[%s8 + $0x38] sm:$0xff]
    %v2456 = vlaneseq
    %v2457 = vshrl.u32 %v2456, 7
    %v2458 = vsub.s32 5, %v2457
    %v2459 = vrot.slane %v577, %v2458
    %v2461 = vsel %vm187, %v2446, 0
    %v2464 = vsel %vm187, %v2447, 0
    %2466 = vmatprep.subr.mxu0 0.0
    %2467 = vmatpush1.msra.mxu0 %v2448
    %2468 = vmatprep.subr.mxu0 0.0
    %2469 = vmatpush1.msra.mxu0 %v2449
    %2470 = vmatprep.subr.mxu0 0.0
    %2471 = vmatpush1.msra.mxu0 %v2450
    %2472 = vmatprep.subr.mxu0 0.0
    %2473 = vmatpush1.msra.mxu0 %v2451
    %2474 = vmatprep.subr.mxu0 0.0
    %2475 = vmatpush1.msra.mxu0 %v2452
    %2476 = vmatprep.subr.mxu0 0.0
    %2477 = vmatpush1.msra.mxu0 %v2453
    %2478 = vmatprep.subr.mxu0 0.0
    %2479 = vmatpush1.msra.mxu0 %v2454
    %2480 = vmatprep.subr.mxu0 0.0
    %2481 = vmatpush1.msra.mxu0 %v2455
    %2482 = vmatprep.subr.mxu0 0.0
    %2483 = vmatpush1.msra.mxu0 0.0
    %2484 = vmatprep.subr.mxu0 0.0
    %2485 = vmatpush1.msra.mxu0 0.0
    %2486 = vmatprep.subr.mxu0 0.0
    %2487 = vmatpush1.msra.mxu0 0.0
    %2488 = vmatprep.subr.mxu0 0.0
    %2489 = vmatpush1.msra.mxu0 0.0
    %2490 = vmatprep.subr.mxu0 0.0
    %2491 = vmatpush1.msra.mxu0 0.0
    %2492 = vmatprep.subr.mxu0 0.0
    %2493 = vmatpush1.msra.mxu0 0.0
    %2494 = vmatprep.subr.mxu0 0.0
    %2495 = vmatpush1.msra.mxu0 0.0
    %2496 = vmatprep.subr.mxu0 0.0
    %2497 = vmatpush1.msra.mxu0 0.0
    %2498 = vmatprep.subr.mxu0 0.0
    %2499 = vmatpush1.msra.mxu0 0.0
    %2500 = vmatprep.subr.mxu0 0.0
    %2501 = vmatpush1.msra.mxu0 0.0
    %2502 = vmatprep.subr.mxu0 0.0
    %2503 = vmatpush1.msra.mxu0 0.0
    %2504 = vmatprep.subr.mxu0 0.0
    %2505 = vmatpush1.msra.mxu0 0.0
    %2506 = vmatprep.subr.mxu0 0.0
    %2507 = vmatpush1.msra.mxu0 0.0
    %2508 = vmatprep.subr.mxu0 0.0
    %2509 = vmatpush1.msra.mxu0 0.0
    %2510 = vmatprep.subr.mxu0 0.0
    %2511 = vmatpush1.msra.mxu0 0.0
    %2512 = vmatprep.subr.mxu0 0.0
    %2513 = vmatpush1.msra.mxu0 0.0
    %2514 = vmatprep.subr.mxu0 0.0
    %2515 = vmatpush1.msra.mxu0 0.0
    %2516 = vmatprep.subr.mxu0 0.0
    %2517 = vmatpush1.msra.mxu0 0.0
    %2518 = vmatprep.subr.mxu0 0.0
    %2519 = vmatpush1.msra.mxu0 0.0
    %2520 = vmatprep.subr.mxu0 0.0
    %2521 = vmatpush1.msra.mxu0 0.0
    %2522 = vmatprep.subr.mxu0 0.0
    %2523 = vmatpush1.msra.mxu0 0.0
    %2524 = vmatprep.subr.mxu0 0.0
    %2525 = vmatpush1.msra.mxu0 0.0
    %2526 = vmatprep.subr.mxu0 0.0
    %2527 = vmatpush1.msra.mxu0 0.0
    %2528 = vmatprep.subr.mxu0 0.0
    %2529 = vmatpush1.msra.mxu0 0.0
    %2530 = vmatprep.mubr.f32.mxu0 0.0
    %2531 = vmatmul.mubr.f32.gmra.mrb[0].mxu0 %v2461
    %v2532 = vpop.f32.mrb[0].mxu0
    %v2533 = vadd.f32 %v2459, %v2532
    %v2534 = vpop.f32.mrb[0].mxu0
    %2535 = vmatprep.mubr.f32.mxu0 0.0
    %2536 = vmatmul.mubr.f32.gmra.mrb[0].mxu0 %v2464
    %v2537 = vpop.f32.mrb[0].mxu0
    %v2538 = vadd.f32 %v2459, %v2537
    %v2539 = vpop.f32.mrb[0].mxu0
    %2540 = vdwg.mxu0
    %v2541 = vadd.f32 %v2339, %v2533
    %v2542 = vadd.f32 %v2340, %v2538
    %v2543 = vsel %vm352, %v2541, 0.0
    %2544 = vadd.xlane.f32.xlu0 %v2543
    %v2545 = vpop.xlane.xlu0 %2544
    %v2546 = vsel %vm352, %v2542, 0.0
    %2547 = vadd.xlane.f32.xlu0 %v2546
    %v2548 = vpop.xlane.xlu0 %2547
    %v2549 = vmul.f32 %v2545, %v359
    %v2550 = vmul.f32 %v2548, %v359
    %v2551 = vsub.f32 %v2541, %v2549
    %v2552 = vsub.f32 %v2542, %v2550
    %v2553 = vmul.f32 %v2551, %v2551
    %v2554 = vmul.f32 %v2552, %v2552
    %v2555 = vsel %vm352, %v2553, 0.0
    %2556 = vadd.xlane.f32.xlu0 %v2555
    %v2557 = vpop.xlane.xlu0 %2556
    %v2558 = vsel %vm352, %v2554, 0.0
    %2559 = vadd.xlane.f32.xlu0 %v2558
    %v2560 = vpop.xlane.xlu0 %2559
    %v2561 = vmul.f32 %v2557, %v359
    %v2562 = vmul.f32 %v2560, %v359
    %v2563 = vadd.f32 %v2561, 1e-05
    %v2564 = vadd.f32 %v2562, 1e-05
    %v2565 = vrsqrt.pop %v2563
    %v2566 = vrsqrt.pop %v2564
    %v2567 = vmul.f32 %v2551, %v2565
    %v2568 = vmul.f32 %v2552, %v2566
    %v2569 = vlaneseq
    %v2570 = vshrl.u32 %v2569, 7
    %v2571 = vsub.s32 6, %v2570
    %v2572 = vrot.slane %v577, %v2571
    %v2573 = vmul.f32 %v2567, %v2572
    %v2574 = vmul.f32 %v2568, %v2572
    %v2575 = vlaneseq
    %v2576 = vshrl.u32 %v2575, 7
    %v2577 = vsub.s32 7, %v2576
    %v2578 = vrot.slane %v577, %v2577
    %v2579 = vadd.f32 %v2573, %v2578
    %v2580 = vadd.f32 %v2574, %v2578
    %s2581 = scalar_lea.vmem %s9, 8
    %v2582 = vld [vmem:[%s2581] sm:$0xff]
    %s2583 = scalar_lea.vmem %s5, 32
    %v2584 = vld [vmem:[%s2583] sm:$0xff]
    %v2585 = vld [vmem:[%s2583 + $0x8] sm:$0xff]
    %v2586 = vld [vmem:[%s2583 + $0x10] sm:$0xff]
    %v2587 = vld [vmem:[%s2583 + $0x18] sm:$0xff]
    %v2588 = vlaneseq
    %v2589 = vshrl.u32 %v2588, 7
    %v2590 = vsub.s32 0, %v2589
    %v2591 = vrot.slane %v2582, %v2590
    %v2593 = vsel %vm352, %v2579, 0
    %v2596 = vsel %vm352, %v2580, 0
    %2598 = vmatprep.subr.mxu0 0.0
    %2599 = vmatpush1.msra.mxu0 %v2584
    %2600 = vmatprep.subr.mxu0 0.0
    %2601 = vmatpush1.msra.mxu0 %v2585
    %2602 = vmatprep.subr.mxu0 0.0
    %2603 = vmatpush1.msra.mxu0 %v2586
    %2604 = vmatprep.subr.mxu0 0.0
    %2605 = vmatpush1.msra.mxu0 %v2587
    %2606 = vmatprep.subr.mxu0 0.0
    %2607 = vmatpush1.msra.mxu0 0.0
    %2608 = vmatprep.subr.mxu0 0.0
    %2609 = vmatpush1.msra.mxu0 0.0
    %2610 = vmatprep.subr.mxu0 0.0
    %2611 = vmatpush1.msra.mxu0 0.0
    %2612 = vmatprep.subr.mxu0 0.0
    %2613 = vmatpush1.msra.mxu0 0.0
    %2614 = vmatprep.subr.mxu0 0.0
    %2615 = vmatpush1.msra.mxu0 0.0
    %2616 = vmatprep.subr.mxu0 0.0
    %2617 = vmatpush1.msra.mxu0 0.0
    %2618 = vmatprep.subr.mxu0 0.0
    %2619 = vmatpush1.msra.mxu0 0.0
    %2620 = vmatprep.subr.mxu0 0.0
    %2621 = vmatpush1.msra.mxu0 0.0
    %2622 = vmatprep.subr.mxu0 0.0
    %2623 = vmatpush1.msra.mxu0 0.0
    %2624 = vmatprep.subr.mxu0 0.0
    %2625 = vmatpush1.msra.mxu0 0.0
    %2626 = vmatprep.subr.mxu0 0.0
    %2627 = vmatpush1.msra.mxu0 0.0
    %2628 = vmatprep.subr.mxu0 0.0
    %2629 = vmatpush1.msra.mxu0 0.0
    %2630 = vmatprep.subr.mxu0 0.0
    %2631 = vmatpush1.msra.mxu0 0.0
    %2632 = vmatprep.subr.mxu0 0.0
    %2633 = vmatpush1.msra.mxu0 0.0
    %2634 = vmatprep.subr.mxu0 0.0
    %2635 = vmatpush1.msra.mxu0 0.0
    %2636 = vmatprep.subr.mxu0 0.0
    %2637 = vmatpush1.msra.mxu0 0.0
    %2638 = vmatprep.subr.mxu0 0.0
    %2639 = vmatpush1.msra.mxu0 0.0
    %2640 = vmatprep.subr.mxu0 0.0
    %2641 = vmatpush1.msra.mxu0 0.0
    %2642 = vmatprep.subr.mxu0 0.0
    %2643 = vmatpush1.msra.mxu0 0.0
    %2644 = vmatprep.subr.mxu0 0.0
    %2645 = vmatpush1.msra.mxu0 0.0
    %2646 = vmatprep.subr.mxu0 0.0
    %2647 = vmatpush1.msra.mxu0 0.0
    %2648 = vmatprep.subr.mxu0 0.0
    %2649 = vmatpush1.msra.mxu0 0.0
    %2650 = vmatprep.subr.mxu0 0.0
    %2651 = vmatpush1.msra.mxu0 0.0
    %2652 = vmatprep.subr.mxu0 0.0
    %2653 = vmatpush1.msra.mxu0 0.0
    %2654 = vmatprep.subr.mxu0 0.0
    %2655 = vmatpush1.msra.mxu0 0.0
    %2656 = vmatprep.subr.mxu0 0.0
    %2657 = vmatpush1.msra.mxu0 0.0
    %2658 = vmatprep.subr.mxu0 0.0
    %2659 = vmatpush1.msra.mxu0 0.0
    %2660 = vmatprep.subr.mxu0 0.0
    %2661 = vmatpush1.msra.mxu0 0.0
    %2662 = vmatprep.mubr.f32.mxu0 0.0
    %2663 = vmatmul.mubr.f32.gmra.mrb[0].mxu0 %v2593
    %v2664 = vpop.f32.mrb[0].mxu0
    %v2665 = vadd.f32 %v2591, %v2664
    %v2666 = vpop.f32.mrb[0].mxu0
    %2667 = vmatprep.mubr.f32.mxu0 0.0
    %2668 = vmatmul.mubr.f32.gmra.mrb[0].mxu0 %v2596
    %v2669 = vpop.f32.mrb[0].mxu0
    %v2670 = vadd.f32 %v2591, %v2669
    %v2671 = vpop.f32.mrb[0].mxu0
    %2672 = vdwg.mxu0
    %2675 = vrot.lane.b32.xlu0 %v2665, 120
    %v2676 = vpop.permute.xlu0 %2675
    %2677 = vrot.lane.b32.xlu0 %v2670, 120
    %v2678 = vpop.permute.xlu0 %2677
    %2679 = vrot.lane.b32.xlu0 %v2665, 112
    %v2680 = vpop.permute.xlu0 %2679
    %2681 = vrot.lane.b32.xlu0 %v2670, 112
    %v2682 = vpop.permute.xlu0 %2681
    %2683 = vrot.lane.b32.xlu0 %v2665, 104
    %v2684 = vpop.permute.xlu0 %2683
    %2685 = vrot.lane.b32.xlu0 %v2670, 104
    %v2686 = vpop.permute.xlu0 %2685
    %2687 = vrot.lane.b32.xlu0 %v2665, 96
    %v2688 = vpop.permute.xlu0 %2687
    %v2689 = vsel %vm82, %v2665, 0
    %v2691 = vsel %vm82, %v2688, 0
    %2693 = vmatprep.subr.mxu0 0.0
    %2694 = vmatpush1.xpose.msra.mxu0 %v2691
    %2695 = vmatprep.subr.mxu0 0.0
    %2696 = vmatpush1.xpose.msra.mxu0 0.0
    %2697 = vmatprep.subr.mxu0 0.0
    %2698 = vmatpush1.xpose.msra.mxu0 0.0
    %2699 = vmatprep.subr.mxu0 0.0
    %2700 = vmatpush1.xpose.msra.mxu0 0.0
    %2701 = vmatprep.subr.mxu0 0.0
    %2702 = vmatpush1.xpose.msra.mxu0 0.0
    %2703 = vmatprep.subr.mxu0 0.0
    %2704 = vmatpush1.xpose.msra.mxu0 0.0
    %2705 = vmatprep.subr.mxu0 0.0
    %2706 = vmatpush1.xpose.msra.mxu0 0.0
    %2707 = vmatprep.subr.mxu0 0.0
    %2708 = vmatpush1.xpose.msra.mxu0 0.0
    %2709 = vmatprep.subr.mxu0 0.0
    %2710 = vmatpush1.xpose.msra.mxu0 0.0
    %2711 = vmatprep.subr.mxu0 0.0
    %2712 = vmatpush1.xpose.msra.mxu0 0.0
    %2713 = vmatprep.subr.mxu0 0.0
    %2714 = vmatpush1.xpose.msra.mxu0 0.0
    %2715 = vmatprep.subr.mxu0 0.0
    %2716 = vmatpush1.xpose.msra.mxu0 0.0
    %2717 = vmatprep.subr.mxu0 0.0
    %2718 = vmatpush1.xpose.msra.mxu0 0.0
    %2719 = vmatprep.subr.mxu0 0.0
    %2720 = vmatpush1.xpose.msra.mxu0 0.0
    %2721 = vmatprep.subr.mxu0 0.0
    %2722 = vmatpush1.xpose.msra.mxu0 0.0
    %2723 = vmatprep.subr.mxu0 0.0
    %2724 = vmatpush1.xpose.msra.mxu0 0.0
    %2725 = vmatprep.subr.mxu0 0.0
    %2726 = vmatpush1.xpose.msra.mxu0 0.0
    %2727 = vmatprep.subr.mxu0 0.0
    %2728 = vmatpush1.xpose.msra.mxu0 0.0
    %2729 = vmatprep.subr.mxu0 0.0
    %2730 = vmatpush1.xpose.msra.mxu0 0.0
    %2731 = vmatprep.subr.mxu0 0.0
    %2732 = vmatpush1.xpose.msra.mxu0 0.0
    %2733 = vmatprep.subr.mxu0 0.0
    %2734 = vmatpush1.xpose.msra.mxu0 0.0
    %2735 = vmatprep.subr.mxu0 0.0
    %2736 = vmatpush1.xpose.msra.mxu0 0.0
    %2737 = vmatprep.subr.mxu0 0.0
    %2738 = vmatpush1.xpose.msra.mxu0 0.0
    %2739 = vmatprep.subr.mxu0 0.0
    %2740 = vmatpush1.xpose.msra.mxu0 0.0
    %2741 = vmatprep.subr.mxu0 0.0
    %2742 = vmatpush1.xpose.msra.mxu0 0.0
    %2743 = vmatprep.subr.mxu0 0.0
    %2744 = vmatpush1.xpose.msra.mxu0 0.0
    %2745 = vmatprep.subr.mxu0 0.0
    %2746 = vmatpush1.xpose.msra.mxu0 0.0
    %2747 = vmatprep.subr.mxu0 0.0
    %2748 = vmatpush1.xpose.msra.mxu0 0.0
    %2749 = vmatprep.subr.mxu0 0.0
    %2750 = vmatpush1.xpose.msra.mxu0 0.0
    %2751 = vmatprep.subr.mxu0 0.0
    %2752 = vmatpush1.xpose.msra.mxu0 0.0
    %2753 = vmatprep.subr.mxu0 0.0
    %2754 = vmatpush1.xpose.msra.mxu0 0.0
    %2755 = vmatprep.subr.mxu0 0.0
    %2756 = vmatpush1.xpose.msra.mxu0 0.0
    %2757 = vmatprep.mubr.f32.mxu0 0.0
    %2758 = vmatmul.mubr.f32.gmra.mrb[0].mxu0 %v2689
    %v2759 = vpop.f32.mrb[0].mxu0
    %v2760 = vadd.f32 %v540, %v2759
    %v2761 = vpop.f32.mrb[0].mxu0
    %2762 = vdwg.mxu0
    %2763 = vrot.lane.b32.xlu0 %v2670, 96
    %v2764 = vpop.permute.xlu0 %2763
    %v2765 = vsel %vm82, %v2670, 0
    %v2767 = vsel %vm82, %v2764, 0
    %2769 = vmatprep.subr.mxu0 0.0
    %2770 = vmatpush1.xpose.msra.mxu0 %v2767
    %2771 = vmatprep.subr.mxu0 0.0
    %2772 = vmatpush1.xpose.msra.mxu0 0.0
    %2773 = vmatprep.subr.mxu0 0.0
    %2774 = vmatpush1.xpose.msra.mxu0 0.0
    %2775 = vmatprep.subr.mxu0 0.0
    %2776 = vmatpush1.xpose.msra.mxu0 0.0
    %2777 = vmatprep.subr.mxu0 0.0
    %2778 = vmatpush1.xpose.msra.mxu0 0.0
    %2779 = vmatprep.subr.mxu0 0.0
    %2780 = vmatpush1.xpose.msra.mxu0 0.0
    %2781 = vmatprep.subr.mxu0 0.0
    %2782 = vmatpush1.xpose.msra.mxu0 0.0
    %2783 = vmatprep.subr.mxu0 0.0
    %2784 = vmatpush1.xpose.msra.mxu0 0.0
    %2785 = vmatprep.subr.mxu0 0.0
    %2786 = vmatpush1.xpose.msra.mxu0 0.0
    %2787 = vmatprep.subr.mxu0 0.0
    %2788 = vmatpush1.xpose.msra.mxu0 0.0
    %2789 = vmatprep.subr.mxu0 0.0
    %2790 = vmatpush1.xpose.msra.mxu0 0.0
    %2791 = vmatprep.subr.mxu0 0.0
    %2792 = vmatpush1.xpose.msra.mxu0 0.0
    %2793 = vmatprep.subr.mxu0 0.0
    %2794 = vmatpush1.xpose.msra.mxu0 0.0
    %2795 = vmatprep.subr.mxu0 0.0
    %2796 = vmatpush1.xpose.msra.mxu0 0.0
    %2797 = vmatprep.subr.mxu0 0.0
    %2798 = vmatpush1.xpose.msra.mxu0 0.0
    %2799 = vmatprep.subr.mxu0 0.0
    %2800 = vmatpush1.xpose.msra.mxu0 0.0
    %2801 = vmatprep.subr.mxu0 0.0
    %2802 = vmatpush1.xpose.msra.mxu0 0.0
    %2803 = vmatprep.subr.mxu0 0.0
    %2804 = vmatpush1.xpose.msra.mxu0 0.0
    %2805 = vmatprep.subr.mxu0 0.0
    %2806 = vmatpush1.xpose.msra.mxu0 0.0
    %2807 = vmatprep.subr.mxu0 0.0
    %2808 = vmatpush1.xpose.msra.mxu0 0.0
    %2809 = vmatprep.subr.mxu0 0.0
    %2810 = vmatpush1.xpose.msra.mxu0 0.0
    %2811 = vmatprep.subr.mxu0 0.0
    %2812 = vmatpush1.xpose.msra.mxu0 0.0
    %2813 = vmatprep.subr.mxu0 0.0
    %2814 = vmatpush1.xpose.msra.mxu0 0.0
    %2815 = vmatprep.subr.mxu0 0.0
    %2816 = vmatpush1.xpose.msra.mxu0 0.0
    %2817 = vmatprep.subr.mxu0 0.0
    %2818 = vmatpush1.xpose.msra.mxu0 0.0
    %2819 = vmatprep.subr.mxu0 0.0
    %2820 = vmatpush1.xpose.msra.mxu0 0.0
    %2821 = vmatprep.subr.mxu0 0.0
    %2822 = vmatpush1.xpose.msra.mxu0 0.0
    %2823 = vmatprep.subr.mxu0 0.0
    %2824 = vmatpush1.xpose.msra.mxu0 0.0
    %2825 = vmatprep.subr.mxu0 0.0
    %2826 = vmatpush1.xpose.msra.mxu0 0.0
    %2827 = vmatprep.subr.mxu0 0.0
    %2828 = vmatpush1.xpose.msra.mxu0 0.0
    %2829 = vmatprep.subr.mxu0 0.0
    %2830 = vmatpush1.xpose.msra.mxu0 0.0
    %2831 = vmatprep.subr.mxu0 0.0
    %2832 = vmatpush1.xpose.msra.mxu0 0.0
    %2833 = vmatprep.mubr.f32.mxu0 0.0
    %2834 = vmatmul.mubr.f32.gmra.mrb[0].mxu0 %v2765
    %v2835 = vpop.f32.mrb[0].mxu0
    %v2836 = vadd.f32 %v544, %v2835
    %v2837 = vpop.f32.mrb[0].mxu0
    %2838 = vdwg.mxu0
    %2839 = vrot.lane.b32.xlu0 %v2676, 96
    %v2840 = vpop.permute.xlu0 %2839
    %v2841 = vsel %vm82, %v2676, 0
    %v2843 = vsel %vm82, %v2840, 0
    %2845 = vmatprep.subr.mxu0 0.0
    %2846 = vmatpush1.xpose.msra.mxu0 %v2843
    %2847 = vmatprep.subr.mxu0 0.0
    %2848 = vmatpush1.xpose.msra.mxu0 0.0
    %2849 = vmatprep.subr.mxu0 0.0
    %2850 = vmatpush1.xpose.msra.mxu0 0.0
    %2851 = vmatprep.subr.mxu0 0.0
    %2852 = vmatpush1.xpose.msra.mxu0 0.0
    %2853 = vmatprep.subr.mxu0 0.0
    %2854 = vmatpush1.xpose.msra.mxu0 0.0
    %2855 = vmatprep.subr.mxu0 0.0
    %2856 = vmatpush1.xpose.msra.mxu0 0.0
    %2857 = vmatprep.subr.mxu0 0.0
    %2858 = vmatpush1.xpose.msra.mxu0 0.0
    %2859 = vmatprep.subr.mxu0 0.0
    %2860 = vmatpush1.xpose.msra.mxu0 0.0
    %2861 = vmatprep.subr.mxu0 0.0
    %2862 = vmatpush1.xpose.msra.mxu0 0.0
    %2863 = vmatprep.subr.mxu0 0.0
    %2864 = vmatpush1.xpose.msra.mxu0 0.0
    %2865 = vmatprep.subr.mxu0 0.0
    %2866 = vmatpush1.xpose.msra.mxu0 0.0
    %2867 = vmatprep.subr.mxu0 0.0
    %2868 = vmatpush1.xpose.msra.mxu0 0.0
    %2869 = vmatprep.subr.mxu0 0.0
    %2870 = vmatpush1.xpose.msra.mxu0 0.0
    %2871 = vmatprep.subr.mxu0 0.0
    %2872 = vmatpush1.xpose.msra.mxu0 0.0
    %2873 = vmatprep.subr.mxu0 0.0
    %2874 = vmatpush1.xpose.msra.mxu0 0.0
    %2875 = vmatprep.subr.mxu0 0.0
    %2876 = vmatpush1.xpose.msra.mxu0 0.0
    %2877 = vmatprep.subr.mxu0 0.0
    %2878 = vmatpush1.xpose.msra.mxu0 0.0
    %2879 = vmatprep.subr.mxu0 0.0
    %2880 = vmatpush1.xpose.msra.mxu0 0.0
    %2881 = vmatprep.subr.mxu0 0.0
    %2882 = vmatpush1.xpose.msra.mxu0 0.0
    %2883 = vmatprep.subr.mxu0 0.0
    %2884 = vmatpush1.xpose.msra.mxu0 0.0
    %2885 = vmatprep.subr.mxu0 0.0
    %2886 = vmatpush1.xpose.msra.mxu0 0.0
    %2887 = vmatprep.subr.mxu0 0.0
    %2888 = vmatpush1.xpose.msra.mxu0 0.0
    %2889 = vmatprep.subr.mxu0 0.0
    %2890 = vmatpush1.xpose.msra.mxu0 0.0
    %2891 = vmatprep.subr.mxu0 0.0
    %2892 = vmatpush1.xpose.msra.mxu0 0.0
    %2893 = vmatprep.subr.mxu0 0.0
    %2894 = vmatpush1.xpose.msra.mxu0 0.0
    %2895 = vmatprep.subr.mxu0 0.0
    %2896 = vmatpush1.xpose.msra.mxu0 0.0
    %2897 = vmatprep.subr.mxu0 0.0
    %2898 = vmatpush1.xpose.msra.mxu0 0.0
    %2899 = vmatprep.subr.mxu0 0.0
    %2900 = vmatpush1.xpose.msra.mxu0 0.0
    %2901 = vmatprep.subr.mxu0 0.0
    %2902 = vmatpush1.xpose.msra.mxu0 0.0
    %2903 = vmatprep.subr.mxu0 0.0
    %2904 = vmatpush1.xpose.msra.mxu0 0.0
    %2905 = vmatprep.subr.mxu0 0.0
    %2906 = vmatpush1.xpose.msra.mxu0 0.0
    %2907 = vmatprep.subr.mxu0 0.0
    %2908 = vmatpush1.xpose.msra.mxu0 0.0
    %2909 = vmatprep.mubr.f32.mxu0 0.0
    %2910 = vmatmul.mubr.f32.gmra.mrb[0].mxu0 %v2841
    %v2911 = vpop.f32.mrb[0].mxu0
    %v2912 = vadd.f32 %v548, %v2911
    %v2913 = vpop.f32.mrb[0].mxu0
    %2914 = vdwg.mxu0
    %2915 = vrot.lane.b32.xlu0 %v2678, 96
    %v2916 = vpop.permute.xlu0 %2915
    %v2917 = vsel %vm82, %v2678, 0
    %v2919 = vsel %vm82, %v2916, 0
    %2921 = vmatprep.subr.mxu0 0.0
    %2922 = vmatpush1.xpose.msra.mxu0 %v2919
    %2923 = vmatprep.subr.mxu0 0.0
    %2924 = vmatpush1.xpose.msra.mxu0 0.0
    %2925 = vmatprep.subr.mxu0 0.0
    %2926 = vmatpush1.xpose.msra.mxu0 0.0
    %2927 = vmatprep.subr.mxu0 0.0
    %2928 = vmatpush1.xpose.msra.mxu0 0.0
    %2929 = vmatprep.subr.mxu0 0.0
    %2930 = vmatpush1.xpose.msra.mxu0 0.0
    %2931 = vmatprep.subr.mxu0 0.0
    %2932 = vmatpush1.xpose.msra.mxu0 0.0
    %2933 = vmatprep.subr.mxu0 0.0
    %2934 = vmatpush1.xpose.msra.mxu0 0.0
    %2935 = vmatprep.subr.mxu0 0.0
    %2936 = vmatpush1.xpose.msra.mxu0 0.0
    %2937 = vmatprep.subr.mxu0 0.0
    %2938 = vmatpush1.xpose.msra.mxu0 0.0
    %2939 = vmatprep.subr.mxu0 0.0
    %2940 = vmatpush1.xpose.msra.mxu0 0.0
    %2941 = vmatprep.subr.mxu0 0.0
    %2942 = vmatpush1.xpose.msra.mxu0 0.0
    %2943 = vmatprep.subr.mxu0 0.0
    %2944 = vmatpush1.xpose.msra.mxu0 0.0
    %2945 = vmatprep.subr.mxu0 0.0
    %2946 = vmatpush1.xpose.msra.mxu0 0.0
    %2947 = vmatprep.subr.mxu0 0.0
    %2948 = vmatpush1.xpose.msra.mxu0 0.0
    %2949 = vmatprep.subr.mxu0 0.0
    %2950 = vmatpush1.xpose.msra.mxu0 0.0
    %2951 = vmatprep.subr.mxu0 0.0
    %2952 = vmatpush1.xpose.msra.mxu0 0.0
    %2953 = vmatprep.subr.mxu0 0.0
    %2954 = vmatpush1.xpose.msra.mxu0 0.0
    %2955 = vmatprep.subr.mxu0 0.0
    %2956 = vmatpush1.xpose.msra.mxu0 0.0
    %2957 = vmatprep.subr.mxu0 0.0
    %2958 = vmatpush1.xpose.msra.mxu0 0.0
    %2959 = vmatprep.subr.mxu0 0.0
    %2960 = vmatpush1.xpose.msra.mxu0 0.0
    %2961 = vmatprep.subr.mxu0 0.0
    %2962 = vmatpush1.xpose.msra.mxu0 0.0
    %2963 = vmatprep.subr.mxu0 0.0
    %2964 = vmatpush1.xpose.msra.mxu0 0.0
    %2965 = vmatprep.subr.mxu0 0.0
    %2966 = vmatpush1.xpose.msra.mxu0 0.0
    %2967 = vmatprep.subr.mxu0 0.0
    %2968 = vmatpush1.xpose.msra.mxu0 0.0
    %2969 = vmatprep.subr.mxu0 0.0
    %2970 = vmatpush1.xpose.msra.mxu0 0.0
    %2971 = vmatprep.subr.mxu0 0.0
    %2972 = vmatpush1.xpose.msra.mxu0 0.0
    %2973 = vmatprep.subr.mxu0 0.0
    %2974 = vmatpush1.xpose.msra.mxu0 0.0
    %2975 = vmatprep.subr.mxu0 0.0
    %2976 = vmatpush1.xpose.msra.mxu0 0.0
    %2977 = vmatprep.subr.mxu0 0.0
    %2978 = vmatpush1.xpose.msra.mxu0 0.0
    %2979 = vmatprep.subr.mxu0 0.0
    %2980 = vmatpush1.xpose.msra.mxu0 0.0
    %2981 = vmatprep.subr.mxu0 0.0
    %2982 = vmatpush1.xpose.msra.mxu0 0.0
    %2983 = vmatprep.subr.mxu0 0.0
    %2984 = vmatpush1.xpose.msra.mxu0 0.0
    %2985 = vmatprep.mubr.f32.mxu0 0.0
    %2986 = vmatmul.mubr.f32.gmra.mrb[0].mxu0 %v2917
    %v2987 = vpop.f32.mrb[0].mxu0
    %v2988 = vadd.f32 %v552, %v2987
    %v2989 = vpop.f32.mrb[0].mxu0
    %2990 = vdwg.mxu0
    %2991 = vrot.lane.b32.xlu0 %v2680, 96
    %v2992 = vpop.permute.xlu0 %2991
    %v2993 = vsel %vm82, %v2680, 0
    %v2995 = vsel %vm82, %v2992, 0
    %2997 = vmatprep.subr.mxu0 0.0
    %2998 = vmatpush1.xpose.msra.mxu0 %v2995
    %2999 = vmatprep.subr.mxu0 0.0
    %3000 = vmatpush1.xpose.msra.mxu0 0.0
    %3001 = vmatprep.subr.mxu0 0.0
    %3002 = vmatpush1.xpose.msra.mxu0 0.0
    %3003 = vmatprep.subr.mxu0 0.0
    %3004 = vmatpush1.xpose.msra.mxu0 0.0
    %3005 = vmatprep.subr.mxu0 0.0
    %3006 = vmatpush1.xpose.msra.mxu0 0.0
    %3007 = vmatprep.subr.mxu0 0.0
    %3008 = vmatpush1.xpose.msra.mxu0 0.0
    %3009 = vmatprep.subr.mxu0 0.0
    %3010 = vmatpush1.xpose.msra.mxu0 0.0
    %3011 = vmatprep.subr.mxu0 0.0
    %3012 = vmatpush1.xpose.msra.mxu0 0.0
    %3013 = vmatprep.subr.mxu0 0.0
    %3014 = vmatpush1.xpose.msra.mxu0 0.0
    %3015 = vmatprep.subr.mxu0 0.0
    %3016 = vmatpush1.xpose.msra.mxu0 0.0
    %3017 = vmatprep.subr.mxu0 0.0
    %3018 = vmatpush1.xpose.msra.mxu0 0.0
    %3019 = vmatprep.subr.mxu0 0.0
    %3020 = vmatpush1.xpose.msra.mxu0 0.0
    %3021 = vmatprep.subr.mxu0 0.0
    %3022 = vmatpush1.xpose.msra.mxu0 0.0
    %3023 = vmatprep.subr.mxu0 0.0
    %3024 = vmatpush1.xpose.msra.mxu0 0.0
    %3025 = vmatprep.subr.mxu0 0.0
    %3026 = vmatpush1.xpose.msra.mxu0 0.0
    %3027 = vmatprep.subr.mxu0 0.0
    %3028 = vmatpush1.xpose.msra.mxu0 0.0
    %3029 = vmatprep.subr.mxu0 0.0
    %3030 = vmatpush1.xpose.msra.mxu0 0.0
    %3031 = vmatprep.subr.mxu0 0.0
    %3032 = vmatpush1.xpose.msra.mxu0 0.0
    %3033 = vmatprep.subr.mxu0 0.0
    %3034 = vmatpush1.xpose.msra.mxu0 0.0
    %3035 = vmatprep.subr.mxu0 0.0
    %3036 = vmatpush1.xpose.msra.mxu0 0.0
    %3037 = vmatprep.subr.mxu0 0.0
    %3038 = vmatpush1.xpose.msra.mxu0 0.0
    %3039 = vmatprep.subr.mxu0 0.0
    %3040 = vmatpush1.xpose.msra.mxu0 0.0
    %3041 = vmatprep.subr.mxu0 0.0
    %3042 = vmatpush1.xpose.msra.mxu0 0.0
    %3043 = vmatprep.subr.mxu0 0.0
    %3044 = vmatpush1.xpose.msra.mxu0 0.0
    %3045 = vmatprep.subr.mxu0 0.0
    %3046 = vmatpush1.xpose.msra.mxu0 0.0
    %3047 = vmatprep.subr.mxu0 0.0
    %3048 = vmatpush1.xpose.msra.mxu0 0.0
    %3049 = vmatprep.subr.mxu0 0.0
    %3050 = vmatpush1.xpose.msra.mxu0 0.0
    %3051 = vmatprep.subr.mxu0 0.0
    %3052 = vmatpush1.xpose.msra.mxu0 0.0
    %3053 = vmatprep.subr.mxu0 0.0
    %3054 = vmatpush1.xpose.msra.mxu0 0.0
    %3055 = vmatprep.subr.mxu0 0.0
    %3056 = vmatpush1.xpose.msra.mxu0 0.0
    %3057 = vmatprep.subr.mxu0 0.0
    %3058 = vmatpush1.xpose.msra.mxu0 0.0
    %3059 = vmatprep.subr.mxu0 0.0
    %3060 = vmatpush1.xpose.msra.mxu0 0.0
    %3061 = vmatprep.mubr.f32.mxu0 0.0
    %3062 = vmatmul.mubr.f32.gmra.mrb[0].mxu0 %v2993
    %v3063 = vpop.f32.mrb[0].mxu0
    %v3064 = vadd.f32 %v556, %v3063
    %v3065 = vpop.f32.mrb[0].mxu0
    %3066 = vdwg.mxu0
    %3067 = vrot.lane.b32.xlu0 %v2682, 96
    %v3068 = vpop.permute.xlu0 %3067
    %v3069 = vsel %vm82, %v2682, 0
    %v3071 = vsel %vm82, %v3068, 0
    %3073 = vmatprep.subr.mxu0 0.0
    %3074 = vmatpush1.xpose.msra.mxu0 %v3071
    %3075 = vmatprep.subr.mxu0 0.0
    %3076 = vmatpush1.xpose.msra.mxu0 0.0
    %3077 = vmatprep.subr.mxu0 0.0
    %3078 = vmatpush1.xpose.msra.mxu0 0.0
    %3079 = vmatprep.subr.mxu0 0.0
    %3080 = vmatpush1.xpose.msra.mxu0 0.0
    %3081 = vmatprep.subr.mxu0 0.0
    %3082 = vmatpush1.xpose.msra.mxu0 0.0
    %3083 = vmatprep.subr.mxu0 0.0
    %3084 = vmatpush1.xpose.msra.mxu0 0.0
    %3085 = vmatprep.subr.mxu0 0.0
    %3086 = vmatpush1.xpose.msra.mxu0 0.0
    %3087 = vmatprep.subr.mxu0 0.0
    %3088 = vmatpush1.xpose.msra.mxu0 0.0
    %3089 = vmatprep.subr.mxu0 0.0
    %3090 = vmatpush1.xpose.msra.mxu0 0.0
    %3091 = vmatprep.subr.mxu0 0.0
    %3092 = vmatpush1.xpose.msra.mxu0 0.0
    %3093 = vmatprep.subr.mxu0 0.0
    %3094 = vmatpush1.xpose.msra.mxu0 0.0
    %3095 = vmatprep.subr.mxu0 0.0
    %3096 = vmatpush1.xpose.msra.mxu0 0.0
    %3097 = vmatprep.subr.mxu0 0.0
    %3098 = vmatpush1.xpose.msra.mxu0 0.0
    %3099 = vmatprep.subr.mxu0 0.0
    %3100 = vmatpush1.xpose.msra.mxu0 0.0
    %3101 = vmatprep.subr.mxu0 0.0
    %3102 = vmatpush1.xpose.msra.mxu0 0.0
    %3103 = vmatprep.subr.mxu0 0.0
    %3104 = vmatpush1.xpose.msra.mxu0 0.0
    %3105 = vmatprep.subr.mxu0 0.0
    %3106 = vmatpush1.xpose.msra.mxu0 0.0
    %3107 = vmatprep.subr.mxu0 0.0
    %3108 = vmatpush1.xpose.msra.mxu0 0.0
    %3109 = vmatprep.subr.mxu0 0.0
    %3110 = vmatpush1.xpose.msra.mxu0 0.0
    %3111 = vmatprep.subr.mxu0 0.0
    %3112 = vmatpush1.xpose.msra.mxu0 0.0
    %3113 = vmatprep.subr.mxu0 0.0
    %3114 = vmatpush1.xpose.msra.mxu0 0.0
    %3115 = vmatprep.subr.mxu0 0.0
    %3116 = vmatpush1.xpose.msra.mxu0 0.0
    %3117 = vmatprep.subr.mxu0 0.0
    %3118 = vmatpush1.xpose.msra.mxu0 0.0
    %3119 = vmatprep.subr.mxu0 0.0
    %3120 = vmatpush1.xpose.msra.mxu0 0.0
    %3121 = vmatprep.subr.mxu0 0.0
    %3122 = vmatpush1.xpose.msra.mxu0 0.0
    %3123 = vmatprep.subr.mxu0 0.0
    %3124 = vmatpush1.xpose.msra.mxu0 0.0
    %3125 = vmatprep.subr.mxu0 0.0
    %3126 = vmatpush1.xpose.msra.mxu0 0.0
    %3127 = vmatprep.subr.mxu0 0.0
    %3128 = vmatpush1.xpose.msra.mxu0 0.0
    %3129 = vmatprep.subr.mxu0 0.0
    %3130 = vmatpush1.xpose.msra.mxu0 0.0
    %3131 = vmatprep.subr.mxu0 0.0
    %3132 = vmatpush1.xpose.msra.mxu0 0.0
    %3133 = vmatprep.subr.mxu0 0.0
    %3134 = vmatpush1.xpose.msra.mxu0 0.0
    %3135 = vmatprep.subr.mxu0 0.0
    %3136 = vmatpush1.xpose.msra.mxu0 0.0
    %3137 = vmatprep.mubr.f32.mxu0 0.0
    %3138 = vmatmul.mubr.f32.gmra.mrb[0].mxu0 %v3069
    %v3139 = vpop.f32.mrb[0].mxu0
    %v3140 = vadd.f32 %v560, %v3139
    %v3141 = vpop.f32.mrb[0].mxu0
    %3142 = vdwg.mxu0
    %3143 = vrot.lane.b32.xlu0 %v2684, 96
    %v3144 = vpop.permute.xlu0 %3143
    %v3145 = vsel %vm82, %v2684, 0
    %v3147 = vsel %vm82, %v3144, 0
    %3149 = vmatprep.subr.mxu0 0.0
    %3150 = vmatpush1.xpose.msra.mxu0 %v3147
    %3151 = vmatprep.subr.mxu0 0.0
    %3152 = vmatpush1.xpose.msra.mxu0 0.0
    %3153 = vmatprep.subr.mxu0 0.0
    %3154 = vmatpush1.xpose.msra.mxu0 0.0
    %3155 = vmatprep.subr.mxu0 0.0
    %3156 = vmatpush1.xpose.msra.mxu0 0.0
    %3157 = vmatprep.subr.mxu0 0.0
    %3158 = vmatpush1.xpose.msra.mxu0 0.0
    %3159 = vmatprep.subr.mxu0 0.0
    %3160 = vmatpush1.xpose.msra.mxu0 0.0
    %3161 = vmatprep.subr.mxu0 0.0
    %3162 = vmatpush1.xpose.msra.mxu0 0.0
    %3163 = vmatprep.subr.mxu0 0.0
    %3164 = vmatpush1.xpose.msra.mxu0 0.0
    %3165 = vmatprep.subr.mxu0 0.0
    %3166 = vmatpush1.xpose.msra.mxu0 0.0
    %3167 = vmatprep.subr.mxu0 0.0
    %3168 = vmatpush1.xpose.msra.mxu0 0.0
    %3169 = vmatprep.subr.mxu0 0.0
    %3170 = vmatpush1.xpose.msra.mxu0 0.0
    %3171 = vmatprep.subr.mxu0 0.0
    %3172 = vmatpush1.xpose.msra.mxu0 0.0
    %3173 = vmatprep.subr.mxu0 0.0
    %3174 = vmatpush1.xpose.msra.mxu0 0.0
    %3175 = vmatprep.subr.mxu0 0.0
    %3176 = vmatpush1.xpose.msra.mxu0 0.0
    %3177 = vmatprep.subr.mxu0 0.0
    %3178 = vmatpush1.xpose.msra.mxu0 0.0
    %3179 = vmatprep.subr.mxu0 0.0
    %3180 = vmatpush1.xpose.msra.mxu0 0.0
    %3181 = vmatprep.subr.mxu0 0.0
    %3182 = vmatpush1.xpose.msra.mxu0 0.0
    %3183 = vmatprep.subr.mxu0 0.0
    %3184 = vmatpush1.xpose.msra.mxu0 0.0
    %3185 = vmatprep.subr.mxu0 0.0
    %3186 = vmatpush1.xpose.msra.mxu0 0.0
    %3187 = vmatprep.subr.mxu0 0.0
    %3188 = vmatpush1.xpose.msra.mxu0 0.0
    %3189 = vmatprep.subr.mxu0 0.0
    %3190 = vmatpush1.xpose.msra.mxu0 0.0
    %3191 = vmatprep.subr.mxu0 0.0
    %3192 = vmatpush1.xpose.msra.mxu0 0.0
    %3193 = vmatprep.subr.mxu0 0.0
    %3194 = vmatpush1.xpose.msra.mxu0 0.0
    %3195 = vmatprep.subr.mxu0 0.0
    %3196 = vmatpush1.xpose.msra.mxu0 0.0
    %3197 = vmatprep.subr.mxu0 0.0
    %3198 = vmatpush1.xpose.msra.mxu0 0.0
    %3199 = vmatprep.subr.mxu0 0.0
    %3200 = vmatpush1.xpose.msra.mxu0 0.0
    %3201 = vmatprep.subr.mxu0 0.0
    %3202 = vmatpush1.xpose.msra.mxu0 0.0
    %3203 = vmatprep.subr.mxu0 0.0
    %3204 = vmatpush1.xpose.msra.mxu0 0.0
    %3205 = vmatprep.subr.mxu0 0.0
    %3206 = vmatpush1.xpose.msra.mxu0 0.0
    %3207 = vmatprep.subr.mxu0 0.0
    %3208 = vmatpush1.xpose.msra.mxu0 0.0
    %3209 = vmatprep.subr.mxu0 0.0
    %3210 = vmatpush1.xpose.msra.mxu0 0.0
    %3211 = vmatprep.subr.mxu0 0.0
    %3212 = vmatpush1.xpose.msra.mxu0 0.0
    %3213 = vmatprep.mubr.f32.mxu0 0.0
    %3214 = vmatmul.mubr.f32.gmra.mrb[0].mxu0 %v3145
    %v3215 = vpop.f32.mrb[0].mxu0
    %v3216 = vadd.f32 %v564, %v3215
    %v3217 = vpop.f32.mrb[0].mxu0
    %3218 = vdwg.mxu0
    %3219 = vrot.lane.b32.xlu0 %v2686, 96
    %v3220 = vpop.permute.xlu0 %3219
    %v3221 = vsel %vm82, %v2686, 0
    %v3223 = vsel %vm82, %v3220, 0
    %3225 = vmatprep.subr.mxu0 0.0
    %3226 = vmatpush1.xpose.msra.mxu0 %v3223
    %3227 = vmatprep.subr.mxu0 0.0
    %3228 = vmatpush1.xpose.msra.mxu0 0.0
    %3229 = vmatprep.subr.mxu0 0.0
    %3230 = vmatpush1.xpose.msra.mxu0 0.0
    %3231 = vmatprep.subr.mxu0 0.0
    %3232 = vmatpush1.xpose.msra.mxu0 0.0
    %3233 = vmatprep.subr.mxu0 0.0
    %3234 = vmatpush1.xpose.msra.mxu0 0.0
    %3235 = vmatprep.subr.mxu0 0.0
    %3236 = vmatpush1.xpose.msra.mxu0 0.0
    %3237 = vmatprep.subr.mxu0 0.0
    %3238 = vmatpush1.xpose.msra.mxu0 0.0
    %3239 = vmatprep.subr.mxu0 0.0
    %3240 = vmatpush1.xpose.msra.mxu0 0.0
    %3241 = vmatprep.subr.mxu0 0.0
    %3242 = vmatpush1.xpose.msra.mxu0 0.0
    %3243 = vmatprep.subr.mxu0 0.0
    %3244 = vmatpush1.xpose.msra.mxu0 0.0
    %3245 = vmatprep.subr.mxu0 0.0
    %3246 = vmatpush1.xpose.msra.mxu0 0.0
    %3247 = vmatprep.subr.mxu0 0.0
    %3248 = vmatpush1.xpose.msra.mxu0 0.0
    %3249 = vmatprep.subr.mxu0 0.0
    %3250 = vmatpush1.xpose.msra.mxu0 0.0
    %3251 = vmatprep.subr.mxu0 0.0
    %3252 = vmatpush1.xpose.msra.mxu0 0.0
    %3253 = vmatprep.subr.mxu0 0.0
    %3254 = vmatpush1.xpose.msra.mxu0 0.0
    %3255 = vmatprep.subr.mxu0 0.0
    %3256 = vmatpush1.xpose.msra.mxu0 0.0
    %3257 = vmatprep.subr.mxu0 0.0
    %3258 = vmatpush1.xpose.msra.mxu0 0.0
    %3259 = vmatprep.subr.mxu0 0.0
    %3260 = vmatpush1.xpose.msra.mxu0 0.0
    %3261 = vmatprep.subr.mxu0 0.0
    %3262 = vmatpush1.xpose.msra.mxu0 0.0
    %3263 = vmatprep.subr.mxu0 0.0
    %3264 = vmatpush1.xpose.msra.mxu0 0.0
    %3265 = vmatprep.subr.mxu0 0.0
    %3266 = vmatpush1.xpose.msra.mxu0 0.0
    %3267 = vmatprep.subr.mxu0 0.0
    %3268 = vmatpush1.xpose.msra.mxu0 0.0
    %3269 = vmatprep.subr.mxu0 0.0
    %3270 = vmatpush1.xpose.msra.mxu0 0.0
    %3271 = vmatprep.subr.mxu0 0.0
    %3272 = vmatpush1.xpose.msra.mxu0 0.0
    %3273 = vmatprep.subr.mxu0 0.0
    %3274 = vmatpush1.xpose.msra.mxu0 0.0
    %3275 = vmatprep.subr.mxu0 0.0
    %3276 = vmatpush1.xpose.msra.mxu0 0.0
    %3277 = vmatprep.subr.mxu0 0.0
    %3278 = vmatpush1.xpose.msra.mxu0 0.0
    %3279 = vmatprep.subr.mxu0 0.0
    %3280 = vmatpush1.xpose.msra.mxu0 0.0
    %3281 = vmatprep.subr.mxu0 0.0
    %3282 = vmatpush1.xpose.msra.mxu0 0.0
    %3283 = vmatprep.subr.mxu0 0.0
    %3284 = vmatpush1.xpose.msra.mxu0 0.0
    %3285 = vmatprep.subr.mxu0 0.0
    %3286 = vmatpush1.xpose.msra.mxu0 0.0
    %3287 = vmatprep.subr.mxu0 0.0
    %3288 = vmatpush1.xpose.msra.mxu0 0.0
    %3289 = vmatprep.mubr.f32.mxu0 0.0
    %3290 = vmatmul.mubr.f32.gmra.mrb[0].mxu0 %v3221
    %v3291 = vpop.f32.mrb[0].mxu0
    %v3292 = vadd.f32 %v568, %v3291
    %v3293 = vpop.f32.mrb[0].mxu0
    %3294 = vdwg.mxu0
    %v3295 = vmul.f32 %v2760, 1.442695
    %v3296 = vpow.pop %v3295
    %v3297 = vmul.f32 %v2836, 1.442695
    %v3298 = vpow.pop %v3297
    %v3299 = vmul.f32 %v2912, 1.442695
    %v3300 = vpow.pop %v3299
    %v3301 = vmul.f32 %v2988, 1.442695
    %v3302 = vpow.pop %v3301
    %v3303 = vmul.f32 %v3064, 1.442695
    %v3304 = vpow.pop %v3303
    %v3305 = vmul.f32 %v3140, 1.442695
    %v3306 = vpow.pop %v3305
    %v3307 = vmul.f32 %v3216, 1.442695
    %v3308 = vpow.pop %v3307
    %v3309 = vmul.f32 %v3292, 1.442695
    %v3310 = vpow.pop %v3309
    %v3311 = vsel %vm82, %v3296, 0.0
    %3312 = vadd.xlane.f32.xlu0 %v3311
    %v3313 = vpop.xlane.xlu0 %3312
    %v3314 = vsel %vm82, %v3298, 0.0
    %3315 = vadd.xlane.f32.xlu0 %v3314
    %v3316 = vpop.xlane.xlu0 %3315
    %v3317 = vsel %vm82, %v3300, 0.0
    %3318 = vadd.xlane.f32.xlu0 %v3317
    %v3319 = vpop.xlane.xlu0 %3318
    %v3320 = vsel %vm82, %v3302, 0.0
    %3321 = vadd.xlane.f32.xlu0 %v3320
    %v3322 = vpop.xlane.xlu0 %3321
    %v3323 = vsel %vm82, %v3304, 0.0
    %3324 = vadd.xlane.f32.xlu0 %v3323
    %v3325 = vpop.xlane.xlu0 %3324
    %v3326 = vsel %vm82, %v3306, 0.0
    %3327 = vadd.xlane.f32.xlu0 %v3326
    %v3328 = vpop.xlane.xlu0 %3327
    %v3329 = vsel %vm82, %v3308, 0.0
    %3330 = vadd.xlane.f32.xlu0 %v3329
    %v3331 = vpop.xlane.xlu0 %3330
    %v3332 = vsel %vm82, %v3310, 0.0
    %3333 = vadd.xlane.f32.xlu0 %v3332
    %v3334 = vpop.xlane.xlu0 %3333
    %v3335 = vrcp.pop %v3313
    %v3336 = vrcp.pop %v3316
    %v3337 = vrcp.pop %v3319
    %v3338 = vrcp.pop %v3322
    %v3339 = vrcp.pop %v3325
    %v3340 = vrcp.pop %v3328
    %v3341 = vrcp.pop %v3331
    %v3342 = vrcp.pop %v3334
    %v3343 = vmul.f32 %v3296, %v3335
    %v3344 = vmul.f32 %v3298, %v3336
    %v3345 = vmul.f32 %v3300, %v3337
    %v3346 = vmul.f32 %v3302, %v3338
    %v3347 = vmul.f32 %v3304, %v3339
    %v3348 = vmul.f32 %v3306, %v3340
    %v3349 = vmul.f32 %v3308, %v3341
    %v3350 = vmul.f32 %v3310, %v3342
    %3351 = vrot.lane.b32.xlu0 %v2665, 64
    %v3352 = vpop.permute.xlu0 %3351
    %v3355 = vsel %vm82, %v3343, 0
    %3357 = vmatprep.subr.mxu0 0.0
    %3358 = vmatpush1.msra.mxu0 %v3352
    %3359 = vmatprep.subr.mxu0 0.0
    %3360 = vmatpush1.msra.mxu0 0.0
    %3361 = vmatprep.subr.mxu0 0.0
    %3362 = vmatpush1.msra.mxu0 0.0
    %3363 = vmatprep.subr.mxu0 0.0
    %3364 = vmatpush1.msra.mxu0 0.0
    %3365 = vmatprep.subr.mxu0 0.0
    %3366 = vmatpush1.msra.mxu0 0.0
    %3367 = vmatprep.subr.mxu0 0.0
    %3368 = vmatpush1.msra.mxu0 0.0
    %3369 = vmatprep.subr.mxu0 0.0
    %3370 = vmatpush1.msra.mxu0 0.0
    %3371 = vmatprep.subr.mxu0 0.0
    %3372 = vmatpush1.msra.mxu0 0.0
    %3373 = vmatprep.subr.mxu0 0.0
    %3374 = vmatpush1.msra.mxu0 0.0
    %3375 = vmatprep.subr.mxu0 0.0
    %3376 = vmatpush1.msra.mxu0 0.0
    %3377 = vmatprep.subr.mxu0 0.0
    %3378 = vmatpush1.msra.mxu0 0.0
    %3379 = vmatprep.subr.mxu0 0.0
    %3380 = vmatpush1.msra.mxu0 0.0
    %3381 = vmatprep.subr.mxu0 0.0
    %3382 = vmatpush1.msra.mxu0 0.0
    %3383 = vmatprep.subr.mxu0 0.0
    %3384 = vmatpush1.msra.mxu0 0.0
    %3385 = vmatprep.subr.mxu0 0.0
    %3386 = vmatpush1.msra.mxu0 0.0
    %3387 = vmatprep.subr.mxu0 0.0
    %3388 = vmatpush1.msra.mxu0 0.0
    %3389 = vmatprep.subr.mxu0 0.0
    %3390 = vmatpush1.msra.mxu0 0.0
    %3391 = vmatprep.subr.mxu0 0.0
    %3392 = vmatpush1.msra.mxu0 0.0
    %3393 = vmatprep.subr.mxu0 0.0
    %3394 = vmatpush1.msra.mxu0 0.0
    %3395 = vmatprep.subr.mxu0 0.0
    %3396 = vmatpush1.msra.mxu0 0.0
    %3397 = vmatprep.subr.mxu0 0.0
    %3398 = vmatpush1.msra.mxu0 0.0
    %3399 = vmatprep.subr.mxu0 0.0
    %3400 = vmatpush1.msra.mxu0 0.0
    %3401 = vmatprep.subr.mxu0 0.0
    %3402 = vmatpush1.msra.mxu0 0.0
    %3403 = vmatprep.subr.mxu0 0.0
    %3404 = vmatpush1.msra.mxu0 0.0
    %3405 = vmatprep.subr.mxu0 0.0
    %3406 = vmatpush1.msra.mxu0 0.0
    %3407 = vmatprep.subr.mxu0 0.0
    %3408 = vmatpush1.msra.mxu0 0.0
    %3409 = vmatprep.subr.mxu0 0.0
    %3410 = vmatpush1.msra.mxu0 0.0
    %3411 = vmatprep.subr.mxu0 0.0
    %3412 = vmatpush1.msra.mxu0 0.0
    %3413 = vmatprep.subr.mxu0 0.0
    %3414 = vmatpush1.msra.mxu0 0.0
    %3415 = vmatprep.subr.mxu0 0.0
    %3416 = vmatpush1.msra.mxu0 0.0
    %3417 = vmatprep.subr.mxu0 0.0
    %3418 = vmatpush1.msra.mxu0 0.0
    %3419 = vmatprep.subr.mxu0 0.0
    %3420 = vmatpush1.msra.mxu0 0.0
    %3421 = vmatprep.mubr.f32.mxu0 0.0
    %3422 = vmatmul.mubr.f32.gmra.mrb[0].mxu0 %v3355
    %v3423 = vpop.f32.mrb[0].mxu0
    %v3424 = vadd.f32 0.0, %v3423
    %v3425 = vpop.f32.mrb[0].mxu0
    %3426 = vdwg.mxu0
    %3427 = vrot.lane.b32.xlu0 %v2670, 64
    %v3428 = vpop.permute.xlu0 %3427
    %v3431 = vsel %vm82, %v3344, 0
    %3433 = vmatprep.subr.mxu0 0.0
    %3434 = vmatpush1.msra.mxu0 %v3428
    %3435 = vmatprep.subr.mxu0 0.0
    %3436 = vmatpush1.msra.mxu0 0.0
    %3437 = vmatprep.subr.mxu0 0.0
    %3438 = vmatpush1.msra.mxu0 0.0
    %3439 = vmatprep.subr.mxu0 0.0
    %3440 = vmatpush1.msra.mxu0 0.0
    %3441 = vmatprep.subr.mxu0 0.0
    %3442 = vmatpush1.msra.mxu0 0.0
    %3443 = vmatprep.subr.mxu0 0.0
    %3444 = vmatpush1.msra.mxu0 0.0
    %3445 = vmatprep.subr.mxu0 0.0
    %3446 = vmatpush1.msra.mxu0 0.0
    %3447 = vmatprep.subr.mxu0 0.0
    %3448 = vmatpush1.msra.mxu0 0.0
    %3449 = vmatprep.subr.mxu0 0.0
    %3450 = vmatpush1.msra.mxu0 0.0
    %3451 = vmatprep.subr.mxu0 0.0
    %3452 = vmatpush1.msra.mxu0 0.0
    %3453 = vmatprep.subr.mxu0 0.0
    %3454 = vmatpush1.msra.mxu0 0.0
    %3455 = vmatprep.subr.mxu0 0.0
    %3456 = vmatpush1.msra.mxu0 0.0
    %3457 = vmatprep.subr.mxu0 0.0
    %3458 = vmatpush1.msra.mxu0 0.0
    %3459 = vmatprep.subr.mxu0 0.0
    %3460 = vmatpush1.msra.mxu0 0.0
    %3461 = vmatprep.subr.mxu0 0.0
    %3462 = vmatpush1.msra.mxu0 0.0
    %3463 = vmatprep.subr.mxu0 0.0
    %3464 = vmatpush1.msra.mxu0 0.0
    %3465 = vmatprep.subr.mxu0 0.0
    %3466 = vmatpush1.msra.mxu0 0.0
    %3467 = vmatprep.subr.mxu0 0.0
    %3468 = vmatpush1.msra.mxu0 0.0
    %3469 = vmatprep.subr.mxu0 0.0
    %3470 = vmatpush1.msra.mxu0 0.0
    %3471 = vmatprep.subr.mxu0 0.0
    %3472 = vmatpush1.msra.mxu0 0.0
    %3473 = vmatprep.subr.mxu0 0.0
    %3474 = vmatpush1.msra.mxu0 0.0
    %3475 = vmatprep.subr.mxu0 0.0
    %3476 = vmatpush1.msra.mxu0 0.0
    %3477 = vmatprep.subr.mxu0 0.0
    %3478 = vmatpush1.msra.mxu0 0.0
    %3479 = vmatprep.subr.mxu0 0.0
    %3480 = vmatpush1.msra.mxu0 0.0
    %3481 = vmatprep.subr.mxu0 0.0
    %3482 = vmatpush1.msra.mxu0 0.0
    %3483 = vmatprep.subr.mxu0 0.0
    %3484 = vmatpush1.msra.mxu0 0.0
    %3485 = vmatprep.subr.mxu0 0.0
    %3486 = vmatpush1.msra.mxu0 0.0
    %3487 = vmatprep.subr.mxu0 0.0
    %3488 = vmatpush1.msra.mxu0 0.0
    %3489 = vmatprep.subr.mxu0 0.0
    %3490 = vmatpush1.msra.mxu0 0.0
    %3491 = vmatprep.subr.mxu0 0.0
    %3492 = vmatpush1.msra.mxu0 0.0
    %3493 = vmatprep.subr.mxu0 0.0
    %3494 = vmatpush1.msra.mxu0 0.0
    %3495 = vmatprep.subr.mxu0 0.0
    %3496 = vmatpush1.msra.mxu0 0.0
    %3497 = vmatprep.mubr.f32.mxu0 0.0
    %3498 = vmatmul.mubr.f32.gmra.mrb[0].mxu0 %v3431
    %v3499 = vpop.f32.mrb[0].mxu0
    %v3500 = vadd.f32 0.0, %v3499
    %v3501 = vpop.f32.mrb[0].mxu0
    %3502 = vdwg.mxu0
    %3503 = vrot.lane.b32.xlu0 %v2676, 64
    %v3504 = vpop.permute.xlu0 %3503
    %v3507 = vsel %vm82, %v3345, 0
    %3509 = vmatprep.subr.mxu0 0.0
    %3510 = vmatpush1.msra.mxu0 %v3504
    %3511 = vmatprep.subr.mxu0 0.0
    %3512 = vmatpush1.msra.mxu0 0.0
    %3513 = vmatprep.subr.mxu0 0.0
    %3514 = vmatpush1.msra.mxu0 0.0
    %3515 = vmatprep.subr.mxu0 0.0
    %3516 = vmatpush1.msra.mxu0 0.0
    %3517 = vmatprep.subr.mxu0 0.0
    %3518 = vmatpush1.msra.mxu0 0.0
    %3519 = vmatprep.subr.mxu0 0.0
    %3520 = vmatpush1.msra.mxu0 0.0
    %3521 = vmatprep.subr.mxu0 0.0
    %3522 = vmatpush1.msra.mxu0 0.0
    %3523 = vmatprep.subr.mxu0 0.0
    %3524 = vmatpush1.msra.mxu0 0.0
    %3525 = vmatprep.subr.mxu0 0.0
    %3526 = vmatpush1.msra.mxu0 0.0
    %3527 = vmatprep.subr.mxu0 0.0
    %3528 = vmatpush1.msra.mxu0 0.0
    %3529 = vmatprep.subr.mxu0 0.0
    %3530 = vmatpush1.msra.mxu0 0.0
    %3531 = vmatprep.subr.mxu0 0.0
    %3532 = vmatpush1.msra.mxu0 0.0
    %3533 = vmatprep.subr.mxu0 0.0
    %3534 = vmatpush1.msra.mxu0 0.0
    %3535 = vmatprep.subr.mxu0 0.0
    %3536 = vmatpush1.msra.mxu0 0.0
    %3537 = vmatprep.subr.mxu0 0.0
    %3538 = vmatpush1.msra.mxu0 0.0
    %3539 = vmatprep.subr.mxu0 0.0
    %3540 = vmatpush1.msra.mxu0 0.0
    %3541 = vmatprep.subr.mxu0 0.0
    %3542 = vmatpush1.msra.mxu0 0.0
    %3543 = vmatprep.subr.mxu0 0.0
    %3544 = vmatpush1.msra.mxu0 0.0
    %3545 = vmatprep.subr.mxu0 0.0
    %3546 = vmatpush1.msra.mxu0 0.0
    %3547 = vmatprep.subr.mxu0 0.0
    %3548 = vmatpush1.msra.mxu0 0.0
    %3549 = vmatprep.subr.mxu0 0.0
    %3550 = vmatpush1.msra.mxu0 0.0
    %3551 = vmatprep.subr.mxu0 0.0
    %3552 = vmatpush1.msra.mxu0 0.0
    %3553 = vmatprep.subr.mxu0 0.0
    %3554 = vmatpush1.msra.mxu0 0.0
    %3555 = vmatprep.subr.mxu0 0.0
    %3556 = vmatpush1.msra.mxu0 0.0
    %3557 = vmatprep.subr.mxu0 0.0
    %3558 = vmatpush1.msra.mxu0 0.0
    %3559 = vmatprep.subr.mxu0 0.0
    %3560 = vmatpush1.msra.mxu0 0.0
    %3561 = vmatprep.subr.mxu0 0.0
    %3562 = vmatpush1.msra.mxu0 0.0
    %3563 = vmatprep.subr.mxu0 0.0
    %3564 = vmatpush1.msra.mxu0 0.0
    %3565 = vmatprep.subr.mxu0 0.0
    %3566 = vmatpush1.msra.mxu0 0.0
    %3567 = vmatprep.subr.mxu0 0.0
    %3568 = vmatpush1.msra.mxu0 0.0
    %3569 = vmatprep.subr.mxu0 0.0
    %3570 = vmatpush1.msra.mxu0 0.0
    %3571 = vmatprep.subr.mxu0 0.0
    %3572 = vmatpush1.msra.mxu0 0.0
    %3573 = vmatprep.mubr.f32.mxu0 0.0
    %3574 = vmatmul.mubr.f32.gmra.mrb[0].mxu0 %v3507
    %v3575 = vpop.f32.mrb[0].mxu0
    %v3576 = vadd.f32 0.0, %v3575
    %v3577 = vpop.f32.mrb[0].mxu0
    %3578 = vdwg.mxu0
    %3579 = vrot.lane.b32.xlu0 %v2678, 64
    %v3580 = vpop.permute.xlu0 %3579
    %v3583 = vsel %vm82, %v3346, 0
    %3585 = vmatprep.subr.mxu0 0.0
    %3586 = vmatpush1.msra.mxu0 %v3580
    %3587 = vmatprep.subr.mxu0 0.0
    %3588 = vmatpush1.msra.mxu0 0.0
    %3589 = vmatprep.subr.mxu0 0.0
    %3590 = vmatpush1.msra.mxu0 0.0
    %3591 = vmatprep.subr.mxu0 0.0
    %3592 = vmatpush1.msra.mxu0 0.0
    %3593 = vmatprep.subr.mxu0 0.0
    %3594 = vmatpush1.msra.mxu0 0.0
    %3595 = vmatprep.subr.mxu0 0.0
    %3596 = vmatpush1.msra.mxu0 0.0
    %3597 = vmatprep.subr.mxu0 0.0
    %3598 = vmatpush1.msra.mxu0 0.0
    %3599 = vmatprep.subr.mxu0 0.0
    %3600 = vmatpush1.msra.mxu0 0.0
    %3601 = vmatprep.subr.mxu0 0.0
    %3602 = vmatpush1.msra.mxu0 0.0
    %3603 = vmatprep.subr.mxu0 0.0
    %3604 = vmatpush1.msra.mxu0 0.0
    %3605 = vmatprep.subr.mxu0 0.0
    %3606 = vmatpush1.msra.mxu0 0.0
    %3607 = vmatprep.subr.mxu0 0.0
    %3608 = vmatpush1.msra.mxu0 0.0
    %3609 = vmatprep.subr.mxu0 0.0
    %3610 = vmatpush1.msra.mxu0 0.0
    %3611 = vmatprep.subr.mxu0 0.0
    %3612 = vmatpush1.msra.mxu0 0.0
    %3613 = vmatprep.subr.mxu0 0.0
    %3614 = vmatpush1.msra.mxu0 0.0
    %3615 = vmatprep.subr.mxu0 0.0
    %3616 = vmatpush1.msra.mxu0 0.0
    %3617 = vmatprep.subr.mxu0 0.0
    %3618 = vmatpush1.msra.mxu0 0.0
    %3619 = vmatprep.subr.mxu0 0.0
    %3620 = vmatpush1.msra.mxu0 0.0
    %3621 = vmatprep.subr.mxu0 0.0
    %3622 = vmatpush1.msra.mxu0 0.0
    %3623 = vmatprep.subr.mxu0 0.0
    %3624 = vmatpush1.msra.mxu0 0.0
    %3625 = vmatprep.subr.mxu0 0.0
    %3626 = vmatpush1.msra.mxu0 0.0
    %3627 = vmatprep.subr.mxu0 0.0
    %3628 = vmatpush1.msra.mxu0 0.0
    %3629 = vmatprep.subr.mxu0 0.0
    %3630 = vmatpush1.msra.mxu0 0.0
    %3631 = vmatprep.subr.mxu0 0.0
    %3632 = vmatpush1.msra.mxu0 0.0
    %3633 = vmatprep.subr.mxu0 0.0
    %3634 = vmatpush1.msra.mxu0 0.0
    %3635 = vmatprep.subr.mxu0 0.0
    %3636 = vmatpush1.msra.mxu0 0.0
    %3637 = vmatprep.subr.mxu0 0.0
    %3638 = vmatpush1.msra.mxu0 0.0
    %3639 = vmatprep.subr.mxu0 0.0
    %3640 = vmatpush1.msra.mxu0 0.0
    %3641 = vmatprep.subr.mxu0 0.0
    %3642 = vmatpush1.msra.mxu0 0.0
    %3643 = vmatprep.subr.mxu0 0.0
    %3644 = vmatpush1.msra.mxu0 0.0
    %3645 = vmatprep.subr.mxu0 0.0
    %3646 = vmatpush1.msra.mxu0 0.0
    %3647 = vmatprep.subr.mxu0 0.0
    %3648 = vmatpush1.msra.mxu0 0.0
    %3649 = vmatprep.mubr.f32.mxu0 0.0
    %3650 = vmatmul.mubr.f32.gmra.mrb[0].mxu0 %v3583
    %v3651 = vpop.f32.mrb[0].mxu0
    %v3652 = vadd.f32 0.0, %v3651
    %v3653 = vpop.f32.mrb[0].mxu0
    %3654 = vdwg.mxu0
    %3655 = vrot.lane.b32.xlu0 %v2680, 64
    %v3656 = vpop.permute.xlu0 %3655
    %v3659 = vsel %vm82, %v3347, 0
    %3661 = vmatprep.subr.mxu0 0.0
    %3662 = vmatpush1.msra.mxu0 %v3656
    %3663 = vmatprep.subr.mxu0 0.0
    %3664 = vmatpush1.msra.mxu0 0.0
    %3665 = vmatprep.subr.mxu0 0.0
    %3666 = vmatpush1.msra.mxu0 0.0
    %3667 = vmatprep.subr.mxu0 0.0
    %3668 = vmatpush1.msra.mxu0 0.0
    %3669 = vmatprep.subr.mxu0 0.0
    %3670 = vmatpush1.msra.mxu0 0.0
    %3671 = vmatprep.subr.mxu0 0.0
    %3672 = vmatpush1.msra.mxu0 0.0
    %3673 = vmatprep.subr.mxu0 0.0
    %3674 = vmatpush1.msra.mxu0 0.0
    %3675 = vmatprep.subr.mxu0 0.0
    %3676 = vmatpush1.msra.mxu0 0.0
    %3677 = vmatprep.subr.mxu0 0.0
    %3678 = vmatpush1.msra.mxu0 0.0
    %3679 = vmatprep.subr.mxu0 0.0
    %3680 = vmatpush1.msra.mxu0 0.0
    %3681 = vmatprep.subr.mxu0 0.0
    %3682 = vmatpush1.msra.mxu0 0.0
    %3683 = vmatprep.subr.mxu0 0.0
    %3684 = vmatpush1.msra.mxu0 0.0
    %3685 = vmatprep.subr.mxu0 0.0
    %3686 = vmatpush1.msra.mxu0 0.0
    %3687 = vmatprep.subr.mxu0 0.0
    %3688 = vmatpush1.msra.mxu0 0.0
    %3689 = vmatprep.subr.mxu0 0.0
    %3690 = vmatpush1.msra.mxu0 0.0
    %3691 = vmatprep.subr.mxu0 0.0
    %3692 = vmatpush1.msra.mxu0 0.0
    %3693 = vmatprep.subr.mxu0 0.0
    %3694 = vmatpush1.msra.mxu0 0.0
    %3695 = vmatprep.subr.mxu0 0.0
    %3696 = vmatpush1.msra.mxu0 0.0
    %3697 = vmatprep.subr.mxu0 0.0
    %3698 = vmatpush1.msra.mxu0 0.0
    %3699 = vmatprep.subr.mxu0 0.0
    %3700 = vmatpush1.msra.mxu0 0.0
    %3701 = vmatprep.subr.mxu0 0.0
    %3702 = vmatpush1.msra.mxu0 0.0
    %3703 = vmatprep.subr.mxu0 0.0
    %3704 = vmatpush1.msra.mxu0 0.0
    %3705 = vmatprep.subr.mxu0 0.0
    %3706 = vmatpush1.msra.mxu0 0.0
    %3707 = vmatprep.subr.mxu0 0.0
    %3708 = vmatpush1.msra.mxu0 0.0
    %3709 = vmatprep.subr.mxu0 0.0
    %3710 = vmatpush1.msra.mxu0 0.0
    %3711 = vmatprep.subr.mxu0 0.0
    %3712 = vmatpush1.msra.mxu0 0.0
    %3713 = vmatprep.subr.mxu0 0.0
    %3714 = vmatpush1.msra.mxu0 0.0
    %3715 = vmatprep.subr.mxu0 0.0
    %3716 = vmatpush1.msra.mxu0 0.0
    %3717 = vmatprep.subr.mxu0 0.0
    %3718 = vmatpush1.msra.mxu0 0.0
    %3719 = vmatprep.subr.mxu0 0.0
    %3720 = vmatpush1.msra.mxu0 0.0
    %3721 = vmatprep.subr.mxu0 0.0
    %3722 = vmatpush1.msra.mxu0 0.0
    %3723 = vmatprep.subr.mxu0 0.0
    %3724 = vmatpush1.msra.mxu0 0.0
    %3725 = vmatprep.mubr.f32.mxu0 0.0
    %3726 = vmatmul.mubr.f32.gmra.mrb[0].mxu0 %v3659
    %v3727 = vpop.f32.mrb[0].mxu0
    %v3728 = vadd.f32 0.0, %v3727
    %v3729 = vpop.f32.mrb[0].mxu0
    %3730 = vdwg.mxu0
    %3731 = vrot.lane.b32.xlu0 %v2682, 64
    %v3732 = vpop.permute.xlu0 %3731
    %v3735 = vsel %vm82, %v3348, 0
    %3737 = vmatprep.subr.mxu0 0.0
    %3738 = vmatpush1.msra.mxu0 %v3732
    %3739 = vmatprep.subr.mxu0 0.0
    %3740 = vmatpush1.msra.mxu0 0.0
    %3741 = vmatprep.subr.mxu0 0.0
    %3742 = vmatpush1.msra.mxu0 0.0
    %3743 = vmatprep.subr.mxu0 0.0
    %3744 = vmatpush1.msra.mxu0 0.0
    %3745 = vmatprep.subr.mxu0 0.0
    %3746 = vmatpush1.msra.mxu0 0.0
    %3747 = vmatprep.subr.mxu0 0.0
    %3748 = vmatpush1.msra.mxu0 0.0
    %3749 = vmatprep.subr.mxu0 0.0
    %3750 = vmatpush1.msra.mxu0 0.0
    %3751 = vmatprep.subr.mxu0 0.0
    %3752 = vmatpush1.msra.mxu0 0.0
    %3753 = vmatprep.subr.mxu0 0.0
    %3754 = vmatpush1.msra.mxu0 0.0
    %3755 = vmatprep.subr.mxu0 0.0
    %3756 = vmatpush1.msra.mxu0 0.0
    %3757 = vmatprep.subr.mxu0 0.0
    %3758 = vmatpush1.msra.mxu0 0.0
    %3759 = vmatprep.subr.mxu0 0.0
    %3760 = vmatpush1.msra.mxu0 0.0
    %3761 = vmatprep.subr.mxu0 0.0
    %3762 = vmatpush1.msra.mxu0 0.0
    %3763 = vmatprep.subr.mxu0 0.0
    %3764 = vmatpush1.msra.mxu0 0.0
    %3765 = vmatprep.subr.mxu0 0.0
    %3766 = vmatpush1.msra.mxu0 0.0
    %3767 = vmatprep.subr.mxu0 0.0
    %3768 = vmatpush1.msra.mxu0 0.0
    %3769 = vmatprep.subr.mxu0 0.0
    %3770 = vmatpush1.msra.mxu0 0.0
    %3771 = vmatprep.subr.mxu0 0.0
    %3772 = vmatpush1.msra.mxu0 0.0
    %3773 = vmatprep.subr.mxu0 0.0
    %3774 = vmatpush1.msra.mxu0 0.0
    %3775 = vmatprep.subr.mxu0 0.0
    %3776 = vmatpush1.msra.mxu0 0.0
    %3777 = vmatprep.subr.mxu0 0.0
    %3778 = vmatpush1.msra.mxu0 0.0
    %3779 = vmatprep.subr.mxu0 0.0
    %3780 = vmatpush1.msra.mxu0 0.0
    %3781 = vmatprep.subr.mxu0 0.0
    %3782 = vmatpush1.msra.mxu0 0.0
    %3783 = vmatprep.subr.mxu0 0.0
    %3784 = vmatpush1.msra.mxu0 0.0
    %3785 = vmatprep.subr.mxu0 0.0
    %3786 = vmatpush1.msra.mxu0 0.0
    %3787 = vmatprep.subr.mxu0 0.0
    %3788 = vmatpush1.msra.mxu0 0.0
    %3789 = vmatprep.subr.mxu0 0.0
    %3790 = vmatpush1.msra.mxu0 0.0
    %3791 = vmatprep.subr.mxu0 0.0
    %3792 = vmatpush1.msra.mxu0 0.0
    %3793 = vmatprep.subr.mxu0 0.0
    %3794 = vmatpush1.msra.mxu0 0.0
    %3795 = vmatprep.subr.mxu0 0.0
    %3796 = vmatpush1.msra.mxu0 0.0
    %3797 = vmatprep.subr.mxu0 0.0
    %3798 = vmatpush1.msra.mxu0 0.0
    %3799 = vmatprep.subr.mxu0 0.0
    %3800 = vmatpush1.msra.mxu0 0.0
    %3801 = vmatprep.mubr.f32.mxu0 0.0
    %3802 = vmatmul.mubr.f32.gmra.mrb[0].mxu0 %v3735
    %v3803 = vpop.f32.mrb[0].mxu0
    %v3804 = vadd.f32 0.0, %v3803
    %v3805 = vpop.f32.mrb[0].mxu0
    %3806 = vdwg.mxu0
    %3807 = vrot.lane.b32.xlu0 %v2684, 64
    %v3808 = vpop.permute.xlu0 %3807
    %v3811 = vsel %vm82, %v3349, 0
    %3813 = vmatprep.subr.mxu0 0.0
    %3814 = vmatpush1.msra.mxu0 %v3808
    %3815 = vmatprep.subr.mxu0 0.0
    %3816 = vmatpush1.msra.mxu0 0.0
    %3817 = vmatprep.subr.mxu0 0.0
    %3818 = vmatpush1.msra.mxu0 0.0
    %3819 = vmatprep.subr.mxu0 0.0
    %3820 = vmatpush1.msra.mxu0 0.0
    %3821 = vmatprep.subr.mxu0 0.0
    %3822 = vmatpush1.msra.mxu0 0.0
    %3823 = vmatprep.subr.mxu0 0.0
    %3824 = vmatpush1.msra.mxu0 0.0
    %3825 = vmatprep.subr.mxu0 0.0
    %3826 = vmatpush1.msra.mxu0 0.0
    %3827 = vmatprep.subr.mxu0 0.0
    %3828 = vmatpush1.msra.mxu0 0.0
    %3829 = vmatprep.subr.mxu0 0.0
    %3830 = vmatpush1.msra.mxu0 0.0
    %3831 = vmatprep.subr.mxu0 0.0
    %3832 = vmatpush1.msra.mxu0 0.0
    %3833 = vmatprep.subr.mxu0 0.0
    %3834 = vmatpush1.msra.mxu0 0.0
    %3835 = vmatprep.subr.mxu0 0.0
    %3836 = vmatpush1.msra.mxu0 0.0
    %3837 = vmatprep.subr.mxu0 0.0
    %3838 = vmatpush1.msra.mxu0 0.0
    %3839 = vmatprep.subr.mxu0 0.0
    %3840 = vmatpush1.msra.mxu0 0.0
    %3841 = vmatprep.subr.mxu0 0.0
    %3842 = vmatpush1.msra.mxu0 0.0
    %3843 = vmatprep.subr.mxu0 0.0
    %3844 = vmatpush1.msra.mxu0 0.0
    %3845 = vmatprep.subr.mxu0 0.0
    %3846 = vmatpush1.msra.mxu0 0.0
    %3847 = vmatprep.subr.mxu0 0.0
    %3848 = vmatpush1.msra.mxu0 0.0
    %3849 = vmatprep.subr.mxu0 0.0
    %3850 = vmatpush1.msra.mxu0 0.0
    %3851 = vmatprep.subr.mxu0 0.0
    %3852 = vmatpush1.msra.mxu0 0.0
    %3853 = vmatprep.subr.mxu0 0.0
    %3854 = vmatpush1.msra.mxu0 0.0
    %3855 = vmatprep.subr.mxu0 0.0
    %3856 = vmatpush1.msra.mxu0 0.0
    %3857 = vmatprep.subr.mxu0 0.0
    %3858 = vmatpush1.msra.mxu0 0.0
    %3859 = vmatprep.subr.mxu0 0.0
    %3860 = vmatpush1.msra.mxu0 0.0
    %3861 = vmatprep.subr.mxu0 0.0
    %3862 = vmatpush1.msra.mxu0 0.0
    %3863 = vmatprep.subr.mxu0 0.0
    %3864 = vmatpush1.msra.mxu0 0.0
    %3865 = vmatprep.subr.mxu0 0.0
    %3866 = vmatpush1.msra.mxu0 0.0
    %3867 = vmatprep.subr.mxu0 0.0
    %3868 = vmatpush1.msra.mxu0 0.0
    %3869 = vmatprep.subr.mxu0 0.0
    %3870 = vmatpush1.msra.mxu0 0.0
    %3871 = vmatprep.subr.mxu0 0.0
    %3872 = vmatpush1.msra.mxu0 0.0
    %3873 = vmatprep.subr.mxu0 0.0
    %3874 = vmatpush1.msra.mxu0 0.0
    %3875 = vmatprep.subr.mxu0 0.0
    %3876 = vmatpush1.msra.mxu0 0.0
    %3877 = vmatprep.mubr.f32.mxu0 0.0
    %3878 = vmatmul.mubr.f32.gmra.mrb[0].mxu0 %v3811
    %v3879 = vpop.f32.mrb[0].mxu0
    %v3880 = vadd.f32 0.0, %v3879
    %v3881 = vpop.f32.mrb[0].mxu0
    %3882 = vdwg.mxu0
    %3883 = vrot.lane.b32.xlu0 %v2686, 64
    %v3884 = vpop.permute.xlu0 %3883
    %v3887 = vsel %vm82, %v3350, 0
    %3889 = vmatprep.subr.mxu0 0.0
    %3890 = vmatpush1.msra.mxu0 %v3884
    %3891 = vmatprep.subr.mxu0 0.0
    %3892 = vmatpush1.msra.mxu0 0.0
    %3893 = vmatprep.subr.mxu0 0.0
    %3894 = vmatpush1.msra.mxu0 0.0
    %3895 = vmatprep.subr.mxu0 0.0
    %3896 = vmatpush1.msra.mxu0 0.0
    %3897 = vmatprep.subr.mxu0 0.0
    %3898 = vmatpush1.msra.mxu0 0.0
    %3899 = vmatprep.subr.mxu0 0.0
    %3900 = vmatpush1.msra.mxu0 0.0
    %3901 = vmatprep.subr.mxu0 0.0
    %3902 = vmatpush1.msra.mxu0 0.0
    %3903 = vmatprep.subr.mxu0 0.0
    %3904 = vmatpush1.msra.mxu0 0.0
    %3905 = vmatprep.subr.mxu0 0.0
    %3906 = vmatpush1.msra.mxu0 0.0
    %3907 = vmatprep.subr.mxu0 0.0
    %3908 = vmatpush1.msra.mxu0 0.0
    %3909 = vmatprep.subr.mxu0 0.0
    %3910 = vmatpush1.msra.mxu0 0.0
    %3911 = vmatprep.subr.mxu0 0.0
    %3912 = vmatpush1.msra.mxu0 0.0
    %3913 = vmatprep.subr.mxu0 0.0
    %3914 = vmatpush1.msra.mxu0 0.0
    %3915 = vmatprep.subr.mxu0 0.0
    %3916 = vmatpush1.msra.mxu0 0.0
    %3917 = vmatprep.subr.mxu0 0.0
    %3918 = vmatpush1.msra.mxu0 0.0
    %3919 = vmatprep.subr.mxu0 0.0
    %3920 = vmatpush1.msra.mxu0 0.0
    %3921 = vmatprep.subr.mxu0 0.0
    %3922 = vmatpush1.msra.mxu0 0.0
    %3923 = vmatprep.subr.mxu0 0.0
    %3924 = vmatpush1.msra.mxu0 0.0
    %3925 = vmatprep.subr.mxu0 0.0
    %3926 = vmatpush1.msra.mxu0 0.0
    %3927 = vmatprep.subr.mxu0 0.0
    %3928 = vmatpush1.msra.mxu0 0.0
    %3929 = vmatprep.subr.mxu0 0.0
    %3930 = vmatpush1.msra.mxu0 0.0
    %3931 = vmatprep.subr.mxu0 0.0
    %3932 = vmatpush1.msra.mxu0 0.0
    %3933 = vmatprep.subr.mxu0 0.0
    %3934 = vmatpush1.msra.mxu0 0.0
    %3935 = vmatprep.subr.mxu0 0.0
    %3936 = vmatpush1.msra.mxu0 0.0
    %3937 = vmatprep.subr.mxu0 0.0
    %3938 = vmatpush1.msra.mxu0 0.0
    %3939 = vmatprep.subr.mxu0 0.0
    %3940 = vmatpush1.msra.mxu0 0.0
    %3941 = vmatprep.subr.mxu0 0.0
    %3942 = vmatpush1.msra.mxu0 0.0
    %3943 = vmatprep.subr.mxu0 0.0
    %3944 = vmatpush1.msra.mxu0 0.0
    %3945 = vmatprep.subr.mxu0 0.0
    %3946 = vmatpush1.msra.mxu0 0.0
    %3947 = vmatprep.subr.mxu0 0.0
    %3948 = vmatpush1.msra.mxu0 0.0
    %3949 = vmatprep.subr.mxu0 0.0
    %3950 = vmatpush1.msra.mxu0 0.0
    %3951 = vmatprep.subr.mxu0 0.0
    %3952 = vmatpush1.msra.mxu0 0.0
    %3953 = vmatprep.mubr.f32.mxu0 0.0
    %3954 = vmatmul.mubr.f32.gmra.mrb[0].mxu0 %v3887
    %v3955 = vpop.f32.mrb[0].mxu0
    %v3956 = vadd.f32 0.0, %v3955
    %v3957 = vpop.f32.mrb[0].mxu0
    %3958 = vdwg.mxu0
    %s3959 = scalar_lea.vmem %s6, 32
    %v3960 = vld [vmem:[%s3959] sm:$0xff]
    %v3961 = vld [vmem:[%s3959 + $0x8] sm:$0xff]
    %v3962 = vld [vmem:[%s3959 + $0x10] sm:$0xff]
    %v3963 = vld [vmem:[%s3959 + $0x18] sm:$0xff]
    %v3965 = vsel %vm82, %v3424, 0
    %v3968 = vsel %vm82, %v3500, 0
    %3970 = vmatprep.subr.mxu0 0.0
    %3971 = vmatpush1.msra.mxu0 %v3960
    %3972 = vmatprep.subr.mxu0 0.0
    %3973 = vmatpush1.msra.mxu0 0.0
    %3974 = vmatprep.subr.mxu0 0.0
    %3975 = vmatpush1.msra.mxu0 0.0
    %3976 = vmatprep.subr.mxu0 0.0
    %3977 = vmatpush1.msra.mxu0 0.0
    %3978 = vmatprep.subr.mxu0 0.0
    %3979 = vmatpush1.msra.mxu0 0.0
    %3980 = vmatprep.subr.mxu0 0.0
    %3981 = vmatpush1.msra.mxu0 0.0
    %3982 = vmatprep.subr.mxu0 0.0
    %3983 = vmatpush1.msra.mxu0 0.0
    %3984 = vmatprep.subr.mxu0 0.0
    %3985 = vmatpush1.msra.mxu0 0.0
    %3986 = vmatprep.subr.mxu0 0.0
    %3987 = vmatpush1.msra.mxu0 0.0
    %3988 = vmatprep.subr.mxu0 0.0
    %3989 = vmatpush1.msra.mxu0 0.0
    %3990 = vmatprep.subr.mxu0 0.0
    %3991 = vmatpush1.msra.mxu0 0.0
    %3992 = vmatprep.subr.mxu0 0.0
    %3993 = vmatpush1.msra.mxu0 0.0
    %3994 = vmatprep.subr.mxu0 0.0
    %3995 = vmatpush1.msra.mxu0 0.0
    %3996 = vmatprep.subr.mxu0 0.0
    %3997 = vmatpush1.msra.mxu0 0.0
    %3998 = vmatprep.subr.mxu0 0.0
    %3999 = vmatpush1.msra.mxu0 0.0
    %4000 = vmatprep.subr.mxu0 0.0
    %4001 = vmatpush1.msra.mxu0 0.0
    %4002 = vmatprep.subr.mxu0 0.0
    %4003 = vmatpush1.msra.mxu0 0.0
    %4004 = vmatprep.subr.mxu0 0.0
    %4005 = vmatpush1.msra.mxu0 0.0
    %4006 = vmatprep.subr.mxu0 0.0
    %4007 = vmatpush1.msra.mxu0 0.0
    %4008 = vmatprep.subr.mxu0 0.0
    %4009 = vmatpush1.msra.mxu0 0.0
    %4010 = vmatprep.subr.mxu0 0.0
    %4011 = vmatpush1.msra.mxu0 0.0
    %4012 = vmatprep.subr.mxu0 0.0
    %4013 = vmatpush1.msra.mxu0 0.0
    %4014 = vmatprep.subr.mxu0 0.0
    %4015 = vmatpush1.msra.mxu0 0.0
    %4016 = vmatprep.subr.mxu0 0.0
    %4017 = vmatpush1.msra.mxu0 0.0
    %4018 = vmatprep.subr.mxu0 0.0
    %4019 = vmatpush1.msra.mxu0 0.0
    %4020 = vmatprep.subr.mxu0 0.0
    %4021 = vmatpush1.msra.mxu0 0.0
    %4022 = vmatprep.subr.mxu0 0.0
    %4023 = vmatpush1.msra.mxu0 0.0
    %4024 = vmatprep.subr.mxu0 0.0
    %4025 = vmatpush1.msra.mxu0 0.0
    %4026 = vmatprep.subr.mxu0 0.0
    %4027 = vmatpush1.msra.mxu0 0.0
    %4028 = vmatprep.subr.mxu0 0.0
    %4029 = vmatpush1.msra.mxu0 0.0
    %4030 = vmatprep.subr.mxu0 0.0
    %4031 = vmatpush1.msra.mxu0 0.0
    %4032 = vmatprep.subr.mxu0 0.0
    %4033 = vmatpush1.msra.mxu0 0.0
    %4034 = vmatprep.mubr.f32.mxu0 0.0
    %4035 = vmatmul.mubr.f32.gmra.mrb[0].mxu0 %v3965
    %v4036 = vpop.f32.mrb[0].mxu0
    %v4037 = vadd.f32 0.0, %v4036
    %v4038 = vpop.f32.mrb[0].mxu0
    %4039 = vmatprep.mubr.f32.mxu0 0.0
    %4040 = vmatmul.mubr.f32.gmra.mrb[0].mxu0 %v3968
    %v4041 = vpop.f32.mrb[0].mxu0
    %v4042 = vadd.f32 0.0, %v4041
    %v4043 = vpop.f32.mrb[0].mxu0
    %4044 = vdwg.mxu0
    %v4046 = vsel %vm82, %v3576, 0
    %v4049 = vsel %vm82, %v3652, 0
    %4051 = vmatprep.subr.mxu0 0.0
    %4052 = vmatpush1.msra.mxu0 %v3961
    %4053 = vmatprep.subr.mxu0 0.0
    %4054 = vmatpush1.msra.mxu0 0.0
    %4055 = vmatprep.subr.mxu0 0.0
    %4056 = vmatpush1.msra.mxu0 0.0
    %4057 = vmatprep.subr.mxu0 0.0
    %4058 = vmatpush1.msra.mxu0 0.0
    %4059 = vmatprep.subr.mxu0 0.0
    %4060 = vmatpush1.msra.mxu0 0.0
    %4061 = vmatprep.subr.mxu0 0.0
    %4062 = vmatpush1.msra.mxu0 0.0
    %4063 = vmatprep.subr.mxu0 0.0
    %4064 = vmatpush1.msra.mxu0 0.0
    %4065 = vmatprep.subr.mxu0 0.0
    %4066 = vmatpush1.msra.mxu0 0.0
    %4067 = vmatprep.subr.mxu0 0.0
    %4068 = vmatpush1.msra.mxu0 0.0
    %4069 = vmatprep.subr.mxu0 0.0
    %4070 = vmatpush1.msra.mxu0 0.0
    %4071 = vmatprep.subr.mxu0 0.0
    %4072 = vmatpush1.msra.mxu0 0.0
    %4073 = vmatprep.subr.mxu0 0.0
    %4074 = vmatpush1.msra.mxu0 0.0
    %4075 = vmatprep.subr.mxu0 0.0
    %4076 = vmatpush1.msra.mxu0 0.0
    %4077 = vmatprep.subr.mxu0 0.0
    %4078 = vmatpush1.msra.mxu0 0.0
    %4079 = vmatprep.subr.mxu0 0.0
    %4080 = vmatpush1.msra.mxu0 0.0
    %4081 = vmatprep.subr.mxu0 0.0
    %4082 = vmatpush1.msra.mxu0 0.0
    %4083 = vmatprep.subr.mxu0 0.0
    %4084 = vmatpush1.msra.mxu0 0.0
    %4085 = vmatprep.subr.mxu0 0.0
    %4086 = vmatpush1.msra.mxu0 0.0
    %4087 = vmatprep.subr.mxu0 0.0
    %4088 = vmatpush1.msra.mxu0 0.0
    %4089 = vmatprep.subr.mxu0 0.0
    %4090 = vmatpush1.msra.mxu0 0.0
    %4091 = vmatprep.subr.mxu0 0.0
    %4092 = vmatpush1.msra.mxu0 0.0
    %4093 = vmatprep.subr.mxu0 0.0
    %4094 = vmatpush1.msra.mxu0 0.0
    %4095 = vmatprep.subr.mxu0 0.0
    %4096 = vmatpush1.msra.mxu0 0.0
    %4097 = vmatprep.subr.mxu0 0.0
    %4098 = vmatpush1.msra.mxu0 0.0
    %4099 = vmatprep.subr.mxu0 0.0
    %4100 = vmatpush1.msra.mxu0 0.0
    %4101 = vmatprep.subr.mxu0 0.0
    %4102 = vmatpush1.msra.mxu0 0.0
    %4103 = vmatprep.subr.mxu0 0.0
    %4104 = vmatpush1.msra.mxu0 0.0
    %4105 = vmatprep.subr.mxu0 0.0
    %4106 = vmatpush1.msra.mxu0 0.0
    %4107 = vmatprep.subr.mxu0 0.0
    %4108 = vmatpush1.msra.mxu0 0.0
    %4109 = vmatprep.subr.mxu0 0.0
    %4110 = vmatpush1.msra.mxu0 0.0
    %4111 = vmatprep.subr.mxu0 0.0
    %4112 = vmatpush1.msra.mxu0 0.0
    %4113 = vmatprep.subr.mxu0 0.0
    %4114 = vmatpush1.msra.mxu0 0.0
    %4115 = vmatprep.mubr.f32.mxu0 0.0
    %4116 = vmatmul.mubr.f32.gmra.mrb[0].mxu0 %v4046
    %v4117 = vpop.f32.mrb[0].mxu0
    %v4118 = vadd.f32 0.0, %v4117
    %v4119 = vpop.f32.mrb[0].mxu0
    %4120 = vmatprep.mubr.f32.mxu0 0.0
    %4121 = vmatmul.mubr.f32.gmra.mrb[0].mxu0 %v4049
    %v4122 = vpop.f32.mrb[0].mxu0
    %v4123 = vadd.f32 0.0, %v4122
    %v4124 = vpop.f32.mrb[0].mxu0
    %4125 = vdwg.mxu0
    %v4127 = vsel %vm82, %v3728, 0
    %v4130 = vsel %vm82, %v3804, 0
    %4132 = vmatprep.subr.mxu0 0.0
    %4133 = vmatpush1.msra.mxu0 %v3962
    %4134 = vmatprep.subr.mxu0 0.0
    %4135 = vmatpush1.msra.mxu0 0.0
    %4136 = vmatprep.subr.mxu0 0.0
    %4137 = vmatpush1.msra.mxu0 0.0
    %4138 = vmatprep.subr.mxu0 0.0
    %4139 = vmatpush1.msra.mxu0 0.0
    %4140 = vmatprep.subr.mxu0 0.0
    %4141 = vmatpush1.msra.mxu0 0.0
    %4142 = vmatprep.subr.mxu0 0.0
    %4143 = vmatpush1.msra.mxu0 0.0
    %4144 = vmatprep.subr.mxu0 0.0
    %4145 = vmatpush1.msra.mxu0 0.0
    %4146 = vmatprep.subr.mxu0 0.0
    %4147 = vmatpush1.msra.mxu0 0.0
    %4148 = vmatprep.subr.mxu0 0.0
    %4149 = vmatpush1.msra.mxu0 0.0
    %4150 = vmatprep.subr.mxu0 0.0
    %4151 = vmatpush1.msra.mxu0 0.0
    %4152 = vmatprep.subr.mxu0 0.0
    %4153 = vmatpush1.msra.mxu0 0.0
    %4154 = vmatprep.subr.mxu0 0.0
    %4155 = vmatpush1.msra.mxu0 0.0
    %4156 = vmatprep.subr.mxu0 0.0
    %4157 = vmatpush1.msra.mxu0 0.0
    %4158 = vmatprep.subr.mxu0 0.0
    %4159 = vmatpush1.msra.mxu0 0.0
    %4160 = vmatprep.subr.mxu0 0.0
    %4161 = vmatpush1.msra.mxu0 0.0
    %4162 = vmatprep.subr.mxu0 0.0
    %4163 = vmatpush1.msra.mxu0 0.0
    %4164 = vmatprep.subr.mxu0 0.0
    %4165 = vmatpush1.msra.mxu0 0.0
    %4166 = vmatprep.subr.mxu0 0.0
    %4167 = vmatpush1.msra.mxu0 0.0
    %4168 = vmatprep.subr.mxu0 0.0
    %4169 = vmatpush1.msra.mxu0 0.0
    %4170 = vmatprep.subr.mxu0 0.0
    %4171 = vmatpush1.msra.mxu0 0.0
    %4172 = vmatprep.subr.mxu0 0.0
    %4173 = vmatpush1.msra.mxu0 0.0
    %4174 = vmatprep.subr.mxu0 0.0
    %4175 = vmatpush1.msra.mxu0 0.0
    %4176 = vmatprep.subr.mxu0 0.0
    %4177 = vmatpush1.msra.mxu0 0.0
    %4178 = vmatprep.subr.mxu0 0.0
    %4179 = vmatpush1.msra.mxu0 0.0
    %4180 = vmatprep.subr.mxu0 0.0
    %4181 = vmatpush1.msra.mxu0 0.0
    %4182 = vmatprep.subr.mxu0 0.0
    %4183 = vmatpush1.msra.mxu0 0.0
    %4184 = vmatprep.subr.mxu0 0.0
    %4185 = vmatpush1.msra.mxu0 0.0
    %4186 = vmatprep.subr.mxu0 0.0
    %4187 = vmatpush1.msra.mxu0 0.0
    %4188 = vmatprep.subr.mxu0 0.0
    %4189 = vmatpush1.msra.mxu0 0.0
    %4190 = vmatprep.subr.mxu0 0.0
    %4191 = vmatpush1.msra.mxu0 0.0
    %4192 = vmatprep.subr.mxu0 0.0
    %4193 = vmatpush1.msra.mxu0 0.0
    %4194 = vmatprep.subr.mxu0 0.0
    %4195 = vmatpush1.msra.mxu0 0.0
    %4196 = vmatprep.mubr.f32.mxu0 0.0
    %4197 = vmatmul.mubr.f32.gmra.mrb[0].mxu0 %v4127
    %v4198 = vpop.f32.mrb[0].mxu0
    %v4199 = vadd.f32 0.0, %v4198
    %v4200 = vpop.f32.mrb[0].mxu0
    %4201 = vmatprep.mubr.f32.mxu0 0.0
    %4202 = vmatmul.mubr.f32.gmra.mrb[0].mxu0 %v4130
    %v4203 = vpop.f32.mrb[0].mxu0
    %v4204 = vadd.f32 0.0, %v4203
    %v4205 = vpop.f32.mrb[0].mxu0
    %4206 = vdwg.mxu0
    %v4208 = vsel %vm82, %v3880, 0
    %v4211 = vsel %vm82, %v3956, 0
    %4213 = vmatprep.subr.mxu0 0.0
    %4214 = vmatpush1.msra.mxu0 %v3963
    %4215 = vmatprep.subr.mxu0 0.0
    %4216 = vmatpush1.msra.mxu0 0.0
    %4217 = vmatprep.subr.mxu0 0.0
    %4218 = vmatpush1.msra.mxu0 0.0
    %4219 = vmatprep.subr.mxu0 0.0
    %4220 = vmatpush1.msra.mxu0 0.0
    %4221 = vmatprep.subr.mxu0 0.0
    %4222 = vmatpush1.msra.mxu0 0.0
    %4223 = vmatprep.subr.mxu0 0.0
    %4224 = vmatpush1.msra.mxu0 0.0
    %4225 = vmatprep.subr.mxu0 0.0
    %4226 = vmatpush1.msra.mxu0 0.0
    %4227 = vmatprep.subr.mxu0 0.0
    %4228 = vmatpush1.msra.mxu0 0.0
    %4229 = vmatprep.subr.mxu0 0.0
    %4230 = vmatpush1.msra.mxu0 0.0
    %4231 = vmatprep.subr.mxu0 0.0
    %4232 = vmatpush1.msra.mxu0 0.0
    %4233 = vmatprep.subr.mxu0 0.0
    %4234 = vmatpush1.msra.mxu0 0.0
    %4235 = vmatprep.subr.mxu0 0.0
    %4236 = vmatpush1.msra.mxu0 0.0
    %4237 = vmatprep.subr.mxu0 0.0
    %4238 = vmatpush1.msra.mxu0 0.0
    %4239 = vmatprep.subr.mxu0 0.0
    %4240 = vmatpush1.msra.mxu0 0.0
    %4241 = vmatprep.subr.mxu0 0.0
    %4242 = vmatpush1.msra.mxu0 0.0
    %4243 = vmatprep.subr.mxu0 0.0
    %4244 = vmatpush1.msra.mxu0 0.0
    %4245 = vmatprep.subr.mxu0 0.0
    %4246 = vmatpush1.msra.mxu0 0.0
    %4247 = vmatprep.subr.mxu0 0.0
    %4248 = vmatpush1.msra.mxu0 0.0
    %4249 = vmatprep.subr.mxu0 0.0
    %4250 = vmatpush1.msra.mxu0 0.0
    %4251 = vmatprep.subr.mxu0 0.0
    %4252 = vmatpush1.msra.mxu0 0.0
    %4253 = vmatprep.subr.mxu0 0.0
    %4254 = vmatpush1.msra.mxu0 0.0
    %4255 = vmatprep.subr.mxu0 0.0
    %4256 = vmatpush1.msra.mxu0 0.0
    %4257 = vmatprep.subr.mxu0 0.0
    %4258 = vmatpush1.msra.mxu0 0.0
    %4259 = vmatprep.subr.mxu0 0.0
    %4260 = vmatpush1.msra.mxu0 0.0
    %4261 = vmatprep.subr.mxu0 0.0
    %4262 = vmatpush1.msra.mxu0 0.0
    %4263 = vmatprep.subr.mxu0 0.0
    %4264 = vmatpush1.msra.mxu0 0.0
    %4265 = vmatprep.subr.mxu0 0.0
    %4266 = vmatpush1.msra.mxu0 0.0
    %4267 = vmatprep.subr.mxu0 0.0
    %4268 = vmatpush1.msra.mxu0 0.0
    %4269 = vmatprep.subr.mxu0 0.0
    %4270 = vmatpush1.msra.mxu0 0.0
    %4271 = vmatprep.subr.mxu0 0.0
    %4272 = vmatpush1.msra.mxu0 0.0
    %4273 = vmatprep.subr.mxu0 0.0
    %4274 = vmatpush1.msra.mxu0 0.0
    %4275 = vmatprep.subr.mxu0 0.0
    %4276 = vmatpush1.msra.mxu0 0.0
    %4277 = vmatprep.mubr.f32.mxu0 0.0
    %4278 = vmatmul.mubr.f32.gmra.mrb[0].mxu0 %v4208
    %v4279 = vpop.f32.mrb[0].mxu0
    %v4280 = vadd.f32 0.0, %v4279
    %v4281 = vpop.f32.mrb[0].mxu0
    %4282 = vmatprep.mubr.f32.mxu0 0.0
    %4283 = vmatmul.mubr.f32.gmra.mrb[0].mxu0 %v4211
    %v4284 = vpop.f32.mrb[0].mxu0
    %v4285 = vadd.f32 0.0, %v4284
    %v4286 = vpop.f32.mrb[0].mxu0
    %4287 = vdwg.mxu0
    %v4288 = vsel %vm352, %v4037, 0.0
    %v4289 = vsel %vm352, %v4118, 0.0
    %v4290 = vadd.f32 %v4288, %v4289
    %v4291 = vsel %vm352, %v4199, 0.0
    %v4292 = vadd.f32 %v4290, %v4291
    %v4293 = vsel %vm352, %v4280, 0.0
    %v4294 = vadd.f32 %v4292, %v4293
    %v4295 = vsel %vm352, %v4042, 0.0
    %v4296 = vsel %vm352, %v4123, 0.0
    %v4297 = vadd.f32 %v4295, %v4296
    %v4298 = vsel %vm352, %v4204, 0.0
    %v4299 = vadd.f32 %v4297, %v4298
    %v4300 = vsel %vm352, %v4285, 0.0
    %v4301 = vadd.f32 %v4299, %v4300
    %v4302 = vlaneseq
    %v4303 = vshrl.u32 %v4302, 7
    %v4304 = vsub.s32 1, %v4303
    %v4305 = vrot.slane %v2582, %v4304
    %v4306 = vadd.f32 %v4294, %v4305
    %v4307 = vadd.f32 %v4301, %v4305
    %v4308 = vadd.f32 %v2579, %v4306
    %v4309 = vadd.f32 %v2580, %v4307
    %v4310 = vsel %vm352, %v4308, 0.0
    %4311 = vadd.xlane.f32.xlu0 %v4310
    %v4312 = vpop.xlane.xlu0 %4311
    %v4313 = vsel %vm352, %v4309, 0.0
    %4314 = vadd.xlane.f32.xlu0 %v4313
    %v4315 = vpop.xlane.xlu0 %4314
    %v4316 = vmul.f32 %v4312, %v359
    %v4317 = vmul.f32 %v4315, %v359
    %v4318 = vsub.f32 %v4308, %v4316
    %v4319 = vsub.f32 %v4309, %v4317
    %v4320 = vmul.f32 %v4318, %v4318
    %v4321 = vmul.f32 %v4319, %v4319
    %v4322 = vsel %vm352, %v4320, 0.0
    %4323 = vadd.xlane.f32.xlu0 %v4322
    %v4324 = vpop.xlane.xlu0 %4323
    %v4325 = vsel %vm352, %v4321, 0.0
    %4326 = vadd.xlane.f32.xlu0 %v4325
    %v4327 = vpop.xlane.xlu0 %4326
    %v4328 = vmul.f32 %v4324, %v359
    %v4329 = vmul.f32 %v4327, %v359
    %v4330 = vadd.f32 %v4328, 1e-05
    %v4331 = vadd.f32 %v4329, 1e-05
    %v4332 = vrsqrt.pop %v4330
    %v4333 = vrsqrt.pop %v4331
    %v4334 = vmul.f32 %v4318, %v4332
    %v4335 = vmul.f32 %v4319, %v4333
    %v4336 = vlaneseq
    %v4337 = vshrl.u32 %v4336, 7
    %v4338 = vsub.s32 2, %v4337
    %v4339 = vrot.slane %v2582, %v4338
    %v4340 = vmul.f32 %v4334, %v4339
    %v4341 = vmul.f32 %v4335, %v4339
    %v4342 = vlaneseq
    %v4343 = vshrl.u32 %v4342, 7
    %v4344 = vsub.s32 3, %v4343
    %v4345 = vrot.slane %v2582, %v4344
    %v4346 = vadd.f32 %v4340, %v4345
    %v4347 = vadd.f32 %v4341, %v4345
    %s4348 = scalar_lea.vmem %s7, 32
    %v4349 = vld [vmem:[%s4348] sm:$0xff]
    %v4350 = vld [vmem:[%s4348 + $0x8] sm:$0xff]
    %v4351 = vld [vmem:[%s4348 + $0x10] sm:$0xff]
    %v4352 = vld [vmem:[%s4348 + $0x18] sm:$0xff]
    %v4353 = vlaneseq
    %v4354 = vshrl.u32 %v4353, 7
    %v4355 = vsub.s32 4, %v4354
    %v4356 = vrot.slane %v2582, %v4355
    %v4358 = vsel %vm352, %v4346, 0
    %v4361 = vsel %vm352, %v4347, 0
    %4363 = vmatprep.subr.mxu0 0.0
    %4364 = vmatpush1.msra.mxu0 %v4349
    %4365 = vmatprep.subr.mxu0 0.0
    %4366 = vmatpush1.msra.mxu0 %v4350
    %4367 = vmatprep.subr.mxu0 0.0
    %4368 = vmatpush1.msra.mxu0 %v4351
    %4369 = vmatprep.subr.mxu0 0.0
    %4370 = vmatpush1.msra.mxu0 %v4352
    %4371 = vmatprep.subr.mxu0 0.0
    %4372 = vmatpush1.msra.mxu0 0.0
    %4373 = vmatprep.subr.mxu0 0.0
    %4374 = vmatpush1.msra.mxu0 0.0
    %4375 = vmatprep.subr.mxu0 0.0
    %4376 = vmatpush1.msra.mxu0 0.0
    %4377 = vmatprep.subr.mxu0 0.0
    %4378 = vmatpush1.msra.mxu0 0.0
    %4379 = vmatprep.subr.mxu0 0.0
    %4380 = vmatpush1.msra.mxu0 0.0
    %4381 = vmatprep.subr.mxu0 0.0
    %4382 = vmatpush1.msra.mxu0 0.0
    %4383 = vmatprep.subr.mxu0 0.0
    %4384 = vmatpush1.msra.mxu0 0.0
    %4385 = vmatprep.subr.mxu0 0.0
    %4386 = vmatpush1.msra.mxu0 0.0
    %4387 = vmatprep.subr.mxu0 0.0
    %4388 = vmatpush1.msra.mxu0 0.0
    %4389 = vmatprep.subr.mxu0 0.0
    %4390 = vmatpush1.msra.mxu0 0.0
    %4391 = vmatprep.subr.mxu0 0.0
    %4392 = vmatpush1.msra.mxu0 0.0
    %4393 = vmatprep.subr.mxu0 0.0
    %4394 = vmatpush1.msra.mxu0 0.0
    %4395 = vmatprep.subr.mxu0 0.0
    %4396 = vmatpush1.msra.mxu0 0.0
    %4397 = vmatprep.subr.mxu0 0.0
    %4398 = vmatpush1.msra.mxu0 0.0
    %4399 = vmatprep.subr.mxu0 0.0
    %4400 = vmatpush1.msra.mxu0 0.0
    %4401 = vmatprep.subr.mxu0 0.0
    %4402 = vmatpush1.msra.mxu0 0.0
    %4403 = vmatprep.subr.mxu0 0.0
    %4404 = vmatpush1.msra.mxu0 0.0
    %4405 = vmatprep.subr.mxu0 0.0
    %4406 = vmatpush1.msra.mxu0 0.0
    %4407 = vmatprep.subr.mxu0 0.0
    %4408 = vmatpush1.msra.mxu0 0.0
    %4409 = vmatprep.subr.mxu0 0.0
    %4410 = vmatpush1.msra.mxu0 0.0
    %4411 = vmatprep.subr.mxu0 0.0
    %4412 = vmatpush1.msra.mxu0 0.0
    %4413 = vmatprep.subr.mxu0 0.0
    %4414 = vmatpush1.msra.mxu0 0.0
    %4415 = vmatprep.subr.mxu0 0.0
    %4416 = vmatpush1.msra.mxu0 0.0
    %4417 = vmatprep.subr.mxu0 0.0
    %4418 = vmatpush1.msra.mxu0 0.0
    %4419 = vmatprep.subr.mxu0 0.0
    %4420 = vmatpush1.msra.mxu0 0.0
    %4421 = vmatprep.subr.mxu0 0.0
    %4422 = vmatpush1.msra.mxu0 0.0
    %4423 = vmatprep.subr.mxu0 0.0
    %4424 = vmatpush1.msra.mxu0 0.0
    %4425 = vmatprep.subr.mxu0 0.0
    %4426 = vmatpush1.msra.mxu0 0.0
    %4427 = vmatprep.mubr.f32.mxu0 0.0
    %4428 = vmatmul.mubr.f32.gmra.mrb[0].mxu0 %v4358
    %v4429 = vpop.f32.mrb[0].mxu0
    %v4430 = vadd.f32 %v4356, %v4429
    %v4431 = vpop.f32.mrb[0].mxu0
    %4432 = vmatprep.mubr.f32.mxu0 0.0
    %4433 = vmatmul.mubr.f32.gmra.mrb[0].mxu0 %v4361
    %v4434 = vpop.f32.mrb[0].mxu0
    %v4435 = vadd.f32 %v4356, %v4434
    %v4436 = vpop.f32.mrb[0].mxu0
    %4437 = vdwg.mxu0
    %v4438 = vmul.f32 %v4430, 0.5
    %v4439 = vmul.f32 %v4435, 0.5
    %v4440 = vmul.f32 %v4430, 0.044715
    %v4441 = vmul.f32 %v4435, 0.044715
    %v4442 = vmul.f32 %v4440, %v4430
    %v4443 = vmul.f32 %v4441, %v4435
    %v4444 = vmul.f32 %v4442, %v4430
    %v4445 = vmul.f32 %v4443, %v4435
    %v4446 = vadd.f32 %v4430, %v4444
    %v4447 = vadd.f32 %v4435, %v4445
    %v4448 = vmul.f32 %v4446, 0.7978846
    %v4449 = vmul.f32 %v4447, 0.7978846
    %v4450 = vtanh.pop %v4448
    %v4451 = vtanh.pop %v4449
    %v4452 = vadd.f32 %v4450, 1.0
    %v4453 = vadd.f32 %v4451, 1.0
    %v4454 = vmul.f32 %v4438, %v4452
    %v4455 = vmul.f32 %v4439, %v4453
    %s4456 = scalar_lea.vmem %s8, 64
    %v4457 = vld [vmem:[%s4456] sm:$0xff]
    %v4458 = vld [vmem:[%s4456 + $0x8] sm:$0xff]
    %v4459 = vld [vmem:[%s4456 + $0x10] sm:$0xff]
    %v4460 = vld [vmem:[%s4456 + $0x18] sm:$0xff]
    %v4461 = vld [vmem:[%s4456 + $0x20] sm:$0xff]
    %v4462 = vld [vmem:[%s4456 + $0x28] sm:$0xff]
    %v4463 = vld [vmem:[%s4456 + $0x30] sm:$0xff]
    %v4464 = vld [vmem:[%s4456 + $0x38] sm:$0xff]
    %v4465 = vlaneseq
    %v4466 = vshrl.u32 %v4465, 7
    %v4467 = vsub.s32 5, %v4466
    %v4468 = vrot.slane %v2582, %v4467
    %v4470 = vsel %vm187, %v4454, 0
    %v4473 = vsel %vm187, %v4455, 0
    %4475 = vmatprep.subr.mxu0 0.0
    %4476 = vmatpush1.msra.mxu0 %v4457
    %4477 = vmatprep.subr.mxu0 0.0
    %4478 = vmatpush1.msra.mxu0 %v4458
    %4479 = vmatprep.subr.mxu0 0.0
    %4480 = vmatpush1.msra.mxu0 %v4459
    %4481 = vmatprep.subr.mxu0 0.0
    %4482 = vmatpush1.msra.mxu0 %v4460
    %4483 = vmatprep.subr.mxu0 0.0
    %4484 = vmatpush1.msra.mxu0 %v4461
    %4485 = vmatprep.subr.mxu0 0.0
    %4486 = vmatpush1.msra.mxu0 %v4462
    %4487 = vmatprep.subr.mxu0 0.0
    %4488 = vmatpush1.msra.mxu0 %v4463
    %4489 = vmatprep.subr.mxu0 0.0
    %4490 = vmatpush1.msra.mxu0 %v4464
    %4491 = vmatprep.subr.mxu0 0.0
    %4492 = vmatpush1.msra.mxu0 0.0
    %4493 = vmatprep.subr.mxu0 0.0
    %4494 = vmatpush1.msra.mxu0 0.0
    %4495 = vmatprep.subr.mxu0 0.0
    %4496 = vmatpush1.msra.mxu0 0.0
    %4497 = vmatprep.subr.mxu0 0.0
    %4498 = vmatpush1.msra.mxu0 0.0
    %4499 = vmatprep.subr.mxu0 0.0
    %4500 = vmatpush1.msra.mxu0 0.0
    %4501 = vmatprep.subr.mxu0 0.0
    %4502 = vmatpush1.msra.mxu0 0.0
    %4503 = vmatprep.subr.mxu0 0.0
    %4504 = vmatpush1.msra.mxu0 0.0
    %4505 = vmatprep.subr.mxu0 0.0
    %4506 = vmatpush1.msra.mxu0 0.0
    %4507 = vmatprep.subr.mxu0 0.0
    %4508 = vmatpush1.msra.mxu0 0.0
    %4509 = vmatprep.subr.mxu0 0.0
    %4510 = vmatpush1.msra.mxu0 0.0
    %4511 = vmatprep.subr.mxu0 0.0
    %4512 = vmatpush1.msra.mxu0 0.0
    %4513 = vmatprep.subr.mxu0 0.0
    %4514 = vmatpush1.msra.mxu0 0.0
    %4515 = vmatprep.subr.mxu0 0.0
    %4516 = vmatpush1.msra.mxu0 0.0
    %4517 = vmatprep.subr.mxu0 0.0
    %4518 = vmatpush1.msra.mxu0 0.0
    %4519 = vmatprep.subr.mxu0 0.0
    %4520 = vmatpush1.msra.mxu0 0.0
    %4521 = vmatprep.subr.mxu0 0.0
    %4522 = vmatpush1.msra.mxu0 0.0
    %4523 = vmatprep.subr.mxu0 0.0
    %4524 = vmatpush1.msra.mxu0 0.0
    %4525 = vmatprep.subr.mxu0 0.0
    %4526 = vmatpush1.msra.mxu0 0.0
    %4527 = vmatprep.subr.mxu0 0.0
    %4528 = vmatpush1.msra.mxu0 0.0
    %4529 = vmatprep.subr.mxu0 0.0
    %4530 = vmatpush1.msra.mxu0 0.0
    %4531 = vmatprep.subr.mxu0 0.0
    %4532 = vmatpush1.msra.mxu0 0.0
    %4533 = vmatprep.subr.mxu0 0.0
    %4534 = vmatpush1.msra.mxu0 0.0
    %4535 = vmatprep.subr.mxu0 0.0
    %4536 = vmatpush1.msra.mxu0 0.0
    %4537 = vmatprep.subr.mxu0 0.0
    %4538 = vmatpush1.msra.mxu0 0.0
    %4539 = vmatprep.mubr.f32.mxu0 0.0
    %4540 = vmatmul.mubr.f32.gmra.mrb[0].mxu0 %v4470
    %v4541 = vpop.f32.mrb[0].mxu0
    %v4542 = vadd.f32 %v4468, %v4541
    %v4543 = vpop.f32.mrb[0].mxu0
    %4544 = vmatprep.mubr.f32.mxu0 0.0
    %4545 = vmatmul.mubr.f32.gmra.mrb[0].mxu0 %v4473
    %v4546 = vpop.f32.mrb[0].mxu0
    %v4547 = vadd.f32 %v4468, %v4546
    %v4548 = vpop.f32.mrb[0].mxu0
    %4549 = vdwg.mxu0
    %v4550 = vadd.f32 %v4346, %v4542
    %v4551 = vadd.f32 %v4347, %v4547
    %v4552 = vsel %vm352, %v4550, 0.0
    %4553 = vadd.xlane.f32.xlu0 %v4552
    %v4554 = vpop.xlane.xlu0 %4553
    %v4555 = vsel %vm352, %v4551, 0.0
    %4556 = vadd.xlane.f32.xlu0 %v4555
    %v4557 = vpop.xlane.xlu0 %4556
    %v4558 = vmul.f32 %v4554, %v359
    %v4559 = vmul.f32 %v4557, %v359
    %v4560 = vsub.f32 %v4550, %v4558
    %v4561 = vsub.f32 %v4551, %v4559
    %v4562 = vmul.f32 %v4560, %v4560
    %v4563 = vmul.f32 %v4561, %v4561
    %v4564 = vsel %vm352, %v4562, 0.0
    %4565 = vadd.xlane.f32.xlu0 %v4564
    %v4566 = vpop.xlane.xlu0 %4565
    %v4567 = vsel %vm352, %v4563, 0.0
    %4568 = vadd.xlane.f32.xlu0 %v4567
    %v4569 = vpop.xlane.xlu0 %4568
    %v4570 = vmul.f32 %v4566, %v359
    %v4571 = vmul.f32 %v4569, %v359
    %v4572 = vadd.f32 %v4570, 1e-05
    %v4573 = vadd.f32 %v4571, 1e-05
    %v4574 = vrsqrt.pop %v4572
    %v4575 = vrsqrt.pop %v4573
    %v4576 = vmul.f32 %v4560, %v4574
    %v4577 = vmul.f32 %v4561, %v4575
    %v4578 = vlaneseq
    %v4579 = vshrl.u32 %v4578, 7
    %v4580 = vsub.s32 6, %v4579
    %v4581 = vrot.slane %v2582, %v4580
    %v4582 = vmul.f32 %v4576, %v4581
    %v4583 = vmul.f32 %v4577, %v4581
    %v4584 = vlaneseq
    %v4585 = vshrl.u32 %v4584, 7
    %v4586 = vsub.s32 7, %v4585
    %v4587 = vrot.slane %v2582, %v4586
    %v4588 = vadd.f32 %v4582, %v4587
    %v4589 = vadd.f32 %v4583, %v4587
    %4590 = vst.msk [vmem:[#allocation2] sm:$0xff] %vm352, %v4588
    %4591 = vst.msk [vmem:[#allocation2 + $0x8] sm:$0xff] %vm352, %v4589
    %v4592 = vld [vmem:[%s10] sm:$0xff]
    %v4593 = vld [vmem:[%s10 + $0x8] sm:$0xff]
    %v4594 = vld [vmem:[%s10 + $0x10] sm:$0xff]
    %v4595 = vld [vmem:[%s10 + $0x18] sm:$0xff]
    %v4596 = vld [vmem:[%s4 + $0x2] sm:$0x1]
    %v4597 = vlaneseq
    %v4598 = vshrl.u32 %v4597, 7
    %v4599 = vsub.s32 0, %v4598
    %v4600 = vrot.slane %v4596, %v4599
    %v4603 = vrot.slane %v4589, 7
    %vm4604 = vcmask 1041409
    %v4605 = vsel %vm4604, %v4603, %v4588
    %v4606 = vsel %vm352, %v4605, 0
    %4608 = vmatprep.subr.mxu0 0.0
    %4609 = vmatpush1.msra.mxu0 %v4592
    %4610 = vmatprep.subr.mxu0 0.0
    %4611 = vmatpush1.msra.mxu0 %v4593
    %4612 = vmatprep.subr.mxu0 0.0
    %4613 = vmatpush1.msra.mxu0 %v4594
    %4614 = vmatprep.subr.mxu0 0.0
    %4615 = vmatpush1.msra.mxu0 %v4595
    %4616 = vmatprep.subr.mxu0 0.0
    %4617 = vmatpush1.msra.mxu0 0.0
    %4618 = vmatprep.subr.mxu0 0.0
    %4619 = vmatpush1.msra.mxu0 0.0
    %4620 = vmatprep.subr.mxu0 0.0
    %4621 = vmatpush1.msra.mxu0 0.0
    %4622 = vmatprep.subr.mxu0 0.0
    %4623 = vmatpush1.msra.mxu0 0.0
    %4624 = vmatprep.subr.mxu0 0.0
    %4625 = vmatpush1.msra.mxu0 0.0
    %4626 = vmatprep.subr.mxu0 0.0
    %4627 = vmatpush1.msra.mxu0 0.0
    %4628 = vmatprep.subr.mxu0 0.0
    %4629 = vmatpush1.msra.mxu0 0.0
    %4630 = vmatprep.subr.mxu0 0.0
    %4631 = vmatpush1.msra.mxu0 0.0
    %4632 = vmatprep.subr.mxu0 0.0
    %4633 = vmatpush1.msra.mxu0 0.0
    %4634 = vmatprep.subr.mxu0 0.0
    %4635 = vmatpush1.msra.mxu0 0.0
    %4636 = vmatprep.subr.mxu0 0.0
    %4637 = vmatpush1.msra.mxu0 0.0
    %4638 = vmatprep.subr.mxu0 0.0
    %4639 = vmatpush1.msra.mxu0 0.0
    %4640 = vmatprep.subr.mxu0 0.0
    %4641 = vmatpush1.msra.mxu0 0.0
    %4642 = vmatprep.subr.mxu0 0.0
    %4643 = vmatpush1.msra.mxu0 0.0
    %4644 = vmatprep.subr.mxu0 0.0
    %4645 = vmatpush1.msra.mxu0 0.0
    %4646 = vmatprep.subr.mxu0 0.0
    %4647 = vmatpush1.msra.mxu0 0.0
    %4648 = vmatprep.subr.mxu0 0.0
    %4649 = vmatpush1.msra.mxu0 0.0
    %4650 = vmatprep.subr.mxu0 0.0
    %4651 = vmatpush1.msra.mxu0 0.0
    %4652 = vmatprep.subr.mxu0 0.0
    %4653 = vmatpush1.msra.mxu0 0.0
    %4654 = vmatprep.subr.mxu0 0.0
    %4655 = vmatpush1.msra.mxu0 0.0
    %4656 = vmatprep.subr.mxu0 0.0
    %4657 = vmatpush1.msra.mxu0 0.0
    %4658 = vmatprep.subr.mxu0 0.0
    %4659 = vmatpush1.msra.mxu0 0.0
    %4660 = vmatprep.subr.mxu0 0.0
    %4661 = vmatpush1.msra.mxu0 0.0
    %4662 = vmatprep.subr.mxu0 0.0
    %4663 = vmatpush1.msra.mxu0 0.0
    %4664 = vmatprep.subr.mxu0 0.0
    %4665 = vmatpush1.msra.mxu0 0.0
    %4666 = vmatprep.subr.mxu0 0.0
    %4667 = vmatpush1.msra.mxu0 0.0
    %4668 = vmatprep.subr.mxu0 0.0
    %4669 = vmatpush1.msra.mxu0 0.0
    %4670 = vmatprep.subr.mxu0 0.0
    %4671 = vmatpush1.msra.mxu0 0.0
    %4672 = vmatprep.mubr.f32.mxu0 0.0
    %4673 = vmatmul.mubr.f32.gmra.mrb[0].mxu0 %v4606
    %v4674 = vpop.f32.mrb[0].mxu0
    %v4675 = vadd.f32 %v4600, %v4674
    %v4676 = vpop.f32.mrb[0].mxu0
    %4677 = vdwg.mxu0
    %v4678 = vtanh.pop %v4675
    %vm4679 = vcmask 254976
    %4680 = vst.msk [vmem:[#allocation4] sm:$0x3] %vm4679, %v4678
    // Predicated region
    $region46: #{roberta_forward.1} parent=1 // pred_check
      _
    $region47: #{roberta_forward.1} parent=1 // pred_check_branch
      %4682 = sbr.rel (0) target = $region49
    $region48: #{roberta_forward.1} parent=1 // pred_region
      %s4684 = ssub.s32 256, 256
      %4685 = vsyncadd [#allocation3], %s4684
      %s4686 = sshll.u32 [#allocation2], 4
      %s4687 = int_to_ptr.vmem [resolvable:$true] %s4686
      %4692 = dma.vmem_to_hbm [thread:$0]  %s4687, 256, %s11, [#allocation3], 128, 128, 8
    $region49: #{roberta_forward.1} parent=1 // pred_fallthru
      _
    // Predicated region
    $region50: #{roberta_forward.1} parent=1 // pred_check
      _
    $region51: #{roberta_forward.1} parent=1 // pred_check_branch
      %4694 = sbr.rel (0) target = $region53
    $region52: #{roberta_forward.1} parent=1 // pred_region
      %s4696 = ssub.s32 32, 32
      %4697 = vsyncadd [#allocation5], %s4696
      %s4699 = sshll.u32 [#allocation4], 4
      %s4700 = int_to_ptr.vmem [resolvable:$true] %s4699
      %4702 = dma.vmem_to_hbm [thread:$0]  %s4700, 32, %s12, [#allocation5]
    $region53: #{roberta_forward.1} parent=1 // pred_fallthru
      _
    // Predicated region
    $region54: #{roberta_forward.1} parent=1 // pred_check
      _
    $region55: #{roberta_forward.1} parent=1 // pred_check_branch
      %4704 = sbr.rel (0) target = $region57
    $region56: #{roberta_forward.1} parent=1 // pred_region
      %4705 = dma.done [#allocation3], 256
    $region57: #{roberta_forward.1} parent=1 // pred_fallthru
      _
    // Predicated region
    $region58: #{roberta_forward.1} parent=1 // pred_check
      _
    $region59: #{roberta_forward.1} parent=1 // pred_check_branch
      %4707 = sbr.rel (0) target = $region61
    $region60: #{roberta_forward.1} parent=1 // pred_region
      %4708 = dma.done [#allocation5], 32
    $region61: #{roberta_forward.1} parent=1 // pred_fallthru
      _
    %4709 = vsyncpa [#allocation3], 1
    %4710 = vsyncpa [#allocation5], 1

</llo_original>
